<compile_context>
chip_gen: v7x
topology: tpu7x:2x2x1
jax: 0.10.0
libtpu: 0.0.40
codegen_flags: <defaults>
</compile_context>

<pallas_src>
import math
from functools import partial

import numpy as np
import jax
import jax.numpy as jnp
from jax import lax
from jax.experimental import pallas as pl
from jax.experimental.pallas import tpu as pltpu


# ------------------------------ Pallas kernel --------------------------------

def _saattnmem_kernel(hcm_ref, hpm_ref, mcm_ref,
                      wq_ref, bq_ref, wkvm_ref, bkvm_ref,
                      wzh_ref, wzm_ref, bz_ref,
                      wo_ref, bo_ref, mask_ref,
                      h_out_ref, m_out_ref, *, d_model, input_dim, shifts):
    f32 = jnp.float32
    dm, cin = d_model, input_dim

    h_cm = hcm_ref[0]          # (Cin, S)  channel-major hidden state
    h_pm = hpm_ref[0]          # (S, Cin)  pixel-major copy (feeds q projection)
    m_cm = mcm_ref[0]          # (Cin, S)  channel-major memory
    s = h_cm.shape[1]

    # --- query projection (1/sqrt(d_model) pre-folded into wq/bq) -------------
    hq_t = jnp.dot(h_pm, wq_ref[...], preferred_element_type=f32) + bq_ref[...]   # (S, dm)

    # --- fused 1x1 k/v projections for h and m (block-diagonal weight) --------
    hm = jnp.concatenate([h_cm, m_cm], axis=0)                                     # (2Cin, S)
    kvm = jnp.dot(wkvm_ref[...], hm, preferred_element_type=f32) + bkvm_ref[...]   # (4dm, S)
    hk, hv = kvm[0:dm], kvm[dm:2 * dm]
    mk, mv = kvm[2 * dm:3 * dm], kvm[3 * dm:4 * dm]

    # --- both QK^T in one matmul (shared query LHS) ----------------------------
    k_cat = jnp.concatenate([hk, mk], axis=1)                                      # (dm, 2S)
    scores = jnp.dot(hq_t, k_cat, preferred_element_type=f32)                      # (S, 2S)

    # Hoisted ones block: appended to V so the AV matmul also emits the softmax
    # denominators already in lane orientation (no (S,1)->(1,S) relayout).
    ones8 = jnp.ones((8, s), f32)

    def attn_z(sc, v):
        # Normalize AFTER the AV matmul: the divide touches (1, S) instead of
        # the (S, S) attention matrix, which is never materialized.
        e = jnp.exp(sc - jnp.max(sc, axis=-1, keepdims=True))                      # (S, S)
        v_aug = jnp.concatenate([v, ones8], axis=0)                                # (dm+8, S)
        z_aug = lax.dot_general(v_aug, e, (((1,), (1,)), ((), ())),
                                preferred_element_type=f32)                        # (dm+8, S)
        inv = pl.reciprocal(z_aug[dm:dm + 1], approx=False)                        # (1, S)
        return z_aug[0:dm] * inv                                                   # (dm, S)

    zh = attn_z(scores[:, 0:s], hv)
    zm = attn_z(scores[:, s:2 * s], mv)

    # --- conv_z (1x1) as two half-matmuls accumulated (no concat) --------------
    z = (jnp.dot(wzh_ref[...], zh, preferred_element_type=f32)
         + jnp.dot(wzm_ref[...], zm, preferred_element_type=f32)
         + bz_ref[...])                                                            # (dm, S)

    # --- conv_output (kxk, same padding) via XLU lane rolls + border masks -----
    # Tap t reads x[c, p + dy*W + dx]; the roll wraps across row/image borders,
    # so the precomputed 0/1 mask re-zeros those lanes (== zero padding), then
    # one MXU matmul over the stacked taps produces all three gates.
    x = jnp.concatenate([z, h_cm], axis=0)                                         # (Cz, S)
    cols = [pltpu.roll(x, shifts[t], axis=1) if shifts[t] else x
            for t in range(len(shifts))]
    im2col = jnp.concatenate(cols, axis=0) * mask_ref[...]                         # (taps*Cz, S)
    gates = (jnp.dot(wo_ref[...], im2col, preferred_element_type=f32)
             + bo_ref[...])                                                        # (3Cin, S)

    # --- memory / hidden update (VPU + EUP) -------------------------------------
    i_g = jax.nn.sigmoid(gates[0 * cin:1 * cin])
    g_g = jnp.tanh(gates[1 * cin:2 * cin])
    o_g = jax.nn.sigmoid(gates[2 * cin:3 * cin])
    m_next = i_g * g_g + (1.0 - i_g) * m_cm
    m_out_ref[0] = m_next
    h_out_ref[0] = o_g * m_next


# ----------------------------- host-side helpers -----------------------------

def _make_shifts_and_masks(H, W, kh, kw, cz):
    """Per conv tap t=(ki,kj) of a stride-1 'same'-padded (kh, kw) conv:
      * shifts[t]: static lane-roll amount so rolled[p] = x[p + dy*W + dx]
        (pixel index p = y*W + x, matching the NCHW -> (C, H*W) flattening);
      * mask rows (one (cz, S) block per tap): 1.0 where the tap reads an
        in-bounds pixel, 0.0 where the roll wrapped across a border (padding).
    """
    S = H * W
    pad_h, pad_w = kh // 2, kw // 2
    p = np.arange(S)
    ys, xs = np.divmod(p, W)
    shifts = []
    tap_masks = np.zeros((kh * kw, S), np.float32)
    for ki in range(kh):
        for kj in range(kw):
            t = ki * kw + kj
            dy, dx = ki - pad_h, kj - pad_w
            shifts.append(int((-(dy * W + dx)) % S))
            valid = (ys + dy >= 0) & (ys + dy < H) & (xs + dx >= 0) & (xs + dx < W)
            tap_masks[t, valid] = 1.0
    mask_full = np.repeat(tap_masks, cz, axis=0)   # (taps*cz, S), tap-major blocks
    return tuple(shifts), jnp.asarray(mask_full)


@partial(jax.jit, static_argnames=("shifts",))
def _saattnmem_forward(h_cm, h_pm, m_cm, wq_t, bq, wkvm, bkvm,
                       wzh, wzm, bz, wo_flat, bo, masks, *, shifts):
    n, cin, s = h_cm.shape
    dm = wzh.shape[0]

    kernel = partial(_saattnmem_kernel, d_model=dm, input_dim=cin, shifts=shifts)

    cm_spec = pl.BlockSpec((1, cin, s), lambda i: (i, 0, 0))   # (N, C, S) slabs
    pm_spec = pl.BlockSpec((1, s, cin), lambda i: (i, 0, 0))   # (N, S, C) slab

    def rep2(a):  # replicated (constant) 2-D operand
        return pl.BlockSpec(a.shape, lambda i: (0, 0))

    return pl.pallas_call(
        kernel,
        out_shape=(jax.ShapeDtypeStruct((n, cin, s), jnp.float32),
                   jax.ShapeDtypeStruct((n, cin, s), jnp.float32)),
        grid=(n,),
        in_specs=[cm_spec, pm_spec, cm_spec,
                  rep2(wq_t), rep2(bq), rep2(wkvm), rep2(bkvm),
                  rep2(wzh), rep2(wzm), rep2(bz),
                  rep2(wo_flat), rep2(bo), rep2(masks)],
        out_specs=(cm_spec, cm_spec),
        compiler_params=pltpu.CompilerParams(
            dimension_semantics=("parallel",),
            vmem_limit_bytes=32 * 1024 * 1024),
    )(h_cm, h_pm, m_cm, wq_t, bq, wkvm, bkvm, wzh, wzm, bz, wo_flat, bo, masks)


# --------------------------------- module ------------------------------------

class SAAttnMemPallas:
    """Pallas TPU implementation of SAAttnMem.forward(h, m) -> (h_next, m_next)."""

    def __init__(self, input_dim, d_model, kernel_size, key=None):
        self.input_dim = input_dim
        self.d_model = d_model
        self.kernel_size = tuple(kernel_size)
        kh, kw = self.kernel_size
        if key is None:
            key = jax.random.PRNGKey(0)
        ks = jax.random.split(key, 8)

        def conv_init(kwk, kbk, cout, cin, kh_, kw_):
            fan_in = cin * kh_ * kw_
            bound = 1.0 / math.sqrt(fan_in)
            w = jax.random.uniform(kwk, (cout, cin, kh_, kw_), jnp.float32,
                                   -bound, bound)
            b = jax.random.uniform(kbk, (cout,), jnp.float32, -bound, bound)
            return w, b

        # PyTorch-format parameters (also used by the pure-JAX reference).
        self.w_h, self.b_h = conv_init(ks[0], ks[1], 3 * d_model, input_dim, 1, 1)
        self.w_m, self.b_m = conv_init(ks[2], ks[3], 2 * d_model, input_dim, 1, 1)
        self.w_z, self.b_z = conv_init(ks[4], ks[5], d_model, 2 * d_model, 1, 1)
        self.w_o, self.b_o = conv_init(ks[6], ks[7], 3 * input_dim,
                                       input_dim + d_model, kh, kw)

        # Kernel-ready parameter layouts, built once on the host.
        dm, cin, cz = d_model, input_dim, input_dim + d_model
        scale = 1.0 / math.sqrt(dm)
        w_h2 = self.w_h[:, :, 0, 0]                           # (3dm, Cin)
        # query projection with the attention scale folded in
        self.k_wq_t = jnp.transpose(w_h2[0:dm]) * scale       # (Cin, dm)
        self.k_bq = (self.b_h[0:dm] * scale).reshape(1, dm)
        # fused block-diagonal k/v weight: [hk;hv;mk;mv] = Wkvm @ [h;m]
        w_kv = w_h2[dm:]                                      # (2dm, Cin)
        w_m2 = self.w_m[:, :, 0, 0]                           # (2dm, Cin)
        zero = jnp.zeros((2 * dm, cin), jnp.float32)
        self.k_wkvm = jnp.concatenate(
            [jnp.concatenate([w_kv, zero], axis=1),
             jnp.concatenate([zero, w_m2], axis=1)], axis=0)  # (4dm, 2Cin)
        self.k_bkvm = jnp.concatenate([self.b_h[dm:], self.b_m]).reshape(4 * dm, 1)
        # conv_z split into the Zh / Zm halves (accumulated in-kernel)
        self.k_wzh = self.w_z[:, 0:dm, 0, 0]                  # (dm, dm)
        self.k_wzm = self.w_z[:, dm:, 0, 0]                   # (dm, dm)
        self.k_bz = self.b_z.reshape(dm, 1)
        # conv_output flattened tap-major / channel-minor
        self.k_wo = jnp.transpose(self.w_o, (0, 2, 3, 1)).reshape(
            3 * cin, kh * kw * cz)                            # (3Cin, taps*Cz)
        self.k_bo = self.b_o.reshape(3 * cin, 1)
        self._geom_cache = {}

    def _shifts_masks(self, H, W):
        key = (H, W) + self.kernel_size
        if key not in self._geom_cache:
            kh, kw = self.kernel_size
            cz = self.input_dim + self.d_model
            self._geom_cache[key] = _make_shifts_and_masks(H, W, kh, kw, cz)
        return self._geom_cache[key]

    def __call__(self, h, m):
        n, cin, H, W = h.shape
        assert m.shape == h.shape and cin == self.input_dim
        s = H * W

        h_cm = h.reshape(n, cin, s).astype(jnp.float32)
        m_cm = m.reshape(n, cin, s).astype(jnp.float32)
        h_pm = jnp.transpose(h_cm, (0, 2, 1))   # tiny pixel-major copy (q proj)
        shifts, masks = self._shifts_masks(H, W)

        h_next, m_next = _saattnmem_forward(
            h_cm, h_pm, m_cm,
            self.k_wq_t, self.k_bq, self.k_wkvm, self.k_bkvm,
            self.k_wzh, self.k_wzm, self.k_bz,
            self.k_wo, self.k_bo, masks, shifts=shifts)
        return h_next.reshape(n, cin, H, W), m_next.reshape(n, cin, H, W)


# ------------------------- pure-JAX (XLA) reference ---------------------------

def _reference_forward(module, h, m):
    """Faithful port of SAAttnMem.forward in plain JAX (f32, highest precision)."""
    dm, cin = module.d_model, module.input_dim
    kh, kw = module.kernel_size
    N, _, H, W = h.shape
    S = H * W
    hi = lax.Precision.HIGHEST

    def conv1x1(x, w, b):
        return (jnp.einsum('oc,nchw->nohw', w[:, :, 0, 0], x, precision=hi)
                + b[None, :, None, None])

    def attn_ref(q, k, v):                                   # (N, C, S) each
        scores = jnp.einsum('ncp,ncq->npq', q, k, precision=hi) / math.sqrt(q.shape[1])
        a = jax.nn.softmax(scores, axis=-1)
        return jnp.einsum('npq,ncq->ncp', a, v, precision=hi)

    hp = conv1x1(h, module.w_h, module.b_h)
    mp = conv1x1(m, module.w_m, module.b_m)
    hq, hk, hv = hp[:, :dm], hp[:, dm:2 * dm], hp[:, 2 * dm:]
    mk, mv = mp[:, :dm], mp[:, dm:]
    zh = attn_ref(hq.reshape(N, dm, S), hk.reshape(N, dm, S), hv.reshape(N, dm, S))
    zm = attn_ref(hq.reshape(N, dm, S), mk.reshape(N, dm, S), mv.reshape(N, dm, S))
    zcat = jnp.concatenate([zh.reshape(N, dm, H, W), zm.reshape(N, dm, H, W)], axis=1)
    z = conv1x1(zcat, module.w_z, module.b_z)
    xin = jnp.concatenate([z, h], axis=1)
    gates = lax.conv_general_dilated(
        xin, module.w_o, window_strides=(1, 1),
        padding=((kh // 2, kh // 2), (kw // 2, kw // 2)),
        dimension_numbers=('NCHW', 'OIHW', 'NCHW'), precision=hi
    ) + module.b_o[None, :, None, None]
    i = jax.nn.sigmoid(gates[:, :cin])
    g = jnp.tanh(gates[:, cin:2 * cin])
    o = jax.nn.sigmoid(gates[:, 2 * cin:])
    m_next = i * g + (1.0 - i) * m
    h_next = o * m_next
    return h_next, m_next


# ----------------------------------- main -------------------------------------

if __name__ == "__main__":
    key = jax.random.PRNGKey(0)
    k_param, k_h, k_m = jax.random.split(key, 3)

    # Small shapes implied by the module: batch=2 (keeps both v7x TCs busy),
    # input_dim=8, d_model=16, 16x16 spatial grid (S=256 -> lane-dense), 3x3 conv.
    N, C, H, W = 2, 8, 16, 16
    D_MODEL = 16
    module = SAAttnMemPallas(input_dim=C, d_model=D_MODEL, kernel_size=(3, 3),
                             key=k_param)

    h0 = jax.random.normal(k_h, (N, C, H, W), jnp.float32)
    m0 = jax.random.normal(k_m, (N, C, H, W), jnp.float32)

    h_next, m_next = module(h0, m0)
    jax.block_until_ready(h_next)
    jax.block_until_ready(m_next)

    assert h_next.shape == (N, C, H, W), h_next.shape
    assert m_next.shape == (N, C, H, W), m_next.shape

    # Correctness against a pure-JAX/XLA reference of the PyTorch forward.
    h_ref, m_ref = _reference_forward(module, h0, m0)
    err_h = float(jnp.max(jnp.abs(h_next - h_ref)))
    err_m = float(jnp.max(jnp.abs(m_next - m_ref)))
    assert err_h < 2e-3, err_h
    assert err_m < 2e-3, err_m

    print("KERNEL_OK")
</pallas_src>

<mosaic_0001>
module attributes {stable_mosaic.version = 11 : i64} {
  func.func @_saattnmem_kernel(%arg0: i32, %arg1: memref<1x8x256xf32, #tpu.memory_space<vmem>>, %arg2: memref<1x256x8xf32, #tpu.memory_space<vmem>>, %arg3: memref<1x8x256xf32, #tpu.memory_space<vmem>>, %arg4: memref<8x16xf32, #tpu.memory_space<vmem>>, %arg5: memref<1x16xf32, #tpu.memory_space<vmem>>, %arg6: memref<64x16xf32, #tpu.memory_space<vmem>>, %arg7: memref<64x1xf32, #tpu.memory_space<vmem>>, %arg8: memref<16x16xf32, #tpu.memory_space<vmem>>, %arg9: memref<16x16xf32, #tpu.memory_space<vmem>>, %arg10: memref<16x1xf32, #tpu.memory_space<vmem>>, %arg11: memref<24x216xf32, #tpu.memory_space<vmem>>, %arg12: memref<24x1xf32, #tpu.memory_space<vmem>>, %arg13: memref<216x256xf32, #tpu.memory_space<vmem>>, %arg14: memref<1x8x256xf32, #tpu.memory_space<vmem>>, %arg15: memref<1x8x256xf32, #tpu.memory_space<vmem>>) attributes {dimension_semantics = [#tpu.dimension_semantics<parallel>], iteration_bounds = array<i64: 2>, scalar_prefetch = 0 : i64, scratch_operands = 0 : i64, tpu.core_type = #tpu.core_type<tc>, window_params = [{transform_indices = @transform_0, window_bounds = array<i64: 1, 8, 256>}, {transform_indices = @transform_1, window_bounds = array<i64: 1, 256, 8>}, {transform_indices = @transform_2, window_bounds = array<i64: 1, 8, 256>}, {pipeline_mode = #tpu.pipeline_mode<synchronous>, transform_indices = @transform_3, window_bounds = array<i64: 8, 16>}, {pipeline_mode = #tpu.pipeline_mode<synchronous>, transform_indices = @transform_4, window_bounds = array<i64: 1, 16>}, {pipeline_mode = #tpu.pipeline_mode<synchronous>, transform_indices = @transform_5, window_bounds = array<i64: 64, 16>}, {pipeline_mode = #tpu.pipeline_mode<synchronous>, transform_indices = @transform_6, window_bounds = array<i64: 64, 1>}, {pipeline_mode = #tpu.pipeline_mode<synchronous>, transform_indices = @transform_7, window_bounds = array<i64: 16, 16>}, {pipeline_mode = #tpu.pipeline_mode<synchronous>, transform_indices = @transform_8, window_bounds = array<i64: 16, 16>}, {pipeline_mode = #tpu.pipeline_mode<synchronous>, transform_indices = @transform_9, window_bounds = array<i64: 16, 1>}, {pipeline_mode = #tpu.pipeline_mode<synchronous>, transform_indices = @transform_10, window_bounds = array<i64: 24, 216>}, {pipeline_mode = #tpu.pipeline_mode<synchronous>, transform_indices = @transform_11, window_bounds = array<i64: 24, 1>}, {pipeline_mode = #tpu.pipeline_mode<synchronous>, transform_indices = @transform_12, window_bounds = array<i64: 216, 256>}, {transform_indices = @transform_13, window_bounds = array<i64: 1, 8, 256>}, {transform_indices = @transform_14, window_bounds = array<i64: 1, 8, 256>}]} {
    %c0 = arith.constant 0 : index
    %c0_0 = arith.constant 0 : index
    %c0_1 = arith.constant 0 : index
    %0 = vector.load %arg1[%c0, %c0_0, %c0_1] : memref<1x8x256xf32, #tpu.memory_space<vmem>>, vector<1x8x256xf32>
    %1 = vector.shape_cast %0 : vector<1x8x256xf32> to vector<8x256xf32>
    %c0_2 = arith.constant 0 : index
    %c0_3 = arith.constant 0 : index
    %c0_4 = arith.constant 0 : index
    %2 = vector.load %arg2[%c0_2, %c0_3, %c0_4] : memref<1x256x8xf32, #tpu.memory_space<vmem>>, vector<1x256x8xf32>
    %3 = vector.shape_cast %2 : vector<1x256x8xf32> to vector<256x8xf32>
    %c0_5 = arith.constant 0 : index
    %c0_6 = arith.constant 0 : index
    %c0_7 = arith.constant 0 : index
    %4 = vector.load %arg3[%c0_5, %c0_6, %c0_7] : memref<1x8x256xf32, #tpu.memory_space<vmem>>, vector<1x8x256xf32>
    %5 = vector.shape_cast %4 : vector<1x8x256xf32> to vector<8x256xf32>
    %c0_8 = arith.constant 0 : index
    %c0_9 = arith.constant 0 : index
    %6 = vector.load %arg4[%c0_8, %c0_9] : memref<8x16xf32, #tpu.memory_space<vmem>>, vector<8x16xf32>
    %cst = arith.constant dense<0.000000e+00> : vector<256x16xf32>
    %7 = tpu.matmul %3, %6, %cst {dimension_numbers = #tpu.dot_dimension_numbers<[1], [0], [0], [1], [0, 0, 1, 1], [], []>} : vector<256x8xf32>, vector<8x16xf32>, vector<256x16xf32> -> vector<256x16xf32>
    %c0_10 = arith.constant 0 : index
    %c0_11 = arith.constant 0 : index
    %8 = vector.load %arg5[%c0_10, %c0_11] : memref<1x16xf32, #tpu.memory_space<vmem>>, vector<1x16xf32>
    %9 = vector.broadcast %8 : vector<1x16xf32> to vector<256x16xf32>
    %10 = arith.addf %7, %9 : vector<256x16xf32>
    %11 = tpu.concatenate %1, %5 in 0 : vector<8x256xf32>, vector<8x256xf32> -> vector<16x256xf32>
    %c0_12 = arith.constant 0 : index
    %c0_13 = arith.constant 0 : index
    %12 = vector.load %arg6[%c0_12, %c0_13] : memref<64x16xf32, #tpu.memory_space<vmem>>, vector<64x16xf32>
    %cst_14 = arith.constant dense<0.000000e+00> : vector<64x256xf32>
    %13 = tpu.matmul %12, %11, %cst_14 {dimension_numbers = #tpu.dot_dimension_numbers<[1], [0], [0], [1], [0, 0, 1, 1], [], []>} : vector<64x16xf32>, vector<16x256xf32>, vector<64x256xf32> -> vector<64x256xf32>
    %c0_15 = arith.constant 0 : index
    %c0_16 = arith.constant 0 : index
    %14 = vector.load %arg7[%c0_15, %c0_16] : memref<64x1xf32, #tpu.memory_space<vmem>>, vector<64x1xf32>
    %15 = vector.broadcast %14 : vector<64x1xf32> to vector<64x256xf32>
    %16 = arith.addf %13, %15 : vector<64x256xf32>
    %17 = vector.extract_strided_slice %16 {offsets = [0, 0], sizes = [16, 256], strides = [1, 1]} : vector<64x256xf32> to vector<16x256xf32>
    %18 = vector.extract_strided_slice %16 {offsets = [16, 0], sizes = [16, 256], strides = [1, 1]} : vector<64x256xf32> to vector<16x256xf32>
    %19 = vector.extract_strided_slice %16 {offsets = [32, 0], sizes = [16, 256], strides = [1, 1]} : vector<64x256xf32> to vector<16x256xf32>
    %20 = vector.extract_strided_slice %16 {offsets = [48, 0], sizes = [16, 256], strides = [1, 1]} : vector<64x256xf32> to vector<16x256xf32>
    %21 = tpu.concatenate %17, %19 in 1 : vector<16x256xf32>, vector<16x256xf32> -> vector<16x512xf32>
    %cst_17 = arith.constant dense<0.000000e+00> : vector<256x512xf32>
    %22 = tpu.matmul %10, %21, %cst_17 {dimension_numbers = #tpu.dot_dimension_numbers<[1], [0], [0], [1], [0, 0, 1, 1], [], []>} : vector<256x16xf32>, vector<16x512xf32>, vector<256x512xf32> -> vector<256x512xf32>
    %cst_18 = arith.constant 1.000000e+00 : f32
    %23 = vector.broadcast %cst_18 : f32 to vector<8x256xf32>
    %24 = vector.extract_strided_slice %22 {offsets = [0, 0], sizes = [256, 256], strides = [1, 1]} : vector<256x512xf32> to vector<256x256xf32>
    %cst_19 = arith.constant dense<0xFF800000> : vector<256xf32>
    %25 = vector.multi_reduction <maximumf>, %24, %cst_19 [1] : vector<256x256xf32> to vector<256xf32>
    %26 = vector.shape_cast %25 : vector<256xf32> to vector<256x1xf32>
    %27 = vector.broadcast %26 : vector<256x1xf32> to vector<256x256xf32>
    %28 = arith.subf %24, %27 : vector<256x256xf32>
    %29 = math.exp %28 : vector<256x256xf32>
    %30 = tpu.concatenate %18, %23 in 0 : vector<16x256xf32>, vector<8x256xf32> -> vector<24x256xf32>
    %cst_20 = arith.constant dense<0.000000e+00> : vector<24x256xf32>
    %31 = tpu.matmul %30, %29, %cst_20 {dimension_numbers = #tpu.dot_dimension_numbers<[1], [1], [0], [0], [0, 0, 1, 0], [], []>} : vector<24x256xf32>, vector<256x256xf32>, vector<24x256xf32> -> vector<24x256xf32>
    %32 = vector.extract_strided_slice %31 {offsets = [16, 0], sizes = [1, 256], strides = [1, 1]} : vector<24x256xf32> to vector<1x256xf32>
    %33 = tpu.reciprocal %32 : vector<1x256xf32> -> vector<1x256xf32>
    %34 = vector.extract_strided_slice %31 {offsets = [0, 0], sizes = [16, 256], strides = [1, 1]} : vector<24x256xf32> to vector<16x256xf32>
    %35 = vector.broadcast %33 : vector<1x256xf32> to vector<16x256xf32>
    %36 = arith.mulf %34, %35 : vector<16x256xf32>
    %37 = vector.extract_strided_slice %22 {offsets = [0, 256], sizes = [256, 256], strides = [1, 1]} : vector<256x512xf32> to vector<256x256xf32>
    %cst_21 = arith.constant dense<0xFF800000> : vector<256xf32>
    %38 = vector.multi_reduction <maximumf>, %37, %cst_21 [1] : vector<256x256xf32> to vector<256xf32>
    %39 = vector.shape_cast %38 : vector<256xf32> to vector<256x1xf32>
    %40 = vector.broadcast %39 : vector<256x1xf32> to vector<256x256xf32>
    %41 = arith.subf %37, %40 : vector<256x256xf32>
    %42 = math.exp %41 : vector<256x256xf32>
    %43 = tpu.concatenate %20, %23 in 0 : vector<16x256xf32>, vector<8x256xf32> -> vector<24x256xf32>
    %cst_22 = arith.constant dense<0.000000e+00> : vector<24x256xf32>
    %44 = tpu.matmul %43, %42, %cst_22 {dimension_numbers = #tpu.dot_dimension_numbers<[1], [1], [0], [0], [0, 0, 1, 0], [], []>} : vector<24x256xf32>, vector<256x256xf32>, vector<24x256xf32> -> vector<24x256xf32>
    %45 = vector.extract_strided_slice %44 {offsets = [16, 0], sizes = [1, 256], strides = [1, 1]} : vector<24x256xf32> to vector<1x256xf32>
    %46 = tpu.reciprocal %45 : vector<1x256xf32> -> vector<1x256xf32>
    %47 = vector.extract_strided_slice %44 {offsets = [0, 0], sizes = [16, 256], strides = [1, 1]} : vector<24x256xf32> to vector<16x256xf32>
    %48 = vector.broadcast %46 : vector<1x256xf32> to vector<16x256xf32>
    %49 = arith.mulf %47, %48 : vector<16x256xf32>
    %c0_23 = arith.constant 0 : index
    %c0_24 = arith.constant 0 : index
    %50 = vector.load %arg8[%c0_23, %c0_24] : memref<16x16xf32, #tpu.memory_space<vmem>>, vector<16x16xf32>
    %cst_25 = arith.constant dense<0.000000e+00> : vector<16x256xf32>
    %51 = tpu.matmul %50, %36, %cst_25 {dimension_numbers = #tpu.dot_dimension_numbers<[1], [0], [0], [1], [0, 0, 1, 1], [], []>} : vector<16x16xf32>, vector<16x256xf32>, vector<16x256xf32> -> vector<16x256xf32>
    %c0_26 = arith.constant 0 : index
    %c0_27 = arith.constant 0 : index
    %52 = vector.load %arg9[%c0_26, %c0_27] : memref<16x16xf32, #tpu.memory_space<vmem>>, vector<16x16xf32>
    %cst_28 = arith.constant dense<0.000000e+00> : vector<16x256xf32>
    %53 = tpu.matmul %52, %49, %cst_28 {dimension_numbers = #tpu.dot_dimension_numbers<[1], [0], [0], [1], [0, 0, 1, 1], [], []>} : vector<16x16xf32>, vector<16x256xf32>, vector<16x256xf32> -> vector<16x256xf32>
    %54 = arith.addf %51, %53 : vector<16x256xf32>
    %c0_29 = arith.constant 0 : index
    %c0_30 = arith.constant 0 : index
    %55 = vector.load %arg10[%c0_29, %c0_30] : memref<16x1xf32, #tpu.memory_space<vmem>>, vector<16x1xf32>
    %56 = vector.broadcast %55 : vector<16x1xf32> to vector<16x256xf32>
    %57 = arith.addf %54, %56 : vector<16x256xf32>
    %58 = tpu.concatenate %57, %1 in 0 : vector<16x256xf32>, vector<8x256xf32> -> vector<24x256xf32>
    %c17_i32 = arith.constant 17 : i32
    %59 = tpu.dynamic_rotate %58 by %c17_i32 dim 1 : vector<24x256xf32>, i32 -> vector<24x256xf32>
    %c16_i32 = arith.constant 16 : i32
    %60 = tpu.dynamic_rotate %58 by %c16_i32 dim 1 : vector<24x256xf32>, i32 -> vector<24x256xf32>
    %c15_i32 = arith.constant 15 : i32
    %61 = tpu.dynamic_rotate %58 by %c15_i32 dim 1 : vector<24x256xf32>, i32 -> vector<24x256xf32>
    %c1_i32 = arith.constant 1 : i32
    %62 = tpu.dynamic_rotate %58 by %c1_i32 dim 1 : vector<24x256xf32>, i32 -> vector<24x256xf32>
    %c255_i32 = arith.constant 255 : i32
    %63 = tpu.dynamic_rotate %58 by %c255_i32 dim 1 : vector<24x256xf32>, i32 -> vector<24x256xf32>
    %c241_i32 = arith.constant 241 : i32
    %64 = tpu.dynamic_rotate %58 by %c241_i32 dim 1 : vector<24x256xf32>, i32 -> vector<24x256xf32>
    %c240_i32 = arith.constant 240 : i32
    %65 = tpu.dynamic_rotate %58 by %c240_i32 dim 1 : vector<24x256xf32>, i32 -> vector<24x256xf32>
    %c239_i32 = arith.constant 239 : i32
    %66 = tpu.dynamic_rotate %58 by %c239_i32 dim 1 : vector<24x256xf32>, i32 -> vector<24x256xf32>
    %67 = tpu.concatenate %59, %60, %61, %62, %58, %63, %64, %65, %66 in 0 : vector<24x256xf32>, vector<24x256xf32>, vector<24x256xf32>, vector<24x256xf32>, vector<24x256xf32>, vector<24x256xf32>, vector<24x256xf32>, vector<24x256xf32>, vector<24x256xf32> -> vector<216x256xf32>
    %c0_31 = arith.constant 0 : index
    %c0_32 = arith.constant 0 : index
    %68 = vector.load %arg13[%c0_31, %c0_32] : memref<216x256xf32, #tpu.memory_space<vmem>>, vector<216x256xf32>
    %69 = arith.mulf %67, %68 : vector<216x256xf32>
    %c0_33 = arith.constant 0 : index
    %c0_34 = arith.constant 0 : index
    %70 = vector.load %arg11[%c0_33, %c0_34] : memref<24x216xf32, #tpu.memory_space<vmem>>, vector<24x216xf32>
    %cst_35 = arith.constant dense<0.000000e+00> : vector<24x256xf32>
    %71 = tpu.matmul %70, %69, %cst_35 {dimension_numbers = #tpu.dot_dimension_numbers<[1], [0], [0], [1], [0, 0, 1, 1], [], []>} : vector<24x216xf32>, vector<216x256xf32>, vector<24x256xf32> -> vector<24x256xf32>
    %c0_36 = arith.constant 0 : index
    %c0_37 = arith.constant 0 : index
    %72 = vector.load %arg12[%c0_36, %c0_37] : memref<24x1xf32, #tpu.memory_space<vmem>>, vector<24x1xf32>
    %73 = vector.broadcast %72 : vector<24x1xf32> to vector<24x256xf32>
    %74 = arith.addf %71, %73 : vector<24x256xf32>
    %75 = vector.extract_strided_slice %74 {offsets = [0, 0], sizes = [8, 256], strides = [1, 1]} : vector<24x256xf32> to vector<8x256xf32>
    %76 = arith.negf %75 : vector<8x256xf32>
    %77 = math.exp %76 : vector<8x256xf32>
    %cst_38 = arith.constant 1.000000e+00 : f32
    %78 = vector.broadcast %cst_38 : f32 to vector<8x256xf32>
    %79 = arith.addf %78, %77 : vector<8x256xf32>
    %80 = arith.divf %78, %79 : vector<8x256xf32>
    %81 = vector.extract_strided_slice %74 {offsets = [8, 0], sizes = [8, 256], strides = [1, 1]} : vector<24x256xf32> to vector<8x256xf32>
    %82 = math.tanh %81 : vector<8x256xf32>
    %83 = vector.extract_strided_slice %74 {offsets = [16, 0], sizes = [8, 256], strides = [1, 1]} : vector<24x256xf32> to vector<8x256xf32>
    %84 = arith.negf %83 : vector<8x256xf32>
    %85 = math.exp %84 : vector<8x256xf32>
    %cst_39 = arith.constant 1.000000e+00 : f32
    %86 = vector.broadcast %cst_39 : f32 to vector<8x256xf32>
    %87 = arith.addf %86, %85 : vector<8x256xf32>
    %88 = arith.divf %86, %87 : vector<8x256xf32>
    %89 = arith.mulf %80, %82 : vector<8x256xf32>
    %cst_40 = arith.constant 1.000000e+00 : f32
    %90 = vector.broadcast %cst_40 : f32 to vector<8x256xf32>
    %91 = arith.subf %90, %80 : vector<8x256xf32>
    %92 = arith.mulf %91, %5 : vector<8x256xf32>
    %93 = arith.addf %89, %92 : vector<8x256xf32>
    %c0_41 = arith.constant 0 : index
    %c0_42 = arith.constant 0 : index
    %c0_43 = arith.constant 0 : index
    %94 = vector.load %arg15[%c0_41, %c0_42, %c0_43] : memref<1x8x256xf32, #tpu.memory_space<vmem>>, vector<1x8x256xf32>
    %95 = vector.shape_cast %94 : vector<1x8x256xf32> to vector<8x256xf32>
    %96 = vector.shape_cast %93 : vector<8x256xf32> to vector<1x8x256xf32>
    tpu.vector_store %arg15[%c0_41, %c0_42, %c0_43], %96 {strides = array<i32>} : memref<1x8x256xf32, #tpu.memory_space<vmem>>, vector<1x8x256xf32>,
    %97 = arith.mulf %88, %93 : vector<8x256xf32>
    %c0_44 = arith.constant 0 : index
    %c0_45 = arith.constant 0 : index
    %c0_46 = arith.constant 0 : index
    %98 = vector.load %arg14[%c0_44, %c0_45, %c0_46] : memref<1x8x256xf32, #tpu.memory_space<vmem>>, vector<1x8x256xf32>
    %99 = vector.shape_cast %98 : vector<1x8x256xf32> to vector<8x256xf32>
    %100 = vector.shape_cast %97 : vector<8x256xf32> to vector<1x8x256xf32>
    tpu.vector_store %arg14[%c0_44, %c0_45, %c0_46], %100 {strides = array<i32>} : memref<1x8x256xf32, #tpu.memory_space<vmem>>, vector<1x8x256xf32>,
    return
  }
  func.func @transform_0(%arg0: i32) -> (i32, i32, i32) {
    %c0_i32 = arith.constant 0 : i32
    %c0_i32_0 = arith.constant 0 : i32
    %c0_i32_1 = arith.constant 0 : i32
    return %arg0, %c0_i32, %c0_i32_0 : i32, i32, i32
  }
  func.func @transform_1(%arg0: i32) -> (i32, i32, i32) {
    %c0_i32 = arith.constant 0 : i32
    %c0_i32_0 = arith.constant 0 : i32
    %c0_i32_1 = arith.constant 0 : i32
    return %arg0, %c0_i32, %c0_i32_0 : i32, i32, i32
  }
  func.func @transform_2(%arg0: i32) -> (i32, i32, i32) {
    %c0_i32 = arith.constant 0 : i32
    %c0_i32_0 = arith.constant 0 : i32
    %c0_i32_1 = arith.constant 0 : i32
    return %arg0, %c0_i32, %c0_i32_0 : i32, i32, i32
  }
  func.func @transform_3(%arg0: i32) -> (i32, i32) {
    %c0_i32 = arith.constant 0 : i32
    %c0_i32_0 = arith.constant 0 : i32
    %c0_i32_1 = arith.constant 0 : i32
    return %c0_i32, %c0_i32_0 : i32, i32
  }
  func.func @transform_4(%arg0: i32) -> (i32, i32) {
    %c0_i32 = arith.constant 0 : i32
    %c0_i32_0 = arith.constant 0 : i32
    %c0_i32_1 = arith.constant 0 : i32
    return %c0_i32, %c0_i32_0 : i32, i32
  }
  func.func @transform_5(%arg0: i32) -> (i32, i32) {
    %c0_i32 = arith.constant 0 : i32
    %c0_i32_0 = arith.constant 0 : i32
    %c0_i32_1 = arith.constant 0 : i32
    return %c0_i32, %c0_i32_0 : i32, i32
  }
  func.func @transform_6(%arg0: i32) -> (i32, i32) {
    %c0_i32 = arith.constant 0 : i32
    %c0_i32_0 = arith.constant 0 : i32
    %c0_i32_1 = arith.constant 0 : i32
    return %c0_i32, %c0_i32_0 : i32, i32
  }
  func.func @transform_7(%arg0: i32) -> (i32, i32) {
    %c0_i32 = arith.constant 0 : i32
    %c0_i32_0 = arith.constant 0 : i32
    %c0_i32_1 = arith.constant 0 : i32
    return %c0_i32, %c0_i32_0 : i32, i32
  }
  func.func @transform_8(%arg0: i32) -> (i32, i32) {
    %c0_i32 = arith.constant 0 : i32
    %c0_i32_0 = arith.constant 0 : i32
    %c0_i32_1 = arith.constant 0 : i32
    return %c0_i32, %c0_i32_0 : i32, i32
  }
  func.func @transform_9(%arg0: i32) -> (i32, i32) {
    %c0_i32 = arith.constant 0 : i32
    %c0_i32_0 = arith.constant 0 : i32
    %c0_i32_1 = arith.constant 0 : i32
    return %c0_i32, %c0_i32_0 : i32, i32
  }
  func.func @transform_10(%arg0: i32) -> (i32, i32) {
    %c0_i32 = arith.constant 0 : i32
    %c0_i32_0 = arith.constant 0 : i32
    %c0_i32_1 = arith.constant 0 : i32
    return %c0_i32, %c0_i32_0 : i32, i32
  }
  func.func @transform_11(%arg0: i32) -> (i32, i32) {
    %c0_i32 = arith.constant 0 : i32
    %c0_i32_0 = arith.constant 0 : i32
    %c0_i32_1 = arith.constant 0 : i32
    return %c0_i32, %c0_i32_0 : i32, i32
  }
  func.func @transform_12(%arg0: i32) -> (i32, i32) {
    %c0_i32 = arith.constant 0 : i32
    %c0_i32_0 = arith.constant 0 : i32
    %c0_i32_1 = arith.constant 0 : i32
    return %c0_i32, %c0_i32_0 : i32, i32
  }
  func.func @transform_13(%arg0: i32) -> (i32, i32, i32) {
    %c0_i32 = arith.constant 0 : i32
    %c0_i32_0 = arith.constant 0 : i32
    %c0_i32_1 = arith.constant 0 : i32
    return %arg0, %c0_i32, %c0_i32_0 : i32, i32, i32
  }
  func.func @transform_14(%arg0: i32) -> (i32, i32, i32) {
    %c0_i32 = arith.constant 0 : i32
    %c0_i32_0 = arith.constant 0 : i32
    %c0_i32_1 = arith.constant 0 : i32
    return %arg0, %c0_i32, %c0_i32_0 : i32, i32, i32
  }
}

</mosaic_0001>

<llo_original>
// kernel: _saattnmem_forward.1
$region0: #{_saattnmem_forward.1}
  #allocation0 [shape = 'u32[]', space=smem, size = 0x4, offset = 0x4, fixed_abs, tag = 'smem constant byte address 0x4 - core index']
  #allocation1 [shape = 'u32[144,128]{1,0:T(1,128)}', space=vmem, size = 0x12000, scoped, tag = 'internal scratch']
  %s0 = inlined_call_operand.vmem [shape: f32[2,8,256], index: 0, kind: input, shape index: {}]
  %s1 = inlined_call_operand.vmem [shape: f32[2,256,8], index: 1, kind: input, shape index: {}]
  %s2 = inlined_call_operand.vmem [shape: f32[2,8,256], index: 2, kind: input, shape index: {}]
  %s3 = inlined_call_operand.vmem [shape: f32[8,16], index: 3, kind: input, shape index: {}]
  %s4 = inlined_call_operand.vmem [shape: f32[1,16], index: 4, kind: input, shape index: {}]
  %s5 = inlined_call_operand.vmem [shape: f32[64,16], index: 5, kind: input, shape index: {}]
  %s6 = inlined_call_operand.vmem [shape: f32[64,1], index: 6, kind: input, shape index: {}]
  %s7 = inlined_call_operand.vmem [shape: f32[16,16], index: 7, kind: input, shape index: {}]
  %s8 = inlined_call_operand.vmem [shape: f32[16,16], index: 8, kind: input, shape index: {}]
  %s9 = inlined_call_operand.vmem [shape: f32[16,1], index: 9, kind: input, shape index: {}]
  %s10 = inlined_call_operand.vmem [shape: f32[24,216], index: 10, kind: input, shape index: {}]
  %s11 = inlined_call_operand.vmem [shape: f32[24,1], index: 11, kind: input, shape index: {}]
  %s12 = inlined_call_operand.vmem [shape: f32[216,256], index: 12, kind: input, shape index: {}]
  %s13 = inlined_call_operand.hbm [shape: f32[2,8,256], index: 13, kind: output, shape index: {0}]
  %s14 = inlined_call_operand.hbm [shape: f32[2,8,256], index: 14, kind: output, shape index: {1}]
  %15 = xla_tuple %s13, %s14
  %s16 = sld [smem:[#allocation0]]
  $region93: #{_saattnmem_forward.1} parent=0
    _
  %s18 = ssub.s32 1, %s16
  %s19 = scalar_select 0, %s18, %s16
  $region1: #{_saattnmem_forward.1} parent=0
    #allocation2 [shape = 'u8[16384]{0}', space=vmem, size = 0x4000, scoped, tag = 'output window, operand 0']
    #allocation3 [shape = 's32[2]{0}', space=sflag, size = 0x8, scoped, tag = 'scoped memory for _saattnmem_forward.1']
    #allocation4 [shape = 'u8[16384]{0}', space=vmem, size = 0x4000, scoped, tag = 'output window, operand 1']
    #allocation5 [shape = 's32[2]{0}', space=sflag, size = 0x8, scoped, tag = 'scoped memory for _saattnmem_forward.1']
    %20 = vsyncpa [#allocation3], 0
    %s21 = scalar_lea.sflag [#allocation3], 1
    %22 = vsyncpa %s21, 0
    %23 = vsyncpa [#allocation5], 0
    %s24 = scalar_lea.sflag [#allocation5], 1
    %25 = vsyncpa %s24, 0
    loop: start=0, step=1, limit=4
    $region2: #{_saattnmem_forward.1} parent=1 // loop_pre_header
      _
    $region3: #{_saattnmem_forward.1} parent=1 // loop_header
      %s27 = sphi 0, %s31
      %p28 = scmp.ge.s32.totalorder %s27, 4
      %s37 = sphi 0, %s39
      %s40 = sphi 0, %s37
      %s41 = sphi 0, %s40
      %s57 = sphi 0, %s41
      %s63 = sphi 0, %s65
      %s66 = sphi 0, %s63
      %s67 = sphi 0, %s66
      %s83 = sphi 0, %s67
      %s89 = sphi 0, %s91
      %s92 = sphi 0, %s89
      %s93 = sphi 0, %s92
      %s109 = sphi 0, %s93
      %s113 = sphi 0, %s113
      %s115 = sphi 0, %s113
      %s116 = sphi 0, %s115
      %s130 = sphi 0, %s116
      %s134 = sphi 0, %s134
      %s136 = sphi 0, %s134
      %s137 = sphi 0, %s136
      %s151 = sphi 0, %s137
      %s155 = sphi 0, %s155
      %s157 = sphi 0, %s155
      %s158 = sphi 0, %s157
      %s172 = sphi 0, %s158
      %s176 = sphi 0, %s176
      %s178 = sphi 0, %s176
      %s179 = sphi 0, %s178
      %s193 = sphi 0, %s179
      %s197 = sphi 0, %s197
      %s199 = sphi 0, %s197
      %s200 = sphi 0, %s199
      %s214 = sphi 0, %s200
      %s218 = sphi 0, %s218
      %s220 = sphi 0, %s218
      %s221 = sphi 0, %s220
      %s235 = sphi 0, %s221
      %s239 = sphi 0, %s239
      %s241 = sphi 0, %s239
      %s242 = sphi 0, %s241
      %s256 = sphi 0, %s242
      %s260 = sphi 0, %s260
      %s262 = sphi 0, %s260
      %s263 = sphi 0, %s262
      %s277 = sphi 0, %s263
      %s281 = sphi 0, %s281
      %s283 = sphi 0, %s281
      %s284 = sphi 0, %s283
      %s298 = sphi 0, %s284
      %s302 = sphi 0, %s302
      %s304 = sphi 0, %s302
      %s305 = sphi 0, %s304
      %s319 = sphi 0, %s305
      %s325 = sphi 0, %s327
      %s328 = sphi 0, %s325
      %s329 = sphi 0, %s328
      %s345 = sphi 0, %s329
      %s351 = sphi 0, %s353
      %s354 = sphi 0, %s351
      %s355 = sphi 0, %s354
      %s371 = sphi 0, %s355
    $region4: #{_saattnmem_forward.1} parent=1 // loop_header_branch
      %30 = sbr.rel (%p28) target = $region8
    $region5: #{_saattnmem_forward.1} parent=1 // loop_body
      %s32 = ssub.s32 %s27, 1
      %s33 = ssub.s32 %s27, 2
      %s34 = sadd.s32 %s27, 1
      %s35 = ssub.s32 %s27, %s34
      %p36 = scmp.eq.s32.totalorder %s35, 0
      %s38 = sadd.s32 %s37, 1
      %s39 = scalar_select %p36, %s37, %s38
      %p42 = pneg %p36
      %p43 = scmp.eq.s32.totalorder %s27, 1
      %p44 = por %p42, %p43
      %p45 = scmp.ne.s32.totalorder %s37, %s40
      %p46 = scmp.eq.s32.totalorder %s27, 0
      %p47 = por %p45, %p46
      %p48 = scmp.ne.s32.totalorder %s37, %s40
      %p49 = scmp.eq.s32.totalorder %s32, 1
      %p50 = por %p48, %p49
      %p51 = scmp.ne.s32.totalorder %s40, %s41
      %p52 = scmp.eq.s32.totalorder %s32, 0
      %p53 = por %p51, %p52
      %p54 = scmp.ne.s32.totalorder %s40, %s41
      %p55 = scmp.eq.s32.totalorder %s33, 1
      %p56 = por %p54, %p55
      %p58 = scmp.ne.s32.totalorder %s41, %s57
      %p59 = scmp.eq.s32.totalorder %s33, 0
      %p60 = por %p58, %p59
      %s61 = ssub.s32 %s27, %s34
      %p62 = scmp.eq.s32.totalorder %s61, 0
      %s64 = sadd.s32 %s63, 1
      %s65 = scalar_select %p62, %s63, %s64
      %p68 = pneg %p62
      %p69 = scmp.eq.s32.totalorder %s27, 1
      %p70 = por %p68, %p69
      %p71 = scmp.ne.s32.totalorder %s63, %s66
      %p72 = scmp.eq.s32.totalorder %s27, 0
      %p73 = por %p71, %p72
      %p74 = scmp.ne.s32.totalorder %s63, %s66
      %p75 = scmp.eq.s32.totalorder %s32, 1
      %p76 = por %p74, %p75
      %p77 = scmp.ne.s32.totalorder %s66, %s67
      %p78 = scmp.eq.s32.totalorder %s32, 0
      %p79 = por %p77, %p78
      %p80 = scmp.ne.s32.totalorder %s66, %s67
      %p81 = scmp.eq.s32.totalorder %s33, 1
      %p82 = por %p80, %p81
      %p84 = scmp.ne.s32.totalorder %s67, %s83
      %p85 = scmp.eq.s32.totalorder %s33, 0
      %p86 = por %p84, %p85
      %s87 = ssub.s32 %s27, %s34
      %p88 = scmp.eq.s32.totalorder %s87, 0
      %s90 = sadd.s32 %s89, 1
      %s91 = scalar_select %p88, %s89, %s90
      %p94 = pneg %p88
      %p95 = scmp.eq.s32.totalorder %s27, 1
      %p96 = por %p94, %p95
      %p97 = scmp.ne.s32.totalorder %s89, %s92
      %p98 = scmp.eq.s32.totalorder %s27, 0
      %p99 = por %p97, %p98
      %p100 = scmp.ne.s32.totalorder %s89, %s92
      %p101 = scmp.eq.s32.totalorder %s32, 1
      %p102 = por %p100, %p101
      %p103 = scmp.ne.s32.totalorder %s92, %s93
      %p104 = scmp.eq.s32.totalorder %s32, 0
      %p105 = por %p103, %p104
      %p106 = scmp.ne.s32.totalorder %s92, %s93
      %p107 = scmp.eq.s32.totalorder %s33, 1
      %p108 = por %p106, %p107
      %p110 = scmp.ne.s32.totalorder %s93, %s109
      %p111 = scmp.eq.s32.totalorder %s33, 0
      %p112 = por %p110, %p111
      %s114 = sadd.s32 %s113, 1
      %p117 = scmp.eq.s32.totalorder %s27, 1
      %p118 = scmp.ne.s32.totalorder %s113, %s115
      %p119 = scmp.eq.s32.totalorder %s27, 0
      %p120 = por %p118, %p119
      %p121 = scmp.ne.s32.totalorder %s113, %s115
      %p122 = scmp.eq.s32.totalorder %s32, 1
      %p123 = por %p121, %p122
      %p124 = scmp.ne.s32.totalorder %s115, %s116
      %p125 = scmp.eq.s32.totalorder %s32, 0
      %p126 = por %p124, %p125
      %p127 = scmp.ne.s32.totalorder %s115, %s116
      %p128 = scmp.eq.s32.totalorder %s33, 1
      %p129 = por %p127, %p128
      %p131 = scmp.ne.s32.totalorder %s116, %s130
      %p132 = scmp.eq.s32.totalorder %s33, 0
      %p133 = por %p131, %p132
      %s135 = sadd.s32 %s134, 1
      %p138 = scmp.eq.s32.totalorder %s27, 1
      %p139 = scmp.ne.s32.totalorder %s134, %s136
      %p140 = scmp.eq.s32.totalorder %s27, 0
      %p141 = por %p139, %p140
      %p142 = scmp.ne.s32.totalorder %s134, %s136
      %p143 = scmp.eq.s32.totalorder %s32, 1
      %p144 = por %p142, %p143
      %p145 = scmp.ne.s32.totalorder %s136, %s137
      %p146 = scmp.eq.s32.totalorder %s32, 0
      %p147 = por %p145, %p146
      %p148 = scmp.ne.s32.totalorder %s136, %s137
      %p149 = scmp.eq.s32.totalorder %s33, 1
      %p150 = por %p148, %p149
      %p152 = scmp.ne.s32.totalorder %s137, %s151
      %p153 = scmp.eq.s32.totalorder %s33, 0
      %p154 = por %p152, %p153
      %s156 = sadd.s32 %s155, 1
      %p159 = scmp.eq.s32.totalorder %s27, 1
      %p160 = scmp.ne.s32.totalorder %s155, %s157
      %p161 = scmp.eq.s32.totalorder %s27, 0
      %p162 = por %p160, %p161
      %p163 = scmp.ne.s32.totalorder %s155, %s157
      %p164 = scmp.eq.s32.totalorder %s32, 1
      %p165 = por %p163, %p164
      %p166 = scmp.ne.s32.totalorder %s157, %s158
      %p167 = scmp.eq.s32.totalorder %s32, 0
      %p168 = por %p166, %p167
      %p169 = scmp.ne.s32.totalorder %s157, %s158
      %p170 = scmp.eq.s32.totalorder %s33, 1
      %p171 = por %p169, %p170
      %p173 = scmp.ne.s32.totalorder %s158, %s172
      %p174 = scmp.eq.s32.totalorder %s33, 0
      %p175 = por %p173, %p174
      %s177 = sadd.s32 %s176, 1
      %p180 = scmp.eq.s32.totalorder %s27, 1
      %p181 = scmp.ne.s32.totalorder %s176, %s178
      %p182 = scmp.eq.s32.totalorder %s27, 0
      %p183 = por %p181, %p182
      %p184 = scmp.ne.s32.totalorder %s176, %s178
      %p185 = scmp.eq.s32.totalorder %s32, 1
      %p186 = por %p184, %p185
      %p187 = scmp.ne.s32.totalorder %s178, %s179
      %p188 = scmp.eq.s32.totalorder %s32, 0
      %p189 = por %p187, %p188
      %p190 = scmp.ne.s32.totalorder %s178, %s179
      %p191 = scmp.eq.s32.totalorder %s33, 1
      %p192 = por %p190, %p191
      %p194 = scmp.ne.s32.totalorder %s179, %s193
      %p195 = scmp.eq.s32.totalorder %s33, 0
      %p196 = por %p194, %p195
      %s198 = sadd.s32 %s197, 1
      %p201 = scmp.eq.s32.totalorder %s27, 1
      %p202 = scmp.ne.s32.totalorder %s197, %s199
      %p203 = scmp.eq.s32.totalorder %s27, 0
      %p204 = por %p202, %p203
      %p205 = scmp.ne.s32.totalorder %s197, %s199
      %p206 = scmp.eq.s32.totalorder %s32, 1
      %p207 = por %p205, %p206
      %p208 = scmp.ne.s32.totalorder %s199, %s200
      %p209 = scmp.eq.s32.totalorder %s32, 0
      %p210 = por %p208, %p209
      %p211 = scmp.ne.s32.totalorder %s199, %s200
      %p212 = scmp.eq.s32.totalorder %s33, 1
      %p213 = por %p211, %p212
      %p215 = scmp.ne.s32.totalorder %s200, %s214
      %p216 = scmp.eq.s32.totalorder %s33, 0
      %p217 = por %p215, %p216
      %s219 = sadd.s32 %s218, 1
      %p222 = scmp.eq.s32.totalorder %s27, 1
      %p223 = scmp.ne.s32.totalorder %s218, %s220
      %p224 = scmp.eq.s32.totalorder %s27, 0
      %p225 = por %p223, %p224
      %p226 = scmp.ne.s32.totalorder %s218, %s220
      %p227 = scmp.eq.s32.totalorder %s32, 1
      %p228 = por %p226, %p227
      %p229 = scmp.ne.s32.totalorder %s220, %s221
      %p230 = scmp.eq.s32.totalorder %s32, 0
      %p231 = por %p229, %p230
      %p232 = scmp.ne.s32.totalorder %s220, %s221
      %p233 = scmp.eq.s32.totalorder %s33, 1
      %p234 = por %p232, %p233
      %p236 = scmp.ne.s32.totalorder %s221, %s235
      %p237 = scmp.eq.s32.totalorder %s33, 0
      %p238 = por %p236, %p237
      %s240 = sadd.s32 %s239, 1
      %p243 = scmp.eq.s32.totalorder %s27, 1
      %p244 = scmp.ne.s32.totalorder %s239, %s241
      %p245 = scmp.eq.s32.totalorder %s27, 0
      %p246 = por %p244, %p245
      %p247 = scmp.ne.s32.totalorder %s239, %s241
      %p248 = scmp.eq.s32.totalorder %s32, 1
      %p249 = por %p247, %p248
      %p250 = scmp.ne.s32.totalorder %s241, %s242
      %p251 = scmp.eq.s32.totalorder %s32, 0
      %p252 = por %p250, %p251
      %p253 = scmp.ne.s32.totalorder %s241, %s242
      %p254 = scmp.eq.s32.totalorder %s33, 1
      %p255 = por %p253, %p254
      %p257 = scmp.ne.s32.totalorder %s242, %s256
      %p258 = scmp.eq.s32.totalorder %s33, 0
      %p259 = por %p257, %p258
      %s261 = sadd.s32 %s260, 1
      %p264 = scmp.eq.s32.totalorder %s27, 1
      %p265 = scmp.ne.s32.totalorder %s260, %s262
      %p266 = scmp.eq.s32.totalorder %s27, 0
      %p267 = por %p265, %p266
      %p268 = scmp.ne.s32.totalorder %s260, %s262
      %p269 = scmp.eq.s32.totalorder %s32, 1
      %p270 = por %p268, %p269
      %p271 = scmp.ne.s32.totalorder %s262, %s263
      %p272 = scmp.eq.s32.totalorder %s32, 0
      %p273 = por %p271, %p272
      %p274 = scmp.ne.s32.totalorder %s262, %s263
      %p275 = scmp.eq.s32.totalorder %s33, 1
      %p276 = por %p274, %p275
      %p278 = scmp.ne.s32.totalorder %s263, %s277
      %p279 = scmp.eq.s32.totalorder %s33, 0
      %p280 = por %p278, %p279
      %s282 = sadd.s32 %s281, 1
      %p285 = scmp.eq.s32.totalorder %s27, 1
      %p286 = scmp.ne.s32.totalorder %s281, %s283
      %p287 = scmp.eq.s32.totalorder %s27, 0
      %p288 = por %p286, %p287
      %p289 = scmp.ne.s32.totalorder %s281, %s283
      %p290 = scmp.eq.s32.totalorder %s32, 1
      %p291 = por %p289, %p290
      %p292 = scmp.ne.s32.totalorder %s283, %s284
      %p293 = scmp.eq.s32.totalorder %s32, 0
      %p294 = por %p292, %p293
      %p295 = scmp.ne.s32.totalorder %s283, %s284
      %p296 = scmp.eq.s32.totalorder %s33, 1
      %p297 = por %p295, %p296
      %p299 = scmp.ne.s32.totalorder %s284, %s298
      %p300 = scmp.eq.s32.totalorder %s33, 0
      %p301 = por %p299, %p300
      %s303 = sadd.s32 %s302, 1
      %p306 = scmp.eq.s32.totalorder %s27, 1
      %p307 = scmp.ne.s32.totalorder %s302, %s304
      %p308 = scmp.eq.s32.totalorder %s27, 0
      %p309 = por %p307, %p308
      %p310 = scmp.ne.s32.totalorder %s302, %s304
      %p311 = scmp.eq.s32.totalorder %s32, 1
      %p312 = por %p310, %p311
      %p313 = scmp.ne.s32.totalorder %s304, %s305
      %p314 = scmp.eq.s32.totalorder %s32, 0
      %p315 = por %p313, %p314
      %p316 = scmp.ne.s32.totalorder %s304, %s305
      %p317 = scmp.eq.s32.totalorder %s33, 1
      %p318 = por %p316, %p317
      %p320 = scmp.ne.s32.totalorder %s305, %s319
      %p321 = scmp.eq.s32.totalorder %s33, 0
      %p322 = por %p320, %p321
      %s323 = ssub.s32 %s27, %s34
      %p324 = scmp.eq.s32.totalorder %s323, 0
      %s326 = sadd.s32 %s325, 1
      %s327 = scalar_select %p324, %s325, %s326
      %p330 = pneg %p324
      %p331 = scmp.eq.s32.totalorder %s27, 1
      %p332 = por %p330, %p331
      %p333 = scmp.ne.s32.totalorder %s325, %s328
      %p334 = scmp.eq.s32.totalorder %s27, 0
      %p335 = por %p333, %p334
      %p336 = scmp.ne.s32.totalorder %s325, %s328
      %p337 = scmp.eq.s32.totalorder %s32, 1
      %p338 = por %p336, %p337
      %p339 = scmp.ne.s32.totalorder %s328, %s329
      %p340 = scmp.eq.s32.totalorder %s32, 0
      %p341 = por %p339, %p340
      %p342 = scmp.ne.s32.totalorder %s328, %s329
      %p343 = scmp.eq.s32.totalorder %s33, 1
      %p344 = por %p342, %p343
      %p346 = scmp.ne.s32.totalorder %s329, %s345
      %p347 = scmp.eq.s32.totalorder %s33, 0
      %p348 = por %p346, %p347
      %s349 = ssub.s32 %s27, %s34
      %p350 = scmp.eq.s32.totalorder %s349, 0
      %s352 = sadd.s32 %s351, 1
      %s353 = scalar_select %p350, %s351, %s352
      %p356 = pneg %p350
      %p357 = scmp.eq.s32.totalorder %s27, 1
      %p358 = por %p356, %p357
      %p359 = scmp.ne.s32.totalorder %s351, %s354
      %p360 = scmp.eq.s32.totalorder %s27, 0
      %p361 = por %p359, %p360
      %p362 = scmp.ne.s32.totalorder %s351, %s354
      %p363 = scmp.eq.s32.totalorder %s32, 1
      %p364 = por %p362, %p363
      %p365 = scmp.ne.s32.totalorder %s354, %s355
      %p366 = scmp.eq.s32.totalorder %s32, 0
      %p367 = por %p365, %p366
      %p368 = scmp.ne.s32.totalorder %s354, %s355
      %p369 = scmp.eq.s32.totalorder %s33, 1
      %p370 = por %p368, %p369
      %p372 = scmp.ne.s32.totalorder %s355, %s371
      %p373 = scmp.eq.s32.totalorder %s33, 0
      %p374 = por %p372, %p373
      %p375 = scmp.le.s32.totalorder 1, %s27
      %p376 = scmp.lt.s32.totalorder %s27, 3
      %p377 = pnand %p375, %p376
      %p378 = pneg %p377
      // Predicated region
      $region9: #{_saattnmem_forward.1} parent=5 // pred_check
        _
      $region10: #{_saattnmem_forward.1} parent=5 // pred_check_branch
        %380 = sbr.rel (%p377) target = $region12
      $region11: #{_saattnmem_forward.1} parent=5 // pred_region
        %s381 = ssub.s32 %s27, 1
        // Predicated region
        $region13: #{_saattnmem_forward.1} parent=11 // pred_check
          %p382 = pneg %p126
        $region14: #{_saattnmem_forward.1} parent=11 // pred_check_branch
          %384 = sbr.rel (%p382) target = $region16
        $region15: #{_saattnmem_forward.1} parent=11 // pred_region
          _
        $region16: #{_saattnmem_forward.1} parent=11 // pred_fallthru
          _
        // Predicated region
        $region17: #{_saattnmem_forward.1} parent=11 // pred_check
          %p385 = pneg %p147
        $region18: #{_saattnmem_forward.1} parent=11 // pred_check_branch
          %387 = sbr.rel (%p385) target = $region20
        $region19: #{_saattnmem_forward.1} parent=11 // pred_region
          _
        $region20: #{_saattnmem_forward.1} parent=11 // pred_fallthru
          _
        // Predicated region
        $region21: #{_saattnmem_forward.1} parent=11 // pred_check
          %p388 = pneg %p168
        $region22: #{_saattnmem_forward.1} parent=11 // pred_check_branch
          %390 = sbr.rel (%p388) target = $region24
        $region23: #{_saattnmem_forward.1} parent=11 // pred_region
          _
        $region24: #{_saattnmem_forward.1} parent=11 // pred_fallthru
          _
        // Predicated region
        $region25: #{_saattnmem_forward.1} parent=11 // pred_check
          %p391 = pneg %p189
        $region26: #{_saattnmem_forward.1} parent=11 // pred_check_branch
          %393 = sbr.rel (%p391) target = $region28
        $region27: #{_saattnmem_forward.1} parent=11 // pred_region
          _
        $region28: #{_saattnmem_forward.1} parent=11 // pred_fallthru
          _
        // Predicated region
        $region29: #{_saattnmem_forward.1} parent=11 // pred_check
          %p394 = pneg %p210
        $region30: #{_saattnmem_forward.1} parent=11 // pred_check_branch
          %396 = sbr.rel (%p394) target = $region32
        $region31: #{_saattnmem_forward.1} parent=11 // pred_region
          _
        $region32: #{_saattnmem_forward.1} parent=11 // pred_fallthru
          _
        // Predicated region
        $region33: #{_saattnmem_forward.1} parent=11 // pred_check
          %p397 = pneg %p231
        $region34: #{_saattnmem_forward.1} parent=11 // pred_check_branch
          %399 = sbr.rel (%p397) target = $region36
        $region35: #{_saattnmem_forward.1} parent=11 // pred_region
          _
        $region36: #{_saattnmem_forward.1} parent=11 // pred_fallthru
          _
        // Predicated region
        $region37: #{_saattnmem_forward.1} parent=11 // pred_check
          %p400 = pneg %p252
        $region38: #{_saattnmem_forward.1} parent=11 // pred_check_branch
          %402 = sbr.rel (%p400) target = $region40
        $region39: #{_saattnmem_forward.1} parent=11 // pred_region
          _
        $region40: #{_saattnmem_forward.1} parent=11 // pred_fallthru
          _
        // Predicated region
        $region41: #{_saattnmem_forward.1} parent=11 // pred_check
          %p403 = pneg %p273
        $region42: #{_saattnmem_forward.1} parent=11 // pred_check_branch
          %405 = sbr.rel (%p403) target = $region44
        $region43: #{_saattnmem_forward.1} parent=11 // pred_region
          _
        $region44: #{_saattnmem_forward.1} parent=11 // pred_fallthru
          _
        // Predicated region
        $region45: #{_saattnmem_forward.1} parent=11 // pred_check
          %p406 = pneg %p294
        $region46: #{_saattnmem_forward.1} parent=11 // pred_check_branch
          %408 = sbr.rel (%p406) target = $region48
        $region47: #{_saattnmem_forward.1} parent=11 // pred_region
          _
        $region48: #{_saattnmem_forward.1} parent=11 // pred_fallthru
          _
        // Predicated region
        $region49: #{_saattnmem_forward.1} parent=11 // pred_check
          %p409 = pneg %p315
        $region50: #{_saattnmem_forward.1} parent=11 // pred_check_branch
          %411 = sbr.rel (%p409) target = $region52
        $region51: #{_saattnmem_forward.1} parent=11 // pred_region
          _
        $region52: #{_saattnmem_forward.1} parent=11 // pred_fallthru
          _
      $region12: #{_saattnmem_forward.1} parent=5 // pred_fallthru
        _
      %p412 = scmp.lt.s32.totalorder %s27, 2
      // Predicated region
      $region53: #{_saattnmem_forward.1} parent=5 // pred_check
        %p413 = pneg %p412
      $region54: #{_saattnmem_forward.1} parent=5 // pred_check_branch
        %415 = sbr.rel (%p413) target = $region56
      $region55: #{_saattnmem_forward.1} parent=5 // pred_region
        // Predicated region
        $region57: #{_saattnmem_forward.1} parent=55 // pred_check
          %p416 = pneg %p47
        $region58: #{_saattnmem_forward.1} parent=55 // pred_check_branch
          %418 = sbr.rel (%p416) target = $region60
        $region59: #{_saattnmem_forward.1} parent=55 // pred_region
          %p419 = scmp.lt.s32.totalorder %s27, 1
          %s420 = scalar_select %p419, %s27, 1
          %s421 = smul.addr %s420, 2
          %s422 = smul.addr %s421, 8
          %s423 = scalar_lea.vmem %s0, %s422
        $region60: #{_saattnmem_forward.1} parent=55 // pred_fallthru
          _
        // Predicated region
        $region61: #{_saattnmem_forward.1} parent=55 // pred_check
          %p424 = pneg %p73
        $region62: #{_saattnmem_forward.1} parent=55 // pred_check_branch
          %426 = sbr.rel (%p424) target = $region64
        $region63: #{_saattnmem_forward.1} parent=55 // pred_region
          %p427 = scmp.lt.s32.totalorder %s27, 1
          %s428 = scalar_select %p427, %s27, 1
          %s429 = smul.addr %s428, 32
          %s430 = smul.addr %s429, 8
          %s431 = scalar_lea.vmem %s1, %s430
        $region64: #{_saattnmem_forward.1} parent=55 // pred_fallthru
          _
        // Predicated region
        $region65: #{_saattnmem_forward.1} parent=55 // pred_check
          %p432 = pneg %p99
        $region66: #{_saattnmem_forward.1} parent=55 // pred_check_branch
          %434 = sbr.rel (%p432) target = $region68
        $region67: #{_saattnmem_forward.1} parent=55 // pred_region
          %p435 = scmp.lt.s32.totalorder %s27, 1
          %s436 = scalar_select %p435, %s27, 1
          %s437 = smul.addr %s436, 2
          %s438 = smul.addr %s437, 8
          %s439 = scalar_lea.vmem %s2, %s438
        $region68: #{_saattnmem_forward.1} parent=55 // pred_fallthru
          _
      $region56: #{_saattnmem_forward.1} parent=5 // pred_fallthru
        _
      %p440 = scmp.le.s32.totalorder 1, %s27
      %p441 = scmp.lt.s32.totalorder %s27, 3
      %p442 = pnand %p440, %p441
      %p443 = pneg %p442
      // Predicated region
      $region69: #{_saattnmem_forward.1} parent=5 // pred_check
        _
      $region70: #{_saattnmem_forward.1} parent=5 // pred_check_branch
        %445 = sbr.rel (%p442) target = $region72
      $region71: #{_saattnmem_forward.1} parent=5 // pred_region
        %s446 = ssub.s32 %s27, 1
        %p447 = scmp.lt.s32.totalorder %s32, 1
        %s448 = scalar_select %p447, %s32, 1
        %s449 = smul.addr %s448, 2
        %s450 = smul.addr %s449, 8
        %s451 = scalar_lea.vmem %s0, %s450
        %p452 = pneg %p53
        %p453 = pneg %p50
        %p454 = scmp.lt.s32.totalorder %s32, 1
        %s455 = scalar_select %p454, %s32, 1
        %s456 = smul.addr %s455, 32
        %s457 = smul.addr %s456, 8
        %s458 = scalar_lea.vmem %s1, %s457
        %p459 = pneg %p79
        %p460 = pneg %p76
        %p461 = scmp.lt.s32.totalorder %s32, 1
        %s462 = scalar_select %p461, %s32, 1
        %s463 = smul.addr %s462, 2
        %s464 = smul.addr %s463, 8
        %s465 = scalar_lea.vmem %s2, %s464
        %p466 = pneg %p105
        %p467 = pneg %p102
        %p468 = pneg %p126
        %p469 = pneg %p123
        %p470 = pneg %p147
        %p471 = pneg %p144
        %p472 = pneg %p168
        %p473 = pneg %p165
        %p474 = pneg %p189
        %p475 = pneg %p186
        %p476 = pneg %p210
        %p477 = pneg %p207
        %p478 = pneg %p231
        %p479 = pneg %p228
        %p480 = pneg %p252
        %p481 = pneg %p249
        %p482 = pneg %p273
        %p483 = pneg %p270
        %p484 = pneg %p294
        %p485 = pneg %p291
        %p486 = pneg %p315
        %p487 = pneg %p312
        %p488 = pneg %p341
        %p489 = pneg %p338
        %s490 = sand.u32 %s328, 1
        %s491 = scalar_lea.sflag [#allocation3], %s490
        %s492 = sand.u32 %s328, 1
        %s493 = smul.addr %s492, 16
        %s494 = scalar_lea.vmem [#allocation2], %s493
        %p495 = pneg %p367
        %p496 = pneg %p364
        %s497 = sand.u32 %s354, 1
        %s498 = scalar_lea.sflag [#allocation5], %s497
        %s499 = sand.u32 %s354, 1
        %s500 = smul.addr %s499, 16
        %s501 = scalar_lea.vmem [#allocation4], %s500
        %p502 = scmp.lt.s32.totalorder %s32, 1
        %s503 = scalar_select %p502, %s32, 1
        %s504 = smul.addr %s503, 2
        %s505 = smul.addr %s504, 8
        %s506 = scalar_lea.vmem %s0, %s505
        %p507 = scmp.lt.s32.totalorder %s32, 1
        %s508 = scalar_select %p507, %s32, 1
        %s509 = smul.addr %s508, 32
        %s510 = smul.addr %s509, 8
        %s511 = scalar_lea.vmem %s1, %s510
        %p512 = scmp.lt.s32.totalorder %s32, 1
        %s513 = scalar_select %p512, %s32, 1
        %s514 = smul.addr %s513, 2
        %s515 = smul.addr %s514, 8
        %s516 = scalar_lea.vmem %s2, %s515
        %v517 = vld [vmem:[%s506] sm:$0xff]
        %v518 = vld [vmem:[%s506 + $0x8] sm:$0xff]
        %v519 = vld [vmem:[%s511] sm:$0xff]
        %v520 = vld [vmem:[%s511 + $0x8] sm:$0xff]
        %v521 = vld [vmem:[%s511 + $0x10] sm:$0xff]
        %v522 = vld [vmem:[%s511 + $0x18] sm:$0xff]
        %v523 = vld [vmem:[%s511 + $0x20] sm:$0xff]
        %v524 = vld [vmem:[%s511 + $0x28] sm:$0xff]
        %v525 = vld [vmem:[%s511 + $0x30] sm:$0xff]
        %v526 = vld [vmem:[%s511 + $0x38] sm:$0xff]
        %v527 = vld [vmem:[%s511 + $0x40] sm:$0xff]
        %v528 = vld [vmem:[%s511 + $0x48] sm:$0xff]
        %v529 = vld [vmem:[%s511 + $0x50] sm:$0xff]
        %v530 = vld [vmem:[%s511 + $0x58] sm:$0xff]
        %v531 = vld [vmem:[%s511 + $0x60] sm:$0xff]
        %v532 = vld [vmem:[%s511 + $0x68] sm:$0xff]
        %v533 = vld [vmem:[%s511 + $0x70] sm:$0xff]
        %v534 = vld [vmem:[%s511 + $0x78] sm:$0xff]
        %v535 = vld [vmem:[%s511 + $0x80] sm:$0xff]
        %v536 = vld [vmem:[%s511 + $0x88] sm:$0xff]
        %v537 = vld [vmem:[%s511 + $0x90] sm:$0xff]
        %v538 = vld [vmem:[%s511 + $0x98] sm:$0xff]
        %v539 = vld [vmem:[%s511 + $0xa0] sm:$0xff]
        %v540 = vld [vmem:[%s511 + $0xa8] sm:$0xff]
        %v541 = vld [vmem:[%s511 + $0xb0] sm:$0xff]
        %v542 = vld [vmem:[%s511 + $0xb8] sm:$0xff]
        %v543 = vld [vmem:[%s511 + $0xc0] sm:$0xff]
        %v544 = vld [vmem:[%s511 + $0xc8] sm:$0xff]
        %v545 = vld [vmem:[%s511 + $0xd0] sm:$0xff]
        %v546 = vld [vmem:[%s511 + $0xd8] sm:$0xff]
        %v547 = vld [vmem:[%s511 + $0xe0] sm:$0xff]
        %v548 = vld [vmem:[%s511 + $0xe8] sm:$0xff]
        %v549 = vld [vmem:[%s511 + $0xf0] sm:$0xff]
        %v550 = vld [vmem:[%s511 + $0xf8] sm:$0xff]
        %v551 = vld [vmem:[%s516] sm:$0xff]
        %v552 = vld [vmem:[%s516 + $0x8] sm:$0xff]
        %v553 = vld [vmem:[%s3] sm:$0xff]
        %v554 = vld [vmem:[%s4] sm:$0x1]
        %v556 = vlaneseq
        %v557 = vshrl.u32 %v556, 7
        %v558 = vsub.s32 0, %v557
        %v559 = vrot.slane %v554, %v558
        %vm561 = vcmask 64512
        %v563 = vsel %vm561, %v519, 0
        %v566 = vsel %vm561, %v520, 0
        %v569 = vsel %vm561, %v521, 0
        %v572 = vsel %vm561, %v522, 0
        %v575 = vsel %vm561, %v523, 0
        %v578 = vsel %vm561, %v524, 0
        %v581 = vsel %vm561, %v525, 0
        %v584 = vsel %vm561, %v526, 0
        %v587 = vsel %vm561, %v527, 0
        %v590 = vsel %vm561, %v528, 0
        %v593 = vsel %vm561, %v529, 0
        %v596 = vsel %vm561, %v530, 0
        %v599 = vsel %vm561, %v531, 0
        %v602 = vsel %vm561, %v532, 0
        %v605 = vsel %vm561, %v533, 0
        %v608 = vsel %vm561, %v534, 0
        %v611 = vsel %vm561, %v535, 0
        %v614 = vsel %vm561, %v536, 0
        %v617 = vsel %vm561, %v537, 0
        %v620 = vsel %vm561, %v538, 0
        %v623 = vsel %vm561, %v539, 0
        %v626 = vsel %vm561, %v540, 0
        %v629 = vsel %vm561, %v541, 0
        %v632 = vsel %vm561, %v542, 0
        %v635 = vsel %vm561, %v543, 0
        %v638 = vsel %vm561, %v544, 0
        %v641 = vsel %vm561, %v545, 0
        %v644 = vsel %vm561, %v546, 0
        %v647 = vsel %vm561, %v547, 0
        %v650 = vsel %vm561, %v548, 0
        %v653 = vsel %vm561, %v549, 0
        %v656 = vsel %vm561, %v550, 0
        %658 = vmatprep.subr.mxu0 0.0
        %659 = vmatpush1.msra.mxu0 %v553
        %660 = vmatprep.subr.mxu0 0.0
        %661 = vmatpush1.msra.mxu0 0.0
        %662 = vmatprep.subr.mxu0 0.0
        %663 = vmatpush1.msra.mxu0 0.0
        %664 = vmatprep.subr.mxu0 0.0
        %665 = vmatpush1.msra.mxu0 0.0
        %666 = vmatprep.subr.mxu0 0.0
        %667 = vmatpush1.msra.mxu0 0.0
        %668 = vmatprep.subr.mxu0 0.0
        %669 = vmatpush1.msra.mxu0 0.0
        %670 = vmatprep.subr.mxu0 0.0
        %671 = vmatpush1.msra.mxu0 0.0
        %672 = vmatprep.subr.mxu0 0.0
        %673 = vmatpush1.msra.mxu0 0.0
        %674 = vmatprep.subr.mxu0 0.0
        %675 = vmatpush1.msra.mxu0 0.0
        %676 = vmatprep.subr.mxu0 0.0
        %677 = vmatpush1.msra.mxu0 0.0
        %678 = vmatprep.subr.mxu0 0.0
        %679 = vmatpush1.msra.mxu0 0.0
        %680 = vmatprep.subr.mxu0 0.0
        %681 = vmatpush1.msra.mxu0 0.0
        %682 = vmatprep.subr.mxu0 0.0
        %683 = vmatpush1.msra.mxu0 0.0
        %684 = vmatprep.subr.mxu0 0.0
        %685 = vmatpush1.msra.mxu0 0.0
        %686 = vmatprep.subr.mxu0 0.0
        %687 = vmatpush1.msra.mxu0 0.0
        %688 = vmatprep.subr.mxu0 0.0
        %689 = vmatpush1.msra.mxu0 0.0
        %690 = vmatprep.subr.mxu0 0.0
        %691 = vmatpush1.msra.mxu0 0.0
        %692 = vmatprep.subr.mxu0 0.0
        %693 = vmatpush1.msra.mxu0 0.0
        %694 = vmatprep.subr.mxu0 0.0
        %695 = vmatpush1.msra.mxu0 0.0
        %696 = vmatprep.subr.mxu0 0.0
        %697 = vmatpush1.msra.mxu0 0.0
        %698 = vmatprep.subr.mxu0 0.0
        %699 = vmatpush1.msra.mxu0 0.0
        %700 = vmatprep.subr.mxu0 0.0
        %701 = vmatpush1.msra.mxu0 0.0
        %702 = vmatprep.subr.mxu0 0.0
        %703 = vmatpush1.msra.mxu0 0.0
        %704 = vmatprep.subr.mxu0 0.0
        %705 = vmatpush1.msra.mxu0 0.0
        %706 = vmatprep.subr.mxu0 0.0
        %707 = vmatpush1.msra.mxu0 0.0
        %708 = vmatprep.subr.mxu0 0.0
        %709 = vmatpush1.msra.mxu0 0.0
        %710 = vmatprep.subr.mxu0 0.0
        %711 = vmatpush1.msra.mxu0 0.0
        %712 = vmatprep.subr.mxu0 0.0
        %713 = vmatpush1.msra.mxu0 0.0
        %714 = vmatprep.subr.mxu0 0.0
        %715 = vmatpush1.msra.mxu0 0.0
        %716 = vmatprep.subr.mxu0 0.0
        %717 = vmatpush1.msra.mxu0 0.0
        %718 = vmatprep.subr.mxu0 0.0
        %719 = vmatpush1.msra.mxu0 0.0
        %720 = vmatprep.subr.mxu0 0.0
        %721 = vmatpush1.msra.mxu0 0.0
        %722 = vmatprep.mubr.f32.mxu0 0.0
        %723 = vmatmul.mubr.f32.gmra.mrb[0].mxu0 %v563
        %v724 = vpop.f32.mrb[0].mxu0
        %v725 = vadd.f32 %v559, %v724
        %v726 = vpop.f32.mrb[0].mxu0
        %727 = vmatprep.mubr.f32.mxu0 0.0
        %728 = vmatmul.mubr.f32.gmra.mrb[0].mxu0 %v566
        %v729 = vpop.f32.mrb[0].mxu0
        %v730 = vadd.f32 %v559, %v729
        %v731 = vpop.f32.mrb[0].mxu0
        %732 = vmatprep.mubr.f32.mxu0 0.0
        %733 = vmatmul.mubr.f32.gmra.mrb[0].mxu0 %v569
        %v734 = vpop.f32.mrb[0].mxu0
        %v735 = vadd.f32 %v559, %v734
        %v736 = vpop.f32.mrb[0].mxu0
        %737 = vmatprep.mubr.f32.mxu0 0.0
        %738 = vmatmul.mubr.f32.gmra.mrb[0].mxu0 %v572
        %v739 = vpop.f32.mrb[0].mxu0
        %v740 = vadd.f32 %v559, %v739
        %v741 = vpop.f32.mrb[0].mxu0
        %742 = vmatprep.mubr.f32.mxu0 0.0
        %743 = vmatmul.mubr.f32.gmra.mrb[0].mxu0 %v575
        %v744 = vpop.f32.mrb[0].mxu0
        %v745 = vadd.f32 %v559, %v744
        %v746 = vpop.f32.mrb[0].mxu0
        %747 = vmatprep.mubr.f32.mxu0 0.0
        %748 = vmatmul.mubr.f32.gmra.mrb[0].mxu0 %v578
        %v749 = vpop.f32.mrb[0].mxu0
        %v750 = vadd.f32 %v559, %v749
        %v751 = vpop.f32.mrb[0].mxu0
        %752 = vmatprep.mubr.f32.mxu0 0.0
        %753 = vmatmul.mubr.f32.gmra.mrb[0].mxu0 %v581
        %v754 = vpop.f32.mrb[0].mxu0
        %v755 = vadd.f32 %v559, %v754
        %v756 = vpop.f32.mrb[0].mxu0
        %757 = vmatprep.mubr.f32.mxu0 0.0
        %758 = vmatmul.mubr.f32.gmra.mrb[0].mxu0 %v584
        %v759 = vpop.f32.mrb[0].mxu0
        %v760 = vadd.f32 %v559, %v759
        %v761 = vpop.f32.mrb[0].mxu0
        %762 = vmatprep.mubr.f32.mxu0 0.0
        %763 = vmatmul.mubr.f32.gmra.mrb[0].mxu0 %v587
        %v764 = vpop.f32.mrb[0].mxu0
        %v765 = vadd.f32 %v559, %v764
        %v766 = vpop.f32.mrb[0].mxu0
        %767 = vmatprep.mubr.f32.mxu0 0.0
        %768 = vmatmul.mubr.f32.gmra.mrb[0].mxu0 %v590
        %v769 = vpop.f32.mrb[0].mxu0
        %v770 = vadd.f32 %v559, %v769
        %v771 = vpop.f32.mrb[0].mxu0
        %772 = vmatprep.mubr.f32.mxu0 0.0
        %773 = vmatmul.mubr.f32.gmra.mrb[0].mxu0 %v593
        %v774 = vpop.f32.mrb[0].mxu0
        %v775 = vadd.f32 %v559, %v774
        %v776 = vpop.f32.mrb[0].mxu0
        %777 = vmatprep.mubr.f32.mxu0 0.0
        %778 = vmatmul.mubr.f32.gmra.mrb[0].mxu0 %v596
        %v779 = vpop.f32.mrb[0].mxu0
        %v780 = vadd.f32 %v559, %v779
        %v781 = vpop.f32.mrb[0].mxu0
        %782 = vmatprep.mubr.f32.mxu0 0.0
        %783 = vmatmul.mubr.f32.gmra.mrb[0].mxu0 %v599
        %v784 = vpop.f32.mrb[0].mxu0
        %v785 = vadd.f32 %v559, %v784
        %v786 = vpop.f32.mrb[0].mxu0
        %787 = vmatprep.mubr.f32.mxu0 0.0
        %788 = vmatmul.mubr.f32.gmra.mrb[0].mxu0 %v602
        %v789 = vpop.f32.mrb[0].mxu0
        %v790 = vadd.f32 %v559, %v789
        %v791 = vpop.f32.mrb[0].mxu0
        %792 = vmatprep.mubr.f32.mxu0 0.0
        %793 = vmatmul.mubr.f32.gmra.mrb[0].mxu0 %v605
        %v794 = vpop.f32.mrb[0].mxu0
        %v795 = vadd.f32 %v559, %v794
        %v796 = vpop.f32.mrb[0].mxu0
        %797 = vmatprep.mubr.f32.mxu0 0.0
        %798 = vmatmul.mubr.f32.gmra.mrb[0].mxu0 %v608
        %v799 = vpop.f32.mrb[0].mxu0
        %v800 = vadd.f32 %v559, %v799
        %v801 = vpop.f32.mrb[0].mxu0
        %802 = vmatprep.mubr.f32.mxu0 0.0
        %803 = vmatmul.mubr.f32.gmra.mrb[0].mxu0 %v611
        %v804 = vpop.f32.mrb[0].mxu0
        %v805 = vadd.f32 %v559, %v804
        %v806 = vpop.f32.mrb[0].mxu0
        %807 = vmatprep.mubr.f32.mxu0 0.0
        %808 = vmatmul.mubr.f32.gmra.mrb[0].mxu0 %v614
        %v809 = vpop.f32.mrb[0].mxu0
        %v810 = vadd.f32 %v559, %v809
        %v811 = vpop.f32.mrb[0].mxu0
        %812 = vmatprep.mubr.f32.mxu0 0.0
        %813 = vmatmul.mubr.f32.gmra.mrb[0].mxu0 %v617
        %v814 = vpop.f32.mrb[0].mxu0
        %v815 = vadd.f32 %v559, %v814
        %v816 = vpop.f32.mrb[0].mxu0
        %817 = vmatprep.mubr.f32.mxu0 0.0
        %818 = vmatmul.mubr.f32.gmra.mrb[0].mxu0 %v620
        %v819 = vpop.f32.mrb[0].mxu0
        %v820 = vadd.f32 %v559, %v819
        %v821 = vpop.f32.mrb[0].mxu0
        %822 = vmatprep.mubr.f32.mxu0 0.0
        %823 = vmatmul.mubr.f32.gmra.mrb[0].mxu0 %v623
        %v824 = vpop.f32.mrb[0].mxu0
        %v825 = vadd.f32 %v559, %v824
        %v826 = vpop.f32.mrb[0].mxu0
        %827 = vmatprep.mubr.f32.mxu0 0.0
        %828 = vmatmul.mubr.f32.gmra.mrb[0].mxu0 %v626
        %v829 = vpop.f32.mrb[0].mxu0
        %v830 = vadd.f32 %v559, %v829
        %v831 = vpop.f32.mrb[0].mxu0
        %832 = vmatprep.mubr.f32.mxu0 0.0
        %833 = vmatmul.mubr.f32.gmra.mrb[0].mxu0 %v629
        %v834 = vpop.f32.mrb[0].mxu0
        %v835 = vadd.f32 %v559, %v834
        %v836 = vpop.f32.mrb[0].mxu0
        %837 = vmatprep.mubr.f32.mxu0 0.0
        %838 = vmatmul.mubr.f32.gmra.mrb[0].mxu0 %v632
        %v839 = vpop.f32.mrb[0].mxu0
        %v840 = vadd.f32 %v559, %v839
        %v841 = vpop.f32.mrb[0].mxu0
        %842 = vmatprep.mubr.f32.mxu0 0.0
        %843 = vmatmul.mubr.f32.gmra.mrb[0].mxu0 %v635
        %v844 = vpop.f32.mrb[0].mxu0
        %v845 = vadd.f32 %v559, %v844
        %v846 = vpop.f32.mrb[0].mxu0
        %847 = vmatprep.mubr.f32.mxu0 0.0
        %848 = vmatmul.mubr.f32.gmra.mrb[0].mxu0 %v638
        %v849 = vpop.f32.mrb[0].mxu0
        %v850 = vadd.f32 %v559, %v849
        %v851 = vpop.f32.mrb[0].mxu0
        %852 = vmatprep.mubr.f32.mxu0 0.0
        %853 = vmatmul.mubr.f32.gmra.mrb[0].mxu0 %v641
        %v854 = vpop.f32.mrb[0].mxu0
        %v855 = vadd.f32 %v559, %v854
        %v856 = vpop.f32.mrb[0].mxu0
        %857 = vmatprep.mubr.f32.mxu0 0.0
        %858 = vmatmul.mubr.f32.gmra.mrb[0].mxu0 %v644
        %v859 = vpop.f32.mrb[0].mxu0
        %v860 = vadd.f32 %v559, %v859
        %v861 = vpop.f32.mrb[0].mxu0
        %862 = vmatprep.mubr.f32.mxu0 0.0
        %863 = vmatmul.mubr.f32.gmra.mrb[0].mxu0 %v647
        %v864 = vpop.f32.mrb[0].mxu0
        %v865 = vadd.f32 %v559, %v864
        %v866 = vpop.f32.mrb[0].mxu0
        %867 = vmatprep.mubr.f32.mxu0 0.0
        %868 = vmatmul.mubr.f32.gmra.mrb[0].mxu0 %v650
        %v869 = vpop.f32.mrb[0].mxu0
        %v870 = vadd.f32 %v559, %v869
        %v871 = vpop.f32.mrb[0].mxu0
        %872 = vmatprep.mubr.f32.mxu0 0.0
        %873 = vmatmul.mubr.f32.gmra.mrb[0].mxu0 %v653
        %v874 = vpop.f32.mrb[0].mxu0
        %v875 = vadd.f32 %v559, %v874
        %v876 = vpop.f32.mrb[0].mxu0
        %877 = vmatprep.mubr.f32.mxu0 0.0
        %878 = vmatmul.mubr.f32.gmra.mrb[0].mxu0 %v656
        %v879 = vpop.f32.mrb[0].mxu0
        %v880 = vadd.f32 %v559, %v879
        %v881 = vpop.f32.mrb[0].mxu0
        %882 = vdwg.mxu0
        %v883 = vld [vmem:[%s5] sm:$0xff]
        %v884 = vld [vmem:[%s5 + $0x8] sm:$0xff]
        %v885 = vld [vmem:[%s5 + $0x10] sm:$0xff]
        %v886 = vld [vmem:[%s5 + $0x18] sm:$0xff]
        %v887 = vld [vmem:[%s5 + $0x20] sm:$0xff]
        %v888 = vld [vmem:[%s5 + $0x28] sm:$0xff]
        %v889 = vld [vmem:[%s5 + $0x30] sm:$0xff]
        %v890 = vld [vmem:[%s5 + $0x38] sm:$0xff]
        %v891 = vld [vmem:[%s6] sm:$0xff]
        %v892 = vld [vmem:[%s6 + $0x8] sm:$0xff]
        %v893 = vld [vmem:[%s6 + $0x10] sm:$0xff]
        %v894 = vld [vmem:[%s6 + $0x18] sm:$0xff]
        %v895 = vld [vmem:[%s6 + $0x20] sm:$0xff]
        %v896 = vld [vmem:[%s6 + $0x28] sm:$0xff]
        %v897 = vld [vmem:[%s6 + $0x30] sm:$0xff]
        %v898 = vld [vmem:[%s6 + $0x38] sm:$0xff]
        %900 = vset.pattern.permute.xlu0 0
        %901 = vperm.xlu0 %900, %v891
        %v902 = vpop.permute.xlu0 %901
        %905 = vset.pattern.permute.xlu0 0
        %906 = vperm.xlu0 %905, %v892
        %v907 = vpop.permute.xlu0 %906
        %910 = vset.pattern.permute.xlu0 0
        %911 = vperm.xlu0 %910, %v893
        %v912 = vpop.permute.xlu0 %911
        %915 = vset.pattern.permute.xlu0 0
        %916 = vperm.xlu0 %915, %v894
        %v917 = vpop.permute.xlu0 %916
        %920 = vset.pattern.permute.xlu0 0
        %921 = vperm.xlu0 %920, %v895
        %v922 = vpop.permute.xlu0 %921
        %925 = vset.pattern.permute.xlu0 0
        %926 = vperm.xlu0 %925, %v896
        %v927 = vpop.permute.xlu0 %926
        %930 = vset.pattern.permute.xlu0 0
        %931 = vperm.xlu0 %930, %v897
        %v932 = vpop.permute.xlu0 %931
        %935 = vset.pattern.permute.xlu0 0
        %936 = vperm.xlu0 %935, %v898
        %v937 = vpop.permute.xlu0 %936
        %vm939 = vcmask 130048
        %v941 = vsel %vm939, %v883, 0
        %v944 = vsel %vm939, %v884, 0
        %v947 = vsel %vm939, %v885, 0
        %v950 = vsel %vm939, %v886, 0
        %v953 = vsel %vm939, %v887, 0
        %v956 = vsel %vm939, %v888, 0
        %v959 = vsel %vm939, %v889, 0
        %v962 = vsel %vm939, %v890, 0
        %964 = vmatprep.subr.mxu0 %v518
        %965 = vmatpush1.msra.mxu0 %v517
        %966 = vmatprep.subr.mxu0 %v552
        %967 = vmatpush1.msra.mxu0 %v551
        %968 = vmatprep.subr.mxu0 0.0
        %969 = vmatpush1.msra.mxu0 0.0
        %970 = vmatprep.subr.mxu0 0.0
        %971 = vmatpush1.msra.mxu0 0.0
        %972 = vmatprep.subr.mxu0 0.0
        %973 = vmatpush1.msra.mxu0 0.0
        %974 = vmatprep.subr.mxu0 0.0
        %975 = vmatpush1.msra.mxu0 0.0
        %976 = vmatprep.subr.mxu0 0.0
        %977 = vmatpush1.msra.mxu0 0.0
        %978 = vmatprep.subr.mxu0 0.0
        %979 = vmatpush1.msra.mxu0 0.0
        %980 = vmatprep.subr.mxu0 0.0
        %981 = vmatpush1.msra.mxu0 0.0
        %982 = vmatprep.subr.mxu0 0.0
        %983 = vmatpush1.msra.mxu0 0.0
        %984 = vmatprep.subr.mxu0 0.0
        %985 = vmatpush1.msra.mxu0 0.0
        %986 = vmatprep.subr.mxu0 0.0
        %987 = vmatpush1.msra.mxu0 0.0
        %988 = vmatprep.subr.mxu0 0.0
        %989 = vmatpush1.msra.mxu0 0.0
        %990 = vmatprep.subr.mxu0 0.0
        %991 = vmatpush1.msra.mxu0 0.0
        %992 = vmatprep.subr.mxu0 0.0
        %993 = vmatpush1.msra.mxu0 0.0
        %994 = vmatprep.subr.mxu0 0.0
        %995 = vmatpush1.msra.mxu0 0.0
        %996 = vmatprep.subr.mxu0 0.0
        %997 = vmatpush1.msra.mxu0 0.0
        %998 = vmatprep.subr.mxu0 0.0
        %999 = vmatpush1.msra.mxu0 0.0
        %1000 = vmatprep.subr.mxu0 0.0
        %1001 = vmatpush1.msra.mxu0 0.0
        %1002 = vmatprep.subr.mxu0 0.0
        %1003 = vmatpush1.msra.mxu0 0.0
        %1004 = vmatprep.subr.mxu0 0.0
        %1005 = vmatpush1.msra.mxu0 0.0
        %1006 = vmatprep.subr.mxu0 0.0
        %1007 = vmatpush1.msra.mxu0 0.0
        %1008 = vmatprep.subr.mxu0 0.0
        %1009 = vmatpush1.msra.mxu0 0.0
        %1010 = vmatprep.subr.mxu0 0.0
        %1011 = vmatpush1.msra.mxu0 0.0
        %1012 = vmatprep.subr.mxu0 0.0
        %1013 = vmatpush1.msra.mxu0 0.0
        %1014 = vmatprep.subr.mxu0 0.0
        %1015 = vmatpush1.msra.mxu0 0.0
        %1016 = vmatprep.subr.mxu0 0.0
        %1017 = vmatpush1.msra.mxu0 0.0
        %1018 = vmatprep.subr.mxu0 0.0
        %1019 = vmatpush1.msra.mxu0 0.0
        %1020 = vmatprep.subr.mxu0 0.0
        %1021 = vmatpush1.msra.mxu0 0.0
        %1022 = vmatprep.subr.mxu0 0.0
        %1023 = vmatpush1.msra.mxu0 0.0
        %1024 = vmatprep.subr.mxu0 0.0
        %1025 = vmatpush1.msra.mxu0 0.0
        %1026 = vmatprep.subr.mxu0 0.0
        %1027 = vmatpush1.msra.mxu0 0.0
        %1028 = vmatprep.mubr.f32.mxu0 0.0
        %1029 = vmatmul.mubr.f32.gmra.mrb[0].mxu0 %v941
        %v1030 = vpop.f32.mrb[0].mxu0
        %v1031 = vadd.f32 %v902, %v1030
        %v1032 = vpop.f32.mrb[0].mxu0
        %v1033 = vadd.f32 %v902, %v1032
        %1034 = vmatprep.mubr.f32.mxu0 0.0
        %1035 = vmatmul.mubr.f32.gmra.mrb[0].mxu0 %v944
        %v1036 = vpop.f32.mrb[0].mxu0
        %v1037 = vadd.f32 %v907, %v1036
        %v1038 = vpop.f32.mrb[0].mxu0
        %v1039 = vadd.f32 %v907, %v1038
        %1040 = vmatprep.mubr.f32.mxu0 0.0
        %1041 = vmatmul.mubr.f32.gmra.mrb[0].mxu0 %v947
        %v1042 = vpop.f32.mrb[0].mxu0
        %v1043 = vadd.f32 %v912, %v1042
        %v1044 = vpop.f32.mrb[0].mxu0
        %v1045 = vadd.f32 %v912, %v1044
        %1046 = vmatprep.mubr.f32.mxu0 0.0
        %1047 = vmatmul.mubr.f32.gmra.mrb[0].mxu0 %v950
        %v1048 = vpop.f32.mrb[0].mxu0
        %v1049 = vadd.f32 %v917, %v1048
        %v1050 = vpop.f32.mrb[0].mxu0
        %v1051 = vadd.f32 %v917, %v1050
        %1052 = vmatprep.mubr.f32.mxu0 0.0
        %1053 = vmatmul.mubr.f32.gmra.mrb[0].mxu0 %v953
        %v1054 = vpop.f32.mrb[0].mxu0
        %v1055 = vadd.f32 %v922, %v1054
        %v1056 = vpop.f32.mrb[0].mxu0
        %v1057 = vadd.f32 %v922, %v1056
        %1058 = vmatprep.mubr.f32.mxu0 0.0
        %1059 = vmatmul.mubr.f32.gmra.mrb[0].mxu0 %v956
        %v1060 = vpop.f32.mrb[0].mxu0
        %v1061 = vadd.f32 %v927, %v1060
        %v1062 = vpop.f32.mrb[0].mxu0
        %v1063 = vadd.f32 %v927, %v1062
        %1064 = vmatprep.mubr.f32.mxu0 0.0
        %1065 = vmatmul.mubr.f32.gmra.mrb[0].mxu0 %v959
        %v1066 = vpop.f32.mrb[0].mxu0
        %v1067 = vadd.f32 %v932, %v1066
        %v1068 = vpop.f32.mrb[0].mxu0
        %v1069 = vadd.f32 %v932, %v1068
        %1070 = vmatprep.mubr.f32.mxu0 0.0
        %1071 = vmatmul.mubr.f32.gmra.mrb[0].mxu0 %v962
        %v1072 = vpop.f32.mrb[0].mxu0
        %v1073 = vadd.f32 %v937, %v1072
        %v1074 = vpop.f32.mrb[0].mxu0
        %v1075 = vadd.f32 %v937, %v1074
        %1076 = vdwg.mxu0
        %v1078 = vsel %vm939, %v725, 0
        %v1081 = vsel %vm939, %v730, 0
        %v1084 = vsel %vm939, %v735, 0
        %v1087 = vsel %vm939, %v740, 0
        %v1090 = vsel %vm939, %v745, 0
        %v1093 = vsel %vm939, %v750, 0
        %v1096 = vsel %vm939, %v755, 0
        %v1099 = vsel %vm939, %v760, 0
        %v1102 = vsel %vm939, %v765, 0
        %v1105 = vsel %vm939, %v770, 0
        %v1108 = vsel %vm939, %v775, 0
        %v1111 = vsel %vm939, %v780, 0
        %v1114 = vsel %vm939, %v785, 0
        %v1117 = vsel %vm939, %v790, 0
        %v1120 = vsel %vm939, %v795, 0
        %v1123 = vsel %vm939, %v800, 0
        %v1126 = vsel %vm939, %v805, 0
        %v1129 = vsel %vm939, %v810, 0
        %v1132 = vsel %vm939, %v815, 0
        %v1135 = vsel %vm939, %v820, 0
        %v1138 = vsel %vm939, %v825, 0
        %v1141 = vsel %vm939, %v830, 0
        %v1144 = vsel %vm939, %v835, 0
        %v1147 = vsel %vm939, %v840, 0
        %v1150 = vsel %vm939, %v845, 0
        %v1153 = vsel %vm939, %v850, 0
        %v1156 = vsel %vm939, %v855, 0
        %v1159 = vsel %vm939, %v860, 0
        %v1162 = vsel %vm939, %v865, 0
        %v1165 = vsel %vm939, %v870, 0
        %v1168 = vsel %vm939, %v875, 0
        %v1171 = vsel %vm939, %v880, 0
        %1173 = vmatprep.subr.mxu0 %v1033
        %1174 = vmatpush1.msra.mxu0 %v1031
        %1175 = vmatprep.subr.mxu0 %v1039
        %1176 = vmatpush1.msra.mxu0 %v1037
        %1177 = vmatprep.subr.mxu0 0.0
        %1178 = vmatpush1.msra.mxu0 0.0
        %1179 = vmatprep.subr.mxu0 0.0
        %1180 = vmatpush1.msra.mxu0 0.0
        %1181 = vmatprep.subr.mxu0 0.0
        %1182 = vmatpush1.msra.mxu0 0.0
        %1183 = vmatprep.subr.mxu0 0.0
        %1184 = vmatpush1.msra.mxu0 0.0
        %1185 = vmatprep.subr.mxu0 0.0
        %1186 = vmatpush1.msra.mxu0 0.0
        %1187 = vmatprep.subr.mxu0 0.0
        %1188 = vmatpush1.msra.mxu0 0.0
        %1189 = vmatprep.subr.mxu0 0.0
        %1190 = vmatpush1.msra.mxu0 0.0
        %1191 = vmatprep.subr.mxu0 0.0
        %1192 = vmatpush1.msra.mxu0 0.0
        %1193 = vmatprep.subr.mxu0 0.0
        %1194 = vmatpush1.msra.mxu0 0.0
        %1195 = vmatprep.subr.mxu0 0.0
        %1196 = vmatpush1.msra.mxu0 0.0
        %1197 = vmatprep.subr.mxu0 0.0
        %1198 = vmatpush1.msra.mxu0 0.0
        %1199 = vmatprep.subr.mxu0 0.0
        %1200 = vmatpush1.msra.mxu0 0.0
        %1201 = vmatprep.subr.mxu0 0.0
        %1202 = vmatpush1.msra.mxu0 0.0
        %1203 = vmatprep.subr.mxu0 0.0
        %1204 = vmatpush1.msra.mxu0 0.0
        %1205 = vmatprep.subr.mxu0 0.0
        %1206 = vmatpush1.msra.mxu0 0.0
        %1207 = vmatprep.subr.mxu0 0.0
        %1208 = vmatpush1.msra.mxu0 0.0
        %1209 = vmatprep.subr.mxu0 0.0
        %1210 = vmatpush1.msra.mxu0 0.0
        %1211 = vmatprep.subr.mxu0 0.0
        %1212 = vmatpush1.msra.mxu0 0.0
        %1213 = vmatprep.subr.mxu0 0.0
        %1214 = vmatpush1.msra.mxu0 0.0
        %1215 = vmatprep.subr.mxu0 0.0
        %1216 = vmatpush1.msra.mxu0 0.0
        %1217 = vmatprep.subr.mxu0 0.0
        %1218 = vmatpush1.msra.mxu0 0.0
        %1219 = vmatprep.subr.mxu0 0.0
        %1220 = vmatpush1.msra.mxu0 0.0
        %1221 = vmatprep.subr.mxu0 0.0
        %1222 = vmatpush1.msra.mxu0 0.0
        %1223 = vmatprep.subr.mxu0 0.0
        %1224 = vmatpush1.msra.mxu0 0.0
        %1225 = vmatprep.subr.mxu0 0.0
        %1226 = vmatpush1.msra.mxu0 0.0
        %1227 = vmatprep.subr.mxu0 0.0
        %1228 = vmatpush1.msra.mxu0 0.0
        %1229 = vmatprep.subr.mxu0 0.0
        %1230 = vmatpush1.msra.mxu0 0.0
        %1231 = vmatprep.subr.mxu0 0.0
        %1232 = vmatpush1.msra.mxu0 0.0
        %1233 = vmatprep.subr.mxu0 0.0
        %1234 = vmatpush1.msra.mxu0 0.0
        %1235 = vmatprep.subr.mxu0 0.0
        %1236 = vmatpush1.msra.mxu0 0.0
        %1237 = vmatprep.mubr.f32.mxu0 0.0
        %1238 = vmatmul.mubr.f32.gmra.mrb[0].mxu0 %v1078
        %v1239 = vpop.f32.mrb[0].mxu0
        %v1240 = vadd.f32 0.0, %v1239
        %v1241 = vpop.f32.mrb[0].mxu0
        %v1242 = vadd.f32 0.0, %v1241
        %1243 = vmatprep.mubr.f32.mxu0 0.0
        %1244 = vmatmul.mubr.f32.gmra.mrb[0].mxu0 %v1081
        %v1245 = vpop.f32.mrb[0].mxu0
        %v1246 = vadd.f32 0.0, %v1245
        %v1247 = vpop.f32.mrb[0].mxu0
        %v1248 = vadd.f32 0.0, %v1247
        %1249 = vmatprep.mubr.f32.mxu0 0.0
        %1250 = vmatmul.mubr.f32.gmra.mrb[0].mxu0 %v1084
        %v1251 = vpop.f32.mrb[0].mxu0
        %v1252 = vadd.f32 0.0, %v1251
        %v1253 = vpop.f32.mrb[0].mxu0
        %v1254 = vadd.f32 0.0, %v1253
        %1255 = vmatprep.mubr.f32.mxu0 0.0
        %1256 = vmatmul.mubr.f32.gmra.mrb[0].mxu0 %v1087
        %v1257 = vpop.f32.mrb[0].mxu0
        %v1258 = vadd.f32 0.0, %v1257
        %v1259 = vpop.f32.mrb[0].mxu0
        %v1260 = vadd.f32 0.0, %v1259
        %1261 = vmatprep.mubr.f32.mxu0 0.0
        %1262 = vmatmul.mubr.f32.gmra.mrb[0].mxu0 %v1090
        %v1263 = vpop.f32.mrb[0].mxu0
        %v1264 = vadd.f32 0.0, %v1263
        %v1265 = vpop.f32.mrb[0].mxu0
        %v1266 = vadd.f32 0.0, %v1265
        %1267 = vmatprep.mubr.f32.mxu0 0.0
        %1268 = vmatmul.mubr.f32.gmra.mrb[0].mxu0 %v1093
        %v1269 = vpop.f32.mrb[0].mxu0
        %v1270 = vadd.f32 0.0, %v1269
        %v1271 = vpop.f32.mrb[0].mxu0
        %v1272 = vadd.f32 0.0, %v1271
        %1273 = vmatprep.mubr.f32.mxu0 0.0
        %1274 = vmatmul.mubr.f32.gmra.mrb[0].mxu0 %v1096
        %v1275 = vpop.f32.mrb[0].mxu0
        %v1276 = vadd.f32 0.0, %v1275
        %v1277 = vpop.f32.mrb[0].mxu0
        %v1278 = vadd.f32 0.0, %v1277
        %1279 = vmatprep.mubr.f32.mxu0 0.0
        %1280 = vmatmul.mubr.f32.gmra.mrb[0].mxu0 %v1099
        %v1281 = vpop.f32.mrb[0].mxu0
        %v1282 = vadd.f32 0.0, %v1281
        %v1283 = vpop.f32.mrb[0].mxu0
        %v1284 = vadd.f32 0.0, %v1283
        %1285 = vmatprep.mubr.f32.mxu0 0.0
        %1286 = vmatmul.mubr.f32.gmra.mrb[0].mxu0 %v1102
        %v1287 = vpop.f32.mrb[0].mxu0
        %v1288 = vadd.f32 0.0, %v1287
        %v1289 = vpop.f32.mrb[0].mxu0
        %v1290 = vadd.f32 0.0, %v1289
        %1291 = vmatprep.mubr.f32.mxu0 0.0
        %1292 = vmatmul.mubr.f32.gmra.mrb[0].mxu0 %v1105
        %v1293 = vpop.f32.mrb[0].mxu0
        %v1294 = vadd.f32 0.0, %v1293
        %v1295 = vpop.f32.mrb[0].mxu0
        %v1296 = vadd.f32 0.0, %v1295
        %1297 = vmatprep.mubr.f32.mxu0 0.0
        %1298 = vmatmul.mubr.f32.gmra.mrb[0].mxu0 %v1108
        %v1299 = vpop.f32.mrb[0].mxu0
        %v1300 = vadd.f32 0.0, %v1299
        %v1301 = vpop.f32.mrb[0].mxu0
        %v1302 = vadd.f32 0.0, %v1301
        %1303 = vmatprep.mubr.f32.mxu0 0.0
        %1304 = vmatmul.mubr.f32.gmra.mrb[0].mxu0 %v1111
        %v1305 = vpop.f32.mrb[0].mxu0
        %v1306 = vadd.f32 0.0, %v1305
        %v1307 = vpop.f32.mrb[0].mxu0
        %v1308 = vadd.f32 0.0, %v1307
        %1309 = vmatprep.mubr.f32.mxu0 0.0
        %1310 = vmatmul.mubr.f32.gmra.mrb[0].mxu0 %v1114
        %v1311 = vpop.f32.mrb[0].mxu0
        %v1312 = vadd.f32 0.0, %v1311
        %v1313 = vpop.f32.mrb[0].mxu0
        %v1314 = vadd.f32 0.0, %v1313
        %1315 = vmatprep.mubr.f32.mxu0 0.0
        %1316 = vmatmul.mubr.f32.gmra.mrb[0].mxu0 %v1117
        %v1317 = vpop.f32.mrb[0].mxu0
        %v1318 = vadd.f32 0.0, %v1317
        %v1319 = vpop.f32.mrb[0].mxu0
        %v1320 = vadd.f32 0.0, %v1319
        %1321 = vmatprep.mubr.f32.mxu0 0.0
        %1322 = vmatmul.mubr.f32.gmra.mrb[0].mxu0 %v1120
        %v1323 = vpop.f32.mrb[0].mxu0
        %v1324 = vadd.f32 0.0, %v1323
        %v1325 = vpop.f32.mrb[0].mxu0
        %v1326 = vadd.f32 0.0, %v1325
        %1327 = vmatprep.mubr.f32.mxu0 0.0
        %1328 = vmatmul.mubr.f32.gmra.mrb[0].mxu0 %v1123
        %v1329 = vpop.f32.mrb[0].mxu0
        %v1330 = vadd.f32 0.0, %v1329
        %v1331 = vpop.f32.mrb[0].mxu0
        %v1332 = vadd.f32 0.0, %v1331
        %1333 = vmatprep.mubr.f32.mxu0 0.0
        %1334 = vmatmul.mubr.f32.gmra.mrb[0].mxu0 %v1126
        %v1335 = vpop.f32.mrb[0].mxu0
        %v1336 = vadd.f32 0.0, %v1335
        %v1337 = vpop.f32.mrb[0].mxu0
        %v1338 = vadd.f32 0.0, %v1337
        %1339 = vmatprep.mubr.f32.mxu0 0.0
        %1340 = vmatmul.mubr.f32.gmra.mrb[0].mxu0 %v1129
        %v1341 = vpop.f32.mrb[0].mxu0
        %v1342 = vadd.f32 0.0, %v1341
        %v1343 = vpop.f32.mrb[0].mxu0
        %v1344 = vadd.f32 0.0, %v1343
        %1345 = vmatprep.mubr.f32.mxu0 0.0
        %1346 = vmatmul.mubr.f32.gmra.mrb[0].mxu0 %v1132
        %v1347 = vpop.f32.mrb[0].mxu0
        %v1348 = vadd.f32 0.0, %v1347
        %v1349 = vpop.f32.mrb[0].mxu0
        %v1350 = vadd.f32 0.0, %v1349
        %1351 = vmatprep.mubr.f32.mxu0 0.0
        %1352 = vmatmul.mubr.f32.gmra.mrb[0].mxu0 %v1135
        %v1353 = vpop.f32.mrb[0].mxu0
        %v1354 = vadd.f32 0.0, %v1353
        %v1355 = vpop.f32.mrb[0].mxu0
        %v1356 = vadd.f32 0.0, %v1355
        %1357 = vmatprep.mubr.f32.mxu0 0.0
        %1358 = vmatmul.mubr.f32.gmra.mrb[0].mxu0 %v1138
        %v1359 = vpop.f32.mrb[0].mxu0
        %v1360 = vadd.f32 0.0, %v1359
        %v1361 = vpop.f32.mrb[0].mxu0
        %v1362 = vadd.f32 0.0, %v1361
        %1363 = vmatprep.mubr.f32.mxu0 0.0
        %1364 = vmatmul.mubr.f32.gmra.mrb[0].mxu0 %v1141
        %v1365 = vpop.f32.mrb[0].mxu0
        %v1366 = vadd.f32 0.0, %v1365
        %v1367 = vpop.f32.mrb[0].mxu0
        %v1368 = vadd.f32 0.0, %v1367
        %1369 = vmatprep.mubr.f32.mxu0 0.0
        %1370 = vmatmul.mubr.f32.gmra.mrb[0].mxu0 %v1144
        %v1371 = vpop.f32.mrb[0].mxu0
        %v1372 = vadd.f32 0.0, %v1371
        %v1373 = vpop.f32.mrb[0].mxu0
        %v1374 = vadd.f32 0.0, %v1373
        %1375 = vmatprep.mubr.f32.mxu0 0.0
        %1376 = vmatmul.mubr.f32.gmra.mrb[0].mxu0 %v1147
        %v1377 = vpop.f32.mrb[0].mxu0
        %v1378 = vadd.f32 0.0, %v1377
        %v1379 = vpop.f32.mrb[0].mxu0
        %v1380 = vadd.f32 0.0, %v1379
        %1381 = vmatprep.mubr.f32.mxu0 0.0
        %1382 = vmatmul.mubr.f32.gmra.mrb[0].mxu0 %v1150
        %v1383 = vpop.f32.mrb[0].mxu0
        %v1384 = vadd.f32 0.0, %v1383
        %v1385 = vpop.f32.mrb[0].mxu0
        %v1386 = vadd.f32 0.0, %v1385
        %1387 = vmatprep.mubr.f32.mxu0 0.0
        %1388 = vmatmul.mubr.f32.gmra.mrb[0].mxu0 %v1153
        %v1389 = vpop.f32.mrb[0].mxu0
        %v1390 = vadd.f32 0.0, %v1389
        %v1391 = vpop.f32.mrb[0].mxu0
        %v1392 = vadd.f32 0.0, %v1391
        %1393 = vmatprep.mubr.f32.mxu0 0.0
        %1394 = vmatmul.mubr.f32.gmra.mrb[0].mxu0 %v1156
        %v1395 = vpop.f32.mrb[0].mxu0
        %v1396 = vadd.f32 0.0, %v1395
        %v1397 = vpop.f32.mrb[0].mxu0
        %v1398 = vadd.f32 0.0, %v1397
        %1399 = vmatprep.mubr.f32.mxu0 0.0
        %1400 = vmatmul.mubr.f32.gmra.mrb[0].mxu0 %v1159
        %v1401 = vpop.f32.mrb[0].mxu0
        %v1402 = vadd.f32 0.0, %v1401
        %v1403 = vpop.f32.mrb[0].mxu0
        %v1404 = vadd.f32 0.0, %v1403
        %1405 = vmatprep.mubr.f32.mxu0 0.0
        %1406 = vmatmul.mubr.f32.gmra.mrb[0].mxu0 %v1162
        %v1407 = vpop.f32.mrb[0].mxu0
        %v1408 = vadd.f32 0.0, %v1407
        %v1409 = vpop.f32.mrb[0].mxu0
        %v1410 = vadd.f32 0.0, %v1409
        %1411 = vmatprep.mubr.f32.mxu0 0.0
        %1412 = vmatmul.mubr.f32.gmra.mrb[0].mxu0 %v1165
        %v1413 = vpop.f32.mrb[0].mxu0
        %v1414 = vadd.f32 0.0, %v1413
        %v1415 = vpop.f32.mrb[0].mxu0
        %v1416 = vadd.f32 0.0, %v1415
        %1417 = vmatprep.mubr.f32.mxu0 0.0
        %1418 = vmatmul.mubr.f32.gmra.mrb[0].mxu0 %v1168
        %v1419 = vpop.f32.mrb[0].mxu0
        %v1420 = vadd.f32 0.0, %v1419
        %v1421 = vpop.f32.mrb[0].mxu0
        %v1422 = vadd.f32 0.0, %v1421
        %1423 = vmatprep.mubr.f32.mxu0 0.0
        %1424 = vmatmul.mubr.f32.gmra.mrb[0].mxu0 %v1171
        %v1425 = vpop.f32.mrb[0].mxu0
        %v1426 = vadd.f32 0.0, %v1425
        %v1427 = vpop.f32.mrb[0].mxu0
        %v1428 = vadd.f32 0.0, %v1427
        %1429 = vdwg.mxu0
        %1430 = vmatprep.subr.mxu0 %v1057
        %1431 = vmatpush1.msra.mxu0 %v1055
        %1432 = vmatprep.subr.mxu0 %v1063
        %1433 = vmatpush1.msra.mxu0 %v1061
        %1434 = vmatprep.subr.mxu0 0.0
        %1435 = vmatpush1.msra.mxu0 0.0
        %1436 = vmatprep.subr.mxu0 0.0
        %1437 = vmatpush1.msra.mxu0 0.0
        %1438 = vmatprep.subr.mxu0 0.0
        %1439 = vmatpush1.msra.mxu0 0.0
        %1440 = vmatprep.subr.mxu0 0.0
        %1441 = vmatpush1.msra.mxu0 0.0
        %1442 = vmatprep.subr.mxu0 0.0
        %1443 = vmatpush1.msra.mxu0 0.0
        %1444 = vmatprep.subr.mxu0 0.0
        %1445 = vmatpush1.msra.mxu0 0.0
        %1446 = vmatprep.subr.mxu0 0.0
        %1447 = vmatpush1.msra.mxu0 0.0
        %1448 = vmatprep.subr.mxu0 0.0
        %1449 = vmatpush1.msra.mxu0 0.0
        %1450 = vmatprep.subr.mxu0 0.0
        %1451 = vmatpush1.msra.mxu0 0.0
        %1452 = vmatprep.subr.mxu0 0.0
        %1453 = vmatpush1.msra.mxu0 0.0
        %1454 = vmatprep.subr.mxu0 0.0
        %1455 = vmatpush1.msra.mxu0 0.0
        %1456 = vmatprep.subr.mxu0 0.0
        %1457 = vmatpush1.msra.mxu0 0.0
        %1458 = vmatprep.subr.mxu0 0.0
        %1459 = vmatpush1.msra.mxu0 0.0
        %1460 = vmatprep.subr.mxu0 0.0
        %1461 = vmatpush1.msra.mxu0 0.0
        %1462 = vmatprep.subr.mxu0 0.0
        %1463 = vmatpush1.msra.mxu0 0.0
        %1464 = vmatprep.subr.mxu0 0.0
        %1465 = vmatpush1.msra.mxu0 0.0
        %1466 = vmatprep.subr.mxu0 0.0
        %1467 = vmatpush1.msra.mxu0 0.0
        %1468 = vmatprep.subr.mxu0 0.0
        %1469 = vmatpush1.msra.mxu0 0.0
        %1470 = vmatprep.subr.mxu0 0.0
        %1471 = vmatpush1.msra.mxu0 0.0
        %1472 = vmatprep.subr.mxu0 0.0
        %1473 = vmatpush1.msra.mxu0 0.0
        %1474 = vmatprep.subr.mxu0 0.0
        %1475 = vmatpush1.msra.mxu0 0.0
        %1476 = vmatprep.subr.mxu0 0.0
        %1477 = vmatpush1.msra.mxu0 0.0
        %1478 = vmatprep.subr.mxu0 0.0
        %1479 = vmatpush1.msra.mxu0 0.0
        %1480 = vmatprep.subr.mxu0 0.0
        %1481 = vmatpush1.msra.mxu0 0.0
        %1482 = vmatprep.subr.mxu0 0.0
        %1483 = vmatpush1.msra.mxu0 0.0
        %1484 = vmatprep.subr.mxu0 0.0
        %1485 = vmatpush1.msra.mxu0 0.0
        %1486 = vmatprep.subr.mxu0 0.0
        %1487 = vmatpush1.msra.mxu0 0.0
        %1488 = vmatprep.subr.mxu0 0.0
        %1489 = vmatpush1.msra.mxu0 0.0
        %1490 = vmatprep.subr.mxu0 0.0
        %1491 = vmatpush1.msra.mxu0 0.0
        %1492 = vmatprep.subr.mxu0 0.0
        %1493 = vmatpush1.msra.mxu0 0.0
        %1494 = vmatprep.mubr.f32.mxu0 0.0
        %1495 = vmatmul.mubr.f32.gmra.mrb[0].mxu0 %v1078
        %v1496 = vpop.f32.mrb[0].mxu0
        %v1497 = vadd.f32 0.0, %v1496
        %v1498 = vpop.f32.mrb[0].mxu0
        %v1499 = vadd.f32 0.0, %v1498
        %1500 = vmatprep.mubr.f32.mxu0 0.0
        %1501 = vmatmul.mubr.f32.gmra.mrb[0].mxu0 %v1081
        %v1502 = vpop.f32.mrb[0].mxu0
        %v1503 = vadd.f32 0.0, %v1502
        %v1504 = vpop.f32.mrb[0].mxu0
        %v1505 = vadd.f32 0.0, %v1504
        %1506 = vmatprep.mubr.f32.mxu0 0.0
        %1507 = vmatmul.mubr.f32.gmra.mrb[0].mxu0 %v1084
        %v1508 = vpop.f32.mrb[0].mxu0
        %v1509 = vadd.f32 0.0, %v1508
        %v1510 = vpop.f32.mrb[0].mxu0
        %v1511 = vadd.f32 0.0, %v1510
        %1512 = vmatprep.mubr.f32.mxu0 0.0
        %1513 = vmatmul.mubr.f32.gmra.mrb[0].mxu0 %v1087
        %v1514 = vpop.f32.mrb[0].mxu0
        %v1515 = vadd.f32 0.0, %v1514
        %v1516 = vpop.f32.mrb[0].mxu0
        %v1517 = vadd.f32 0.0, %v1516
        %1518 = vmatprep.mubr.f32.mxu0 0.0
        %1519 = vmatmul.mubr.f32.gmra.mrb[0].mxu0 %v1090
        %v1520 = vpop.f32.mrb[0].mxu0
        %v1521 = vadd.f32 0.0, %v1520
        %v1522 = vpop.f32.mrb[0].mxu0
        %v1523 = vadd.f32 0.0, %v1522
        %1524 = vmatprep.mubr.f32.mxu0 0.0
        %1525 = vmatmul.mubr.f32.gmra.mrb[0].mxu0 %v1093
        %v1526 = vpop.f32.mrb[0].mxu0
        %v1527 = vadd.f32 0.0, %v1526
        %v1528 = vpop.f32.mrb[0].mxu0
        %v1529 = vadd.f32 0.0, %v1528
        %1530 = vmatprep.mubr.f32.mxu0 0.0
        %1531 = vmatmul.mubr.f32.gmra.mrb[0].mxu0 %v1096
        %v1532 = vpop.f32.mrb[0].mxu0
        %v1533 = vadd.f32 0.0, %v1532
        %v1534 = vpop.f32.mrb[0].mxu0
        %v1535 = vadd.f32 0.0, %v1534
        %1536 = vmatprep.mubr.f32.mxu0 0.0
        %1537 = vmatmul.mubr.f32.gmra.mrb[0].mxu0 %v1099
        %v1538 = vpop.f32.mrb[0].mxu0
        %v1539 = vadd.f32 0.0, %v1538
        %v1540 = vpop.f32.mrb[0].mxu0
        %v1541 = vadd.f32 0.0, %v1540
        %1542 = vmatprep.mubr.f32.mxu0 0.0
        %1543 = vmatmul.mubr.f32.gmra.mrb[0].mxu0 %v1102
        %v1544 = vpop.f32.mrb[0].mxu0
        %v1545 = vadd.f32 0.0, %v1544
        %v1546 = vpop.f32.mrb[0].mxu0
        %v1547 = vadd.f32 0.0, %v1546
        %1548 = vmatprep.mubr.f32.mxu0 0.0
        %1549 = vmatmul.mubr.f32.gmra.mrb[0].mxu0 %v1105
        %v1550 = vpop.f32.mrb[0].mxu0
        %v1551 = vadd.f32 0.0, %v1550
        %v1552 = vpop.f32.mrb[0].mxu0
        %v1553 = vadd.f32 0.0, %v1552
        %1554 = vmatprep.mubr.f32.mxu0 0.0
        %1555 = vmatmul.mubr.f32.gmra.mrb[0].mxu0 %v1108
        %v1556 = vpop.f32.mrb[0].mxu0
        %v1557 = vadd.f32 0.0, %v1556
        %v1558 = vpop.f32.mrb[0].mxu0
        %v1559 = vadd.f32 0.0, %v1558
        %1560 = vmatprep.mubr.f32.mxu0 0.0
        %1561 = vmatmul.mubr.f32.gmra.mrb[0].mxu0 %v1111
        %v1562 = vpop.f32.mrb[0].mxu0
        %v1563 = vadd.f32 0.0, %v1562
        %v1564 = vpop.f32.mrb[0].mxu0
        %v1565 = vadd.f32 0.0, %v1564
        %1566 = vmatprep.mubr.f32.mxu0 0.0
        %1567 = vmatmul.mubr.f32.gmra.mrb[0].mxu0 %v1114
        %v1568 = vpop.f32.mrb[0].mxu0
        %v1569 = vadd.f32 0.0, %v1568
        %v1570 = vpop.f32.mrb[0].mxu0
        %v1571 = vadd.f32 0.0, %v1570
        %1572 = vmatprep.mubr.f32.mxu0 0.0
        %1573 = vmatmul.mubr.f32.gmra.mrb[0].mxu0 %v1117
        %v1574 = vpop.f32.mrb[0].mxu0
        %v1575 = vadd.f32 0.0, %v1574
        %v1576 = vpop.f32.mrb[0].mxu0
        %v1577 = vadd.f32 0.0, %v1576
        %1578 = vmatprep.mubr.f32.mxu0 0.0
        %1579 = vmatmul.mubr.f32.gmra.mrb[0].mxu0 %v1120
        %v1580 = vpop.f32.mrb[0].mxu0
        %v1581 = vadd.f32 0.0, %v1580
        %v1582 = vpop.f32.mrb[0].mxu0
        %v1583 = vadd.f32 0.0, %v1582
        %1584 = vmatprep.mubr.f32.mxu0 0.0
        %1585 = vmatmul.mubr.f32.gmra.mrb[0].mxu0 %v1123
        %v1586 = vpop.f32.mrb[0].mxu0
        %v1587 = vadd.f32 0.0, %v1586
        %v1588 = vpop.f32.mrb[0].mxu0
        %v1589 = vadd.f32 0.0, %v1588
        %1590 = vmatprep.mubr.f32.mxu0 0.0
        %1591 = vmatmul.mubr.f32.gmra.mrb[0].mxu0 %v1126
        %v1592 = vpop.f32.mrb[0].mxu0
        %v1593 = vadd.f32 0.0, %v1592
        %v1594 = vpop.f32.mrb[0].mxu0
        %v1595 = vadd.f32 0.0, %v1594
        %1596 = vmatprep.mubr.f32.mxu0 0.0
        %1597 = vmatmul.mubr.f32.gmra.mrb[0].mxu0 %v1129
        %v1598 = vpop.f32.mrb[0].mxu0
        %v1599 = vadd.f32 0.0, %v1598
        %v1600 = vpop.f32.mrb[0].mxu0
        %v1601 = vadd.f32 0.0, %v1600
        %1602 = vmatprep.mubr.f32.mxu0 0.0
        %1603 = vmatmul.mubr.f32.gmra.mrb[0].mxu0 %v1132
        %v1604 = vpop.f32.mrb[0].mxu0
        %v1605 = vadd.f32 0.0, %v1604
        %v1606 = vpop.f32.mrb[0].mxu0
        %v1607 = vadd.f32 0.0, %v1606
        %1608 = vmatprep.mubr.f32.mxu0 0.0
        %1609 = vmatmul.mubr.f32.gmra.mrb[0].mxu0 %v1135
        %v1610 = vpop.f32.mrb[0].mxu0
        %v1611 = vadd.f32 0.0, %v1610
        %v1612 = vpop.f32.mrb[0].mxu0
        %v1613 = vadd.f32 0.0, %v1612
        %1614 = vmatprep.mubr.f32.mxu0 0.0
        %1615 = vmatmul.mubr.f32.gmra.mrb[0].mxu0 %v1138
        %v1616 = vpop.f32.mrb[0].mxu0
        %v1617 = vadd.f32 0.0, %v1616
        %v1618 = vpop.f32.mrb[0].mxu0
        %v1619 = vadd.f32 0.0, %v1618
        %1620 = vmatprep.mubr.f32.mxu0 0.0
        %1621 = vmatmul.mubr.f32.gmra.mrb[0].mxu0 %v1141
        %v1622 = vpop.f32.mrb[0].mxu0
        %v1623 = vadd.f32 0.0, %v1622
        %v1624 = vpop.f32.mrb[0].mxu0
        %v1625 = vadd.f32 0.0, %v1624
        %1626 = vmatprep.mubr.f32.mxu0 0.0
        %1627 = vmatmul.mubr.f32.gmra.mrb[0].mxu0 %v1144
        %v1628 = vpop.f32.mrb[0].mxu0
        %v1629 = vadd.f32 0.0, %v1628
        %v1630 = vpop.f32.mrb[0].mxu0
        %v1631 = vadd.f32 0.0, %v1630
        %1632 = vmatprep.mubr.f32.mxu0 0.0
        %1633 = vmatmul.mubr.f32.gmra.mrb[0].mxu0 %v1147
        %v1634 = vpop.f32.mrb[0].mxu0
        %v1635 = vadd.f32 0.0, %v1634
        %v1636 = vpop.f32.mrb[0].mxu0
        %v1637 = vadd.f32 0.0, %v1636
        %1638 = vmatprep.mubr.f32.mxu0 0.0
        %1639 = vmatmul.mubr.f32.gmra.mrb[0].mxu0 %v1150
        %v1640 = vpop.f32.mrb[0].mxu0
        %v1641 = vadd.f32 0.0, %v1640
        %v1642 = vpop.f32.mrb[0].mxu0
        %v1643 = vadd.f32 0.0, %v1642
        %1644 = vmatprep.mubr.f32.mxu0 0.0
        %1645 = vmatmul.mubr.f32.gmra.mrb[0].mxu0 %v1153
        %v1646 = vpop.f32.mrb[0].mxu0
        %v1647 = vadd.f32 0.0, %v1646
        %v1648 = vpop.f32.mrb[0].mxu0
        %v1649 = vadd.f32 0.0, %v1648
        %1650 = vmatprep.mubr.f32.mxu0 0.0
        %1651 = vmatmul.mubr.f32.gmra.mrb[0].mxu0 %v1156
        %v1652 = vpop.f32.mrb[0].mxu0
        %v1653 = vadd.f32 0.0, %v1652
        %v1654 = vpop.f32.mrb[0].mxu0
        %v1655 = vadd.f32 0.0, %v1654
        %1656 = vmatprep.mubr.f32.mxu0 0.0
        %1657 = vmatmul.mubr.f32.gmra.mrb[0].mxu0 %v1159
        %v1658 = vpop.f32.mrb[0].mxu0
        %v1659 = vadd.f32 0.0, %v1658
        %v1660 = vpop.f32.mrb[0].mxu0
        %v1661 = vadd.f32 0.0, %v1660
        %1662 = vmatprep.mubr.f32.mxu0 0.0
        %1663 = vmatmul.mubr.f32.gmra.mrb[0].mxu0 %v1162
        %v1664 = vpop.f32.mrb[0].mxu0
        %v1665 = vadd.f32 0.0, %v1664
        %v1666 = vpop.f32.mrb[0].mxu0
        %v1667 = vadd.f32 0.0, %v1666
        %1668 = vmatprep.mubr.f32.mxu0 0.0
        %1669 = vmatmul.mubr.f32.gmra.mrb[0].mxu0 %v1165
        %v1670 = vpop.f32.mrb[0].mxu0
        %v1671 = vadd.f32 0.0, %v1670
        %v1672 = vpop.f32.mrb[0].mxu0
        %v1673 = vadd.f32 0.0, %v1672
        %1674 = vmatprep.mubr.f32.mxu0 0.0
        %1675 = vmatmul.mubr.f32.gmra.mrb[0].mxu0 %v1168
        %v1676 = vpop.f32.mrb[0].mxu0
        %v1677 = vadd.f32 0.0, %v1676
        %v1678 = vpop.f32.mrb[0].mxu0
        %v1679 = vadd.f32 0.0, %v1678
        %1680 = vmatprep.mubr.f32.mxu0 0.0
        %1681 = vmatmul.mubr.f32.gmra.mrb[0].mxu0 %v1171
        %v1682 = vpop.f32.mrb[0].mxu0
        %v1683 = vadd.f32 0.0, %v1682
        %v1684 = vpop.f32.mrb[0].mxu0
        %v1685 = vadd.f32 0.0, %v1684
        %1686 = vdwg.mxu0
        %v1687 = vmax.f32 %v1240, %v1242
        %1688 = vmax.xlane.f32.xlu0 %v1687
        %v1689 = vpop.xlane.xlu0 %1688
        %v1690 = vmax.f32 %v1246, %v1248
        %1691 = vmax.xlane.f32.xlu0 %v1690
        %v1692 = vpop.xlane.xlu0 %1691
        %v1693 = vmax.f32 %v1252, %v1254
        %1694 = vmax.xlane.f32.xlu0 %v1693
        %v1695 = vpop.xlane.xlu0 %1694
        %v1696 = vmax.f32 %v1258, %v1260
        %1697 = vmax.xlane.f32.xlu0 %v1696
        %v1698 = vpop.xlane.xlu0 %1697
        %v1699 = vmax.f32 %v1264, %v1266
        %1700 = vmax.xlane.f32.xlu0 %v1699
        %v1701 = vpop.xlane.xlu0 %1700
        %v1702 = vmax.f32 %v1270, %v1272
        %1703 = vmax.xlane.f32.xlu0 %v1702
        %v1704 = vpop.xlane.xlu0 %1703
        %v1705 = vmax.f32 %v1276, %v1278
        %1706 = vmax.xlane.f32.xlu0 %v1705
        %v1707 = vpop.xlane.xlu0 %1706
        %v1708 = vmax.f32 %v1282, %v1284
        %1709 = vmax.xlane.f32.xlu0 %v1708
        %v1710 = vpop.xlane.xlu0 %1709
        %v1711 = vmax.f32 %v1288, %v1290
        %1712 = vmax.xlane.f32.xlu0 %v1711
        %v1713 = vpop.xlane.xlu0 %1712
        %v1714 = vmax.f32 %v1294, %v1296
        %1715 = vmax.xlane.f32.xlu0 %v1714
        %v1716 = vpop.xlane.xlu0 %1715
        %v1717 = vmax.f32 %v1300, %v1302
        %1718 = vmax.xlane.f32.xlu0 %v1717
        %v1719 = vpop.xlane.xlu0 %1718
        %v1720 = vmax.f32 %v1306, %v1308
        %1721 = vmax.xlane.f32.xlu0 %v1720
        %v1722 = vpop.xlane.xlu0 %1721
        %v1723 = vmax.f32 %v1312, %v1314
        %1724 = vmax.xlane.f32.xlu0 %v1723
        %v1725 = vpop.xlane.xlu0 %1724
        %v1726 = vmax.f32 %v1318, %v1320
        %1727 = vmax.xlane.f32.xlu0 %v1726
        %v1728 = vpop.xlane.xlu0 %1727
        %v1729 = vmax.f32 %v1324, %v1326
        %1730 = vmax.xlane.f32.xlu0 %v1729
        %v1731 = vpop.xlane.xlu0 %1730
        %v1732 = vmax.f32 %v1330, %v1332
        %1733 = vmax.xlane.f32.xlu0 %v1732
        %v1734 = vpop.xlane.xlu0 %1733
        %v1735 = vmax.f32 %v1336, %v1338
        %1736 = vmax.xlane.f32.xlu0 %v1735
        %v1737 = vpop.xlane.xlu0 %1736
        %v1738 = vmax.f32 %v1342, %v1344
        %1739 = vmax.xlane.f32.xlu0 %v1738
        %v1740 = vpop.xlane.xlu0 %1739
        %v1741 = vmax.f32 %v1348, %v1350
        %1742 = vmax.xlane.f32.xlu0 %v1741
        %v1743 = vpop.xlane.xlu0 %1742
        %v1744 = vmax.f32 %v1354, %v1356
        %1745 = vmax.xlane.f32.xlu0 %v1744
        %v1746 = vpop.xlane.xlu0 %1745
        %v1747 = vmax.f32 %v1360, %v1362
        %1748 = vmax.xlane.f32.xlu0 %v1747
        %v1749 = vpop.xlane.xlu0 %1748
        %v1750 = vmax.f32 %v1366, %v1368
        %1751 = vmax.xlane.f32.xlu0 %v1750
        %v1752 = vpop.xlane.xlu0 %1751
        %v1753 = vmax.f32 %v1372, %v1374
        %1754 = vmax.xlane.f32.xlu0 %v1753
        %v1755 = vpop.xlane.xlu0 %1754
        %v1756 = vmax.f32 %v1378, %v1380
        %1757 = vmax.xlane.f32.xlu0 %v1756
        %v1758 = vpop.xlane.xlu0 %1757
        %v1759 = vmax.f32 %v1384, %v1386
        %1760 = vmax.xlane.f32.xlu0 %v1759
        %v1761 = vpop.xlane.xlu0 %1760
        %v1762 = vmax.f32 %v1390, %v1392
        %1763 = vmax.xlane.f32.xlu0 %v1762
        %v1764 = vpop.xlane.xlu0 %1763
        %v1765 = vmax.f32 %v1396, %v1398
        %1766 = vmax.xlane.f32.xlu0 %v1765
        %v1767 = vpop.xlane.xlu0 %1766
        %v1768 = vmax.f32 %v1402, %v1404
        %1769 = vmax.xlane.f32.xlu0 %v1768
        %v1770 = vpop.xlane.xlu0 %1769
        %v1771 = vmax.f32 %v1408, %v1410
        %1772 = vmax.xlane.f32.xlu0 %v1771
        %v1773 = vpop.xlane.xlu0 %1772
        %v1774 = vmax.f32 %v1414, %v1416
        %1775 = vmax.xlane.f32.xlu0 %v1774
        %v1776 = vpop.xlane.xlu0 %1775
        %v1777 = vmax.f32 %v1420, %v1422
        %1778 = vmax.xlane.f32.xlu0 %v1777
        %v1779 = vpop.xlane.xlu0 %1778
        %v1780 = vmax.f32 %v1426, %v1428
        %1781 = vmax.xlane.f32.xlu0 %v1780
        %v1782 = vpop.xlane.xlu0 %1781
        %v1783 = vsub.f32 %v1240, %v1689
        %v1784 = vsub.f32 %v1242, %v1689
        %v1785 = vsub.f32 %v1246, %v1692
        %v1786 = vsub.f32 %v1248, %v1692
        %v1787 = vsub.f32 %v1252, %v1695
        %v1788 = vsub.f32 %v1254, %v1695
        %v1789 = vsub.f32 %v1258, %v1698
        %v1790 = vsub.f32 %v1260, %v1698
        %v1791 = vsub.f32 %v1264, %v1701
        %v1792 = vsub.f32 %v1266, %v1701
        %v1793 = vsub.f32 %v1270, %v1704
        %v1794 = vsub.f32 %v1272, %v1704
        %v1795 = vsub.f32 %v1276, %v1707
        %v1796 = vsub.f32 %v1278, %v1707
        %v1797 = vsub.f32 %v1282, %v1710
        %v1798 = vsub.f32 %v1284, %v1710
        %v1799 = vsub.f32 %v1288, %v1713
        %v1800 = vsub.f32 %v1290, %v1713
        %v1801 = vsub.f32 %v1294, %v1716
        %v1802 = vsub.f32 %v1296, %v1716
        %v1803 = vsub.f32 %v1300, %v1719
        %v1804 = vsub.f32 %v1302, %v1719
        %v1805 = vsub.f32 %v1306, %v1722
        %v1806 = vsub.f32 %v1308, %v1722
        %v1807 = vsub.f32 %v1312, %v1725
        %v1808 = vsub.f32 %v1314, %v1725
        %v1809 = vsub.f32 %v1318, %v1728
        %v1810 = vsub.f32 %v1320, %v1728
        %v1811 = vsub.f32 %v1324, %v1731
        %v1812 = vsub.f32 %v1326, %v1731
        %v1813 = vsub.f32 %v1330, %v1734
        %v1814 = vsub.f32 %v1332, %v1734
        %v1815 = vsub.f32 %v1336, %v1737
        %v1816 = vsub.f32 %v1338, %v1737
        %v1817 = vsub.f32 %v1342, %v1740
        %v1818 = vsub.f32 %v1344, %v1740
        %v1819 = vsub.f32 %v1348, %v1743
        %v1820 = vsub.f32 %v1350, %v1743
        %v1821 = vsub.f32 %v1354, %v1746
        %v1822 = vsub.f32 %v1356, %v1746
        %v1823 = vsub.f32 %v1360, %v1749
        %v1824 = vsub.f32 %v1362, %v1749
        %v1825 = vsub.f32 %v1366, %v1752
        %v1826 = vsub.f32 %v1368, %v1752
        %v1827 = vsub.f32 %v1372, %v1755
        %v1828 = vsub.f32 %v1374, %v1755
        %v1829 = vsub.f32 %v1378, %v1758
        %v1830 = vsub.f32 %v1380, %v1758
        %v1831 = vsub.f32 %v1384, %v1761
        %v1832 = vsub.f32 %v1386, %v1761
        %v1833 = vsub.f32 %v1390, %v1764
        %v1834 = vsub.f32 %v1392, %v1764
        %v1835 = vsub.f32 %v1396, %v1767
        %v1836 = vsub.f32 %v1398, %v1767
        %v1837 = vsub.f32 %v1402, %v1770
        %v1838 = vsub.f32 %v1404, %v1770
        %v1839 = vsub.f32 %v1408, %v1773
        %v1840 = vsub.f32 %v1410, %v1773
        %v1841 = vsub.f32 %v1414, %v1776
        %v1842 = vsub.f32 %v1416, %v1776
        %v1843 = vsub.f32 %v1420, %v1779
        %v1844 = vsub.f32 %v1422, %v1779
        %v1845 = vsub.f32 %v1426, %v1782
        %v1846 = vsub.f32 %v1428, %v1782
        %v1847 = vmul.f32 %v1783, 1.442695
        %v1848 = vpow.pop %v1847
        %v1849 = vmul.f32 %v1784, 1.442695
        %v1850 = vpow.pop %v1849
        %v1851 = vmul.f32 %v1785, 1.442695
        %v1852 = vpow.pop %v1851
        %v1853 = vmul.f32 %v1786, 1.442695
        %v1854 = vpow.pop %v1853
        %v1855 = vmul.f32 %v1787, 1.442695
        %v1856 = vpow.pop %v1855
        %v1857 = vmul.f32 %v1788, 1.442695
        %v1858 = vpow.pop %v1857
        %v1859 = vmul.f32 %v1789, 1.442695
        %v1860 = vpow.pop %v1859
        %v1861 = vmul.f32 %v1790, 1.442695
        %v1862 = vpow.pop %v1861
        %v1863 = vmul.f32 %v1791, 1.442695
        %v1864 = vpow.pop %v1863
        %v1865 = vmul.f32 %v1792, 1.442695
        %v1866 = vpow.pop %v1865
        %v1867 = vmul.f32 %v1793, 1.442695
        %v1868 = vpow.pop %v1867
        %v1869 = vmul.f32 %v1794, 1.442695
        %v1870 = vpow.pop %v1869
        %v1871 = vmul.f32 %v1795, 1.442695
        %v1872 = vpow.pop %v1871
        %v1873 = vmul.f32 %v1796, 1.442695
        %v1874 = vpow.pop %v1873
        %v1875 = vmul.f32 %v1797, 1.442695
        %v1876 = vpow.pop %v1875
        %v1877 = vmul.f32 %v1798, 1.442695
        %v1878 = vpow.pop %v1877
        %v1879 = vmul.f32 %v1799, 1.442695
        %v1880 = vpow.pop %v1879
        %v1881 = vmul.f32 %v1800, 1.442695
        %v1882 = vpow.pop %v1881
        %v1883 = vmul.f32 %v1801, 1.442695
        %v1884 = vpow.pop %v1883
        %v1885 = vmul.f32 %v1802, 1.442695
        %v1886 = vpow.pop %v1885
        %v1887 = vmul.f32 %v1803, 1.442695
        %v1888 = vpow.pop %v1887
        %v1889 = vmul.f32 %v1804, 1.442695
        %v1890 = vpow.pop %v1889
        %v1891 = vmul.f32 %v1805, 1.442695
        %v1892 = vpow.pop %v1891
        %v1893 = vmul.f32 %v1806, 1.442695
        %v1894 = vpow.pop %v1893
        %v1895 = vmul.f32 %v1807, 1.442695
        %v1896 = vpow.pop %v1895
        %v1897 = vmul.f32 %v1808, 1.442695
        %v1898 = vpow.pop %v1897
        %v1899 = vmul.f32 %v1809, 1.442695
        %v1900 = vpow.pop %v1899
        %v1901 = vmul.f32 %v1810, 1.442695
        %v1902 = vpow.pop %v1901
        %v1903 = vmul.f32 %v1811, 1.442695
        %v1904 = vpow.pop %v1903
        %v1905 = vmul.f32 %v1812, 1.442695
        %v1906 = vpow.pop %v1905
        %v1907 = vmul.f32 %v1813, 1.442695
        %v1908 = vpow.pop %v1907
        %v1909 = vmul.f32 %v1814, 1.442695
        %v1910 = vpow.pop %v1909
        %v1911 = vmul.f32 %v1815, 1.442695
        %v1912 = vpow.pop %v1911
        %v1913 = vmul.f32 %v1816, 1.442695
        %v1914 = vpow.pop %v1913
        %v1915 = vmul.f32 %v1817, 1.442695
        %v1916 = vpow.pop %v1915
        %v1917 = vmul.f32 %v1818, 1.442695
        %v1918 = vpow.pop %v1917
        %v1919 = vmul.f32 %v1819, 1.442695
        %v1920 = vpow.pop %v1919
        %v1921 = vmul.f32 %v1820, 1.442695
        %v1922 = vpow.pop %v1921
        %v1923 = vmul.f32 %v1821, 1.442695
        %v1924 = vpow.pop %v1923
        %v1925 = vmul.f32 %v1822, 1.442695
        %v1926 = vpow.pop %v1925
        %v1927 = vmul.f32 %v1823, 1.442695
        %v1928 = vpow.pop %v1927
        %v1929 = vmul.f32 %v1824, 1.442695
        %v1930 = vpow.pop %v1929
        %v1931 = vmul.f32 %v1825, 1.442695
        %v1932 = vpow.pop %v1931
        %v1933 = vmul.f32 %v1826, 1.442695
        %v1934 = vpow.pop %v1933
        %v1935 = vmul.f32 %v1827, 1.442695
        %v1936 = vpow.pop %v1935
        %v1937 = vmul.f32 %v1828, 1.442695
        %v1938 = vpow.pop %v1937
        %v1939 = vmul.f32 %v1829, 1.442695
        %v1940 = vpow.pop %v1939
        %v1941 = vmul.f32 %v1830, 1.442695
        %v1942 = vpow.pop %v1941
        %v1943 = vmul.f32 %v1831, 1.442695
        %v1944 = vpow.pop %v1943
        %v1945 = vmul.f32 %v1832, 1.442695
        %v1946 = vpow.pop %v1945
        %v1947 = vmul.f32 %v1833, 1.442695
        %v1948 = vpow.pop %v1947
        %v1949 = vmul.f32 %v1834, 1.442695
        %v1950 = vpow.pop %v1949
        %v1951 = vmul.f32 %v1835, 1.442695
        %v1952 = vpow.pop %v1951
        %v1953 = vmul.f32 %v1836, 1.442695
        %v1954 = vpow.pop %v1953
        %v1955 = vmul.f32 %v1837, 1.442695
        %v1956 = vpow.pop %v1955
        %v1957 = vmul.f32 %v1838, 1.442695
        %v1958 = vpow.pop %v1957
        %v1959 = vmul.f32 %v1839, 1.442695
        %v1960 = vpow.pop %v1959
        %v1961 = vmul.f32 %v1840, 1.442695
        %v1962 = vpow.pop %v1961
        %v1963 = vmul.f32 %v1841, 1.442695
        %v1964 = vpow.pop %v1963
        %v1965 = vmul.f32 %v1842, 1.442695
        %v1966 = vpow.pop %v1965
        %v1967 = vmul.f32 %v1843, 1.442695
        %v1968 = vpow.pop %v1967
        %v1969 = vmul.f32 %v1844, 1.442695
        %v1970 = vpow.pop %v1969
        %v1971 = vmul.f32 %v1845, 1.442695
        %v1972 = vpow.pop %v1971
        %v1973 = vmul.f32 %v1846, 1.442695
        %v1974 = vpow.pop %v1973
        %1975 = vmatprep.subr.mxu0 %v1850
        %1976 = vmatpush1.xpose.msra.mxu0 %v1848
        %1977 = vmatprep.subr.mxu0 %v1854
        %1978 = vmatpush1.xpose.msra.mxu0 %v1852
        %1979 = vmatprep.subr.mxu0 %v1858
        %1980 = vmatpush1.xpose.msra.mxu0 %v1856
        %1981 = vmatprep.subr.mxu0 %v1862
        %1982 = vmatpush1.xpose.msra.mxu0 %v1860
        %1983 = vmatprep.subr.mxu0 %v1866
        %1984 = vmatpush1.xpose.msra.mxu0 %v1864
        %1985 = vmatprep.subr.mxu0 %v1870
        %1986 = vmatpush1.xpose.msra.mxu0 %v1868
        %1987 = vmatprep.subr.mxu0 %v1874
        %1988 = vmatpush1.xpose.msra.mxu0 %v1872
        %1989 = vmatprep.subr.mxu0 %v1878
        %1990 = vmatpush1.xpose.msra.mxu0 %v1876
        %1991 = vmatprep.subr.mxu0 %v1882
        %1992 = vmatpush1.xpose.msra.mxu0 %v1880
        %1993 = vmatprep.subr.mxu0 %v1886
        %1994 = vmatpush1.xpose.msra.mxu0 %v1884
        %1995 = vmatprep.subr.mxu0 %v1890
        %1996 = vmatpush1.xpose.msra.mxu0 %v1888
        %1997 = vmatprep.subr.mxu0 %v1894
        %1998 = vmatpush1.xpose.msra.mxu0 %v1892
        %1999 = vmatprep.subr.mxu0 %v1898
        %2000 = vmatpush1.xpose.msra.mxu0 %v1896
        %2001 = vmatprep.subr.mxu0 %v1902
        %2002 = vmatpush1.xpose.msra.mxu0 %v1900
        %2003 = vmatprep.subr.mxu0 %v1906
        %2004 = vmatpush1.xpose.msra.mxu0 %v1904
        %2005 = vmatprep.subr.mxu0 %v1910
        %2006 = vmatpush1.xpose.msra.mxu0 %v1908
        %2007 = vmatprep.subr.mxu0 %v1914
        %2008 = vmatpush1.xpose.msra.mxu0 %v1912
        %2009 = vmatprep.subr.mxu0 %v1918
        %2010 = vmatpush1.xpose.msra.mxu0 %v1916
        %2011 = vmatprep.subr.mxu0 %v1922
        %2012 = vmatpush1.xpose.msra.mxu0 %v1920
        %2013 = vmatprep.subr.mxu0 %v1926
        %2014 = vmatpush1.xpose.msra.mxu0 %v1924
        %2015 = vmatprep.subr.mxu0 %v1930
        %2016 = vmatpush1.xpose.msra.mxu0 %v1928
        %2017 = vmatprep.subr.mxu0 %v1934
        %2018 = vmatpush1.xpose.msra.mxu0 %v1932
        %2019 = vmatprep.subr.mxu0 %v1938
        %2020 = vmatpush1.xpose.msra.mxu0 %v1936
        %2021 = vmatprep.subr.mxu0 %v1942
        %2022 = vmatpush1.xpose.msra.mxu0 %v1940
        %2023 = vmatprep.subr.mxu0 %v1946
        %2024 = vmatpush1.xpose.msra.mxu0 %v1944
        %2025 = vmatprep.subr.mxu0 %v1950
        %2026 = vmatpush1.xpose.msra.mxu0 %v1948
        %2027 = vmatprep.subr.mxu0 %v1954
        %2028 = vmatpush1.xpose.msra.mxu0 %v1952
        %2029 = vmatprep.subr.mxu0 %v1958
        %2030 = vmatpush1.xpose.msra.mxu0 %v1956
        %2031 = vmatprep.subr.mxu0 %v1962
        %2032 = vmatpush1.xpose.msra.mxu0 %v1960
        %2033 = vmatprep.subr.mxu0 %v1966
        %2034 = vmatpush1.xpose.msra.mxu0 %v1964
        %2035 = vmatprep.subr.mxu0 %v1970
        %2036 = vmatpush1.xpose.msra.mxu0 %v1968
        %2037 = vmatprep.subr.mxu0 %v1974
        %2038 = vmatpush1.xpose.msra.mxu0 %v1972
        %2039 = vmatprep.mubr.f32.mxu0 %v1045
        %2040 = vmatmul.mubr.f32.gmra.mrb[0].mxu0 %v1043
        %v2041 = vpop.f32.mrb[0].mxu0
        %v2042 = vadd.f32 0.0, %v2041
        %v2043 = vpop.f32.mrb[0].mxu0
        %v2044 = vadd.f32 0.0, %v2043
        %2045 = vmatprep.mubr.f32.mxu0 %v1051
        %2046 = vmatmul.mubr.f32.gmra.mrb[0].mxu0 %v1049
        %v2047 = vpop.f32.mrb[0].mxu0
        %v2048 = vadd.f32 0.0, %v2047
        %v2049 = vpop.f32.mrb[0].mxu0
        %v2050 = vadd.f32 0.0, %v2049
        %2051 = vmatprep.mubr.f32.mxu0 1.0
        %2052 = vmatmul.mubr.f32.gmra.mrb[0].mxu0 1.0
        %v2053 = vpop.f32.mrb[0].mxu0
        %v2054 = vadd.f32 0.0, %v2053
        %v2055 = vpop.f32.mrb[0].mxu0
        %v2056 = vadd.f32 0.0, %v2055
        %2057 = vdwg.mxu0
        %v2058 = vrcp.pop %v2054
        %v2059 = vrcp.pop %v2056
        %v2060 = vlaneseq
        %v2061 = vshrl.u32 %v2060, 7
        %v2062 = vsub.s32 0, %v2061
        %v2063 = vrot.slane %v2058, %v2062
        %v2064 = vlaneseq
        %v2065 = vshrl.u32 %v2064, 7
        %v2066 = vsub.s32 0, %v2065
        %v2067 = vrot.slane %v2059, %v2066
        %v2068 = vmul.f32 %v2042, %v2063
        %v2069 = vmul.f32 %v2044, %v2067
        %v2070 = vmul.f32 %v2048, %v2063
        %v2071 = vmul.f32 %v2050, %v2067
        %v2072 = vmax.f32 %v1497, %v1499
        %2073 = vmax.xlane.f32.xlu0 %v2072
        %v2074 = vpop.xlane.xlu0 %2073
        %v2075 = vmax.f32 %v1503, %v1505
        %2076 = vmax.xlane.f32.xlu0 %v2075
        %v2077 = vpop.xlane.xlu0 %2076
        %v2078 = vmax.f32 %v1509, %v1511
        %2079 = vmax.xlane.f32.xlu0 %v2078
        %v2080 = vpop.xlane.xlu0 %2079
        %v2081 = vmax.f32 %v1515, %v1517
        %2082 = vmax.xlane.f32.xlu0 %v2081
        %v2083 = vpop.xlane.xlu0 %2082
        %v2084 = vmax.f32 %v1521, %v1523
        %2085 = vmax.xlane.f32.xlu0 %v2084
        %v2086 = vpop.xlane.xlu0 %2085
        %v2087 = vmax.f32 %v1527, %v1529
        %2088 = vmax.xlane.f32.xlu0 %v2087
        %v2089 = vpop.xlane.xlu0 %2088
        %v2090 = vmax.f32 %v1533, %v1535
        %2091 = vmax.xlane.f32.xlu0 %v2090
        %v2092 = vpop.xlane.xlu0 %2091
        %v2093 = vmax.f32 %v1539, %v1541
        %2094 = vmax.xlane.f32.xlu0 %v2093
        %v2095 = vpop.xlane.xlu0 %2094
        %v2096 = vmax.f32 %v1545, %v1547
        %2097 = vmax.xlane.f32.xlu0 %v2096
        %v2098 = vpop.xlane.xlu0 %2097
        %v2099 = vmax.f32 %v1551, %v1553
        %2100 = vmax.xlane.f32.xlu0 %v2099
        %v2101 = vpop.xlane.xlu0 %2100
        %v2102 = vmax.f32 %v1557, %v1559
        %2103 = vmax.xlane.f32.xlu0 %v2102
        %v2104 = vpop.xlane.xlu0 %2103
        %v2105 = vmax.f32 %v1563, %v1565
        %2106 = vmax.xlane.f32.xlu0 %v2105
        %v2107 = vpop.xlane.xlu0 %2106
        %v2108 = vmax.f32 %v1569, %v1571
        %2109 = vmax.xlane.f32.xlu0 %v2108
        %v2110 = vpop.xlane.xlu0 %2109
        %v2111 = vmax.f32 %v1575, %v1577
        %2112 = vmax.xlane.f32.xlu0 %v2111
        %v2113 = vpop.xlane.xlu0 %2112
        %v2114 = vmax.f32 %v1581, %v1583
        %2115 = vmax.xlane.f32.xlu0 %v2114
        %v2116 = vpop.xlane.xlu0 %2115
        %v2117 = vmax.f32 %v1587, %v1589
        %2118 = vmax.xlane.f32.xlu0 %v2117
        %v2119 = vpop.xlane.xlu0 %2118
        %v2120 = vmax.f32 %v1593, %v1595
        %2121 = vmax.xlane.f32.xlu0 %v2120
        %v2122 = vpop.xlane.xlu0 %2121
        %v2123 = vmax.f32 %v1599, %v1601
        %2124 = vmax.xlane.f32.xlu0 %v2123
        %v2125 = vpop.xlane.xlu0 %2124
        %v2126 = vmax.f32 %v1605, %v1607
        %2127 = vmax.xlane.f32.xlu0 %v2126
        %v2128 = vpop.xlane.xlu0 %2127
        %v2129 = vmax.f32 %v1611, %v1613
        %2130 = vmax.xlane.f32.xlu0 %v2129
        %v2131 = vpop.xlane.xlu0 %2130
        %v2132 = vmax.f32 %v1617, %v1619
        %2133 = vmax.xlane.f32.xlu0 %v2132
        %v2134 = vpop.xlane.xlu0 %2133
        %v2135 = vmax.f32 %v1623, %v1625
        %2136 = vmax.xlane.f32.xlu0 %v2135
        %v2137 = vpop.xlane.xlu0 %2136
        %v2138 = vmax.f32 %v1629, %v1631
        %2139 = vmax.xlane.f32.xlu0 %v2138
        %v2140 = vpop.xlane.xlu0 %2139
        %v2141 = vmax.f32 %v1635, %v1637
        %2142 = vmax.xlane.f32.xlu0 %v2141
        %v2143 = vpop.xlane.xlu0 %2142
        %v2144 = vmax.f32 %v1641, %v1643
        %2145 = vmax.xlane.f32.xlu0 %v2144
        %v2146 = vpop.xlane.xlu0 %2145
        %v2147 = vmax.f32 %v1647, %v1649
        %2148 = vmax.xlane.f32.xlu0 %v2147
        %v2149 = vpop.xlane.xlu0 %2148
        %v2150 = vmax.f32 %v1653, %v1655
        %2151 = vmax.xlane.f32.xlu0 %v2150
        %v2152 = vpop.xlane.xlu0 %2151
        %v2153 = vmax.f32 %v1659, %v1661
        %2154 = vmax.xlane.f32.xlu0 %v2153
        %v2155 = vpop.xlane.xlu0 %2154
        %v2156 = vmax.f32 %v1665, %v1667
        %2157 = vmax.xlane.f32.xlu0 %v2156
        %v2158 = vpop.xlane.xlu0 %2157
        %v2159 = vmax.f32 %v1671, %v1673
        %2160 = vmax.xlane.f32.xlu0 %v2159
        %v2161 = vpop.xlane.xlu0 %2160
        %v2162 = vmax.f32 %v1677, %v1679
        %2163 = vmax.xlane.f32.xlu0 %v2162
        %v2164 = vpop.xlane.xlu0 %2163
        %v2165 = vmax.f32 %v1683, %v1685
        %2166 = vmax.xlane.f32.xlu0 %v2165
        %v2167 = vpop.xlane.xlu0 %2166
        %v2168 = vsub.f32 %v1497, %v2074
        %v2169 = vsub.f32 %v1499, %v2074
        %v2170 = vsub.f32 %v1503, %v2077
        %v2171 = vsub.f32 %v1505, %v2077
        %v2172 = vsub.f32 %v1509, %v2080
        %v2173 = vsub.f32 %v1511, %v2080
        %v2174 = vsub.f32 %v1515, %v2083
        %v2175 = vsub.f32 %v1517, %v2083
        %v2176 = vsub.f32 %v1521, %v2086
        %v2177 = vsub.f32 %v1523, %v2086
        %v2178 = vsub.f32 %v1527, %v2089
        %v2179 = vsub.f32 %v1529, %v2089
        %v2180 = vsub.f32 %v1533, %v2092
        %v2181 = vsub.f32 %v1535, %v2092
        %v2182 = vsub.f32 %v1539, %v2095
        %v2183 = vsub.f32 %v1541, %v2095
        %v2184 = vsub.f32 %v1545, %v2098
        %v2185 = vsub.f32 %v1547, %v2098
        %v2186 = vsub.f32 %v1551, %v2101
        %v2187 = vsub.f32 %v1553, %v2101
        %v2188 = vsub.f32 %v1557, %v2104
        %v2189 = vsub.f32 %v1559, %v2104
        %v2190 = vsub.f32 %v1563, %v2107
        %v2191 = vsub.f32 %v1565, %v2107
        %v2192 = vsub.f32 %v1569, %v2110
        %v2193 = vsub.f32 %v1571, %v2110
        %v2194 = vsub.f32 %v1575, %v2113
        %v2195 = vsub.f32 %v1577, %v2113
        %v2196 = vsub.f32 %v1581, %v2116
        %v2197 = vsub.f32 %v1583, %v2116
        %v2198 = vsub.f32 %v1587, %v2119
        %v2199 = vsub.f32 %v1589, %v2119
        %v2200 = vsub.f32 %v1593, %v2122
        %v2201 = vsub.f32 %v1595, %v2122
        %v2202 = vsub.f32 %v1599, %v2125
        %v2203 = vsub.f32 %v1601, %v2125
        %v2204 = vsub.f32 %v1605, %v2128
        %v2205 = vsub.f32 %v1607, %v2128
        %v2206 = vsub.f32 %v1611, %v2131
        %v2207 = vsub.f32 %v1613, %v2131
        %v2208 = vsub.f32 %v1617, %v2134
        %v2209 = vsub.f32 %v1619, %v2134
        %v2210 = vsub.f32 %v1623, %v2137
        %v2211 = vsub.f32 %v1625, %v2137
        %v2212 = vsub.f32 %v1629, %v2140
        %v2213 = vsub.f32 %v1631, %v2140
        %v2214 = vsub.f32 %v1635, %v2143
        %v2215 = vsub.f32 %v1637, %v2143
        %v2216 = vsub.f32 %v1641, %v2146
        %v2217 = vsub.f32 %v1643, %v2146
        %v2218 = vsub.f32 %v1647, %v2149
        %v2219 = vsub.f32 %v1649, %v2149
        %v2220 = vsub.f32 %v1653, %v2152
        %v2221 = vsub.f32 %v1655, %v2152
        %v2222 = vsub.f32 %v1659, %v2155
        %v2223 = vsub.f32 %v1661, %v2155
        %v2224 = vsub.f32 %v1665, %v2158
        %v2225 = vsub.f32 %v1667, %v2158
        %v2226 = vsub.f32 %v1671, %v2161
        %v2227 = vsub.f32 %v1673, %v2161
        %v2228 = vsub.f32 %v1677, %v2164
        %v2229 = vsub.f32 %v1679, %v2164
        %v2230 = vsub.f32 %v1683, %v2167
        %v2231 = vsub.f32 %v1685, %v2167
        %v2232 = vmul.f32 %v2168, 1.442695
        %v2233 = vpow.pop %v2232
        %v2234 = vmul.f32 %v2169, 1.442695
        %v2235 = vpow.pop %v2234
        %v2236 = vmul.f32 %v2170, 1.442695
        %v2237 = vpow.pop %v2236
        %v2238 = vmul.f32 %v2171, 1.442695
        %v2239 = vpow.pop %v2238
        %v2240 = vmul.f32 %v2172, 1.442695
        %v2241 = vpow.pop %v2240
        %v2242 = vmul.f32 %v2173, 1.442695
        %v2243 = vpow.pop %v2242
        %v2244 = vmul.f32 %v2174, 1.442695
        %v2245 = vpow.pop %v2244
        %v2246 = vmul.f32 %v2175, 1.442695
        %v2247 = vpow.pop %v2246
        %v2248 = vmul.f32 %v2176, 1.442695
        %v2249 = vpow.pop %v2248
        %v2250 = vmul.f32 %v2177, 1.442695
        %v2251 = vpow.pop %v2250
        %v2252 = vmul.f32 %v2178, 1.442695
        %v2253 = vpow.pop %v2252
        %v2254 = vmul.f32 %v2179, 1.442695
        %v2255 = vpow.pop %v2254
        %v2256 = vmul.f32 %v2180, 1.442695
        %v2257 = vpow.pop %v2256
        %v2258 = vmul.f32 %v2181, 1.442695
        %v2259 = vpow.pop %v2258
        %v2260 = vmul.f32 %v2182, 1.442695
        %v2261 = vpow.pop %v2260
        %v2262 = vmul.f32 %v2183, 1.442695
        %v2263 = vpow.pop %v2262
        %v2264 = vmul.f32 %v2184, 1.442695
        %v2265 = vpow.pop %v2264
        %v2266 = vmul.f32 %v2185, 1.442695
        %v2267 = vpow.pop %v2266
        %v2268 = vmul.f32 %v2186, 1.442695
        %v2269 = vpow.pop %v2268
        %v2270 = vmul.f32 %v2187, 1.442695
        %v2271 = vpow.pop %v2270
        %v2272 = vmul.f32 %v2188, 1.442695
        %v2273 = vpow.pop %v2272
        %v2274 = vmul.f32 %v2189, 1.442695
        %v2275 = vpow.pop %v2274
        %v2276 = vmul.f32 %v2190, 1.442695
        %v2277 = vpow.pop %v2276
        %v2278 = vmul.f32 %v2191, 1.442695
        %v2279 = vpow.pop %v2278
        %v2280 = vmul.f32 %v2192, 1.442695
        %v2281 = vpow.pop %v2280
        %v2282 = vmul.f32 %v2193, 1.442695
        %v2283 = vpow.pop %v2282
        %v2284 = vmul.f32 %v2194, 1.442695
        %v2285 = vpow.pop %v2284
        %v2286 = vmul.f32 %v2195, 1.442695
        %v2287 = vpow.pop %v2286
        %v2288 = vmul.f32 %v2196, 1.442695
        %v2289 = vpow.pop %v2288
        %v2290 = vmul.f32 %v2197, 1.442695
        %v2291 = vpow.pop %v2290
        %v2292 = vmul.f32 %v2198, 1.442695
        %v2293 = vpow.pop %v2292
        %v2294 = vmul.f32 %v2199, 1.442695
        %v2295 = vpow.pop %v2294
        %v2296 = vmul.f32 %v2200, 1.442695
        %v2297 = vpow.pop %v2296
        %v2298 = vmul.f32 %v2201, 1.442695
        %v2299 = vpow.pop %v2298
        %v2300 = vmul.f32 %v2202, 1.442695
        %v2301 = vpow.pop %v2300
        %v2302 = vmul.f32 %v2203, 1.442695
        %v2303 = vpow.pop %v2302
        %v2304 = vmul.f32 %v2204, 1.442695
        %v2305 = vpow.pop %v2304
        %v2306 = vmul.f32 %v2205, 1.442695
        %v2307 = vpow.pop %v2306
        %v2308 = vmul.f32 %v2206, 1.442695
        %v2309 = vpow.pop %v2308
        %v2310 = vmul.f32 %v2207, 1.442695
        %v2311 = vpow.pop %v2310
        %v2312 = vmul.f32 %v2208, 1.442695
        %v2313 = vpow.pop %v2312
        %v2314 = vmul.f32 %v2209, 1.442695
        %v2315 = vpow.pop %v2314
        %v2316 = vmul.f32 %v2210, 1.442695
        %v2317 = vpow.pop %v2316
        %v2318 = vmul.f32 %v2211, 1.442695
        %v2319 = vpow.pop %v2318
        %v2320 = vmul.f32 %v2212, 1.442695
        %v2321 = vpow.pop %v2320
        %v2322 = vmul.f32 %v2213, 1.442695
        %v2323 = vpow.pop %v2322
        %v2324 = vmul.f32 %v2214, 1.442695
        %v2325 = vpow.pop %v2324
        %v2326 = vmul.f32 %v2215, 1.442695
        %v2327 = vpow.pop %v2326
        %v2328 = vmul.f32 %v2216, 1.442695
        %v2329 = vpow.pop %v2328
        %v2330 = vmul.f32 %v2217, 1.442695
        %v2331 = vpow.pop %v2330
        %v2332 = vmul.f32 %v2218, 1.442695
        %v2333 = vpow.pop %v2332
        %v2334 = vmul.f32 %v2219, 1.442695
        %v2335 = vpow.pop %v2334
        %v2336 = vmul.f32 %v2220, 1.442695
        %v2337 = vpow.pop %v2336
        %v2338 = vmul.f32 %v2221, 1.442695
        %v2339 = vpow.pop %v2338
        %v2340 = vmul.f32 %v2222, 1.442695
        %v2341 = vpow.pop %v2340
        %v2342 = vmul.f32 %v2223, 1.442695
        %v2343 = vpow.pop %v2342
        %v2344 = vmul.f32 %v2224, 1.442695
        %v2345 = vpow.pop %v2344
        %v2346 = vmul.f32 %v2225, 1.442695
        %v2347 = vpow.pop %v2346
        %v2348 = vmul.f32 %v2226, 1.442695
        %v2349 = vpow.pop %v2348
        %v2350 = vmul.f32 %v2227, 1.442695
        %v2351 = vpow.pop %v2350
        %v2352 = vmul.f32 %v2228, 1.442695
        %v2353 = vpow.pop %v2352
        %v2354 = vmul.f32 %v2229, 1.442695
        %v2355 = vpow.pop %v2354
        %v2356 = vmul.f32 %v2230, 1.442695
        %v2357 = vpow.pop %v2356
        %v2358 = vmul.f32 %v2231, 1.442695
        %v2359 = vpow.pop %v2358
        %2360 = vmatprep.subr.mxu0 %v2235
        %2361 = vmatpush1.xpose.msra.mxu0 %v2233
        %2362 = vmatprep.subr.mxu0 %v2239
        %2363 = vmatpush1.xpose.msra.mxu0 %v2237
        %2364 = vmatprep.subr.mxu0 %v2243
        %2365 = vmatpush1.xpose.msra.mxu0 %v2241
        %2366 = vmatprep.subr.mxu0 %v2247
        %2367 = vmatpush1.xpose.msra.mxu0 %v2245
        %2368 = vmatprep.subr.mxu0 %v2251
        %2369 = vmatpush1.xpose.msra.mxu0 %v2249
        %2370 = vmatprep.subr.mxu0 %v2255
        %2371 = vmatpush1.xpose.msra.mxu0 %v2253
        %2372 = vmatprep.subr.mxu0 %v2259
        %2373 = vmatpush1.xpose.msra.mxu0 %v2257
        %2374 = vmatprep.subr.mxu0 %v2263
        %2375 = vmatpush1.xpose.msra.mxu0 %v2261
        %2376 = vmatprep.subr.mxu0 %v2267
        %2377 = vmatpush1.xpose.msra.mxu0 %v2265
        %2378 = vmatprep.subr.mxu0 %v2271
        %2379 = vmatpush1.xpose.msra.mxu0 %v2269
        %2380 = vmatprep.subr.mxu0 %v2275
        %2381 = vmatpush1.xpose.msra.mxu0 %v2273
        %2382 = vmatprep.subr.mxu0 %v2279
        %2383 = vmatpush1.xpose.msra.mxu0 %v2277
        %2384 = vmatprep.subr.mxu0 %v2283
        %2385 = vmatpush1.xpose.msra.mxu0 %v2281
        %2386 = vmatprep.subr.mxu0 %v2287
        %2387 = vmatpush1.xpose.msra.mxu0 %v2285
        %2388 = vmatprep.subr.mxu0 %v2291
        %2389 = vmatpush1.xpose.msra.mxu0 %v2289
        %2390 = vmatprep.subr.mxu0 %v2295
        %2391 = vmatpush1.xpose.msra.mxu0 %v2293
        %2392 = vmatprep.subr.mxu0 %v2299
        %2393 = vmatpush1.xpose.msra.mxu0 %v2297
        %2394 = vmatprep.subr.mxu0 %v2303
        %2395 = vmatpush1.xpose.msra.mxu0 %v2301
        %2396 = vmatprep.subr.mxu0 %v2307
        %2397 = vmatpush1.xpose.msra.mxu0 %v2305
        %2398 = vmatprep.subr.mxu0 %v2311
        %2399 = vmatpush1.xpose.msra.mxu0 %v2309
        %2400 = vmatprep.subr.mxu0 %v2315
        %2401 = vmatpush1.xpose.msra.mxu0 %v2313
        %2402 = vmatprep.subr.mxu0 %v2319
        %2403 = vmatpush1.xpose.msra.mxu0 %v2317
        %2404 = vmatprep.subr.mxu0 %v2323
        %2405 = vmatpush1.xpose.msra.mxu0 %v2321
        %2406 = vmatprep.subr.mxu0 %v2327
        %2407 = vmatpush1.xpose.msra.mxu0 %v2325
        %2408 = vmatprep.subr.mxu0 %v2331
        %2409 = vmatpush1.xpose.msra.mxu0 %v2329
        %2410 = vmatprep.subr.mxu0 %v2335
        %2411 = vmatpush1.xpose.msra.mxu0 %v2333
        %2412 = vmatprep.subr.mxu0 %v2339
        %2413 = vmatpush1.xpose.msra.mxu0 %v2337
        %2414 = vmatprep.subr.mxu0 %v2343
        %2415 = vmatpush1.xpose.msra.mxu0 %v2341
        %2416 = vmatprep.subr.mxu0 %v2347
        %2417 = vmatpush1.xpose.msra.mxu0 %v2345
        %2418 = vmatprep.subr.mxu0 %v2351
        %2419 = vmatpush1.xpose.msra.mxu0 %v2349
        %2420 = vmatprep.subr.mxu0 %v2355
        %2421 = vmatpush1.xpose.msra.mxu0 %v2353
        %2422 = vmatprep.subr.mxu0 %v2359
        %2423 = vmatpush1.xpose.msra.mxu0 %v2357
        %2424 = vmatprep.mubr.f32.mxu0 %v1069
        %2425 = vmatmul.mubr.f32.gmra.mrb[0].mxu0 %v1067
        %v2426 = vpop.f32.mrb[0].mxu0
        %v2427 = vadd.f32 0.0, %v2426
        %v2428 = vpop.f32.mrb[0].mxu0
        %v2429 = vadd.f32 0.0, %v2428
        %2430 = vmatprep.mubr.f32.mxu0 %v1075
        %2431 = vmatmul.mubr.f32.gmra.mrb[0].mxu0 %v1073
        %v2432 = vpop.f32.mrb[0].mxu0
        %v2433 = vadd.f32 0.0, %v2432
        %v2434 = vpop.f32.mrb[0].mxu0
        %v2435 = vadd.f32 0.0, %v2434
        %2436 = vmatprep.mubr.f32.mxu0 1.0
        %2437 = vmatmul.mubr.f32.gmra.mrb[0].mxu0 1.0
        %v2438 = vpop.f32.mrb[0].mxu0
        %v2439 = vadd.f32 0.0, %v2438
        %v2440 = vpop.f32.mrb[0].mxu0
        %v2441 = vadd.f32 0.0, %v2440
        %2442 = vdwg.mxu0
        %v2443 = vrcp.pop %v2439
        %v2444 = vrcp.pop %v2441
        %v2445 = vlaneseq
        %v2446 = vshrl.u32 %v2445, 7
        %v2447 = vsub.s32 0, %v2446
        %v2448 = vrot.slane %v2443, %v2447
        %v2449 = vlaneseq
        %v2450 = vshrl.u32 %v2449, 7
        %v2451 = vsub.s32 0, %v2450
        %v2452 = vrot.slane %v2444, %v2451
        %v2453 = vmul.f32 %v2427, %v2448
        %v2454 = vmul.f32 %v2429, %v2452
        %v2455 = vmul.f32 %v2433, %v2448
        %v2456 = vmul.f32 %v2435, %v2452
        %v2457 = vld [vmem:[%s7] sm:$0xff]
        %v2458 = vld [vmem:[%s7 + $0x8] sm:$0xff]
        %v2459 = vld [vmem:[%s8] sm:$0xff]
        %v2460 = vld [vmem:[%s8 + $0x8] sm:$0xff]
        %v2462 = vsel %vm939, %v2459, 0
        %v2465 = vsel %vm939, %v2460, 0
        %2467 = vmatprep.subr.mxu0 %v2454
        %2468 = vmatpush1.msra.mxu0 %v2453
        %2469 = vmatprep.subr.mxu0 %v2456
        %2470 = vmatpush1.msra.mxu0 %v2455
        %2471 = vmatprep.subr.mxu0 0.0
        %2472 = vmatpush1.msra.mxu0 0.0
        %2473 = vmatprep.subr.mxu0 0.0
        %2474 = vmatpush1.msra.mxu0 0.0
        %2475 = vmatprep.subr.mxu0 0.0
        %2476 = vmatpush1.msra.mxu0 0.0
        %2477 = vmatprep.subr.mxu0 0.0
        %2478 = vmatpush1.msra.mxu0 0.0
        %2479 = vmatprep.subr.mxu0 0.0
        %2480 = vmatpush1.msra.mxu0 0.0
        %2481 = vmatprep.subr.mxu0 0.0
        %2482 = vmatpush1.msra.mxu0 0.0
        %2483 = vmatprep.subr.mxu0 0.0
        %2484 = vmatpush1.msra.mxu0 0.0
        %2485 = vmatprep.subr.mxu0 0.0
        %2486 = vmatpush1.msra.mxu0 0.0
        %2487 = vmatprep.subr.mxu0 0.0
        %2488 = vmatpush1.msra.mxu0 0.0
        %2489 = vmatprep.subr.mxu0 0.0
        %2490 = vmatpush1.msra.mxu0 0.0
        %2491 = vmatprep.subr.mxu0 0.0
        %2492 = vmatpush1.msra.mxu0 0.0
        %2493 = vmatprep.subr.mxu0 0.0
        %2494 = vmatpush1.msra.mxu0 0.0
        %2495 = vmatprep.subr.mxu0 0.0
        %2496 = vmatpush1.msra.mxu0 0.0
        %2497 = vmatprep.subr.mxu0 0.0
        %2498 = vmatpush1.msra.mxu0 0.0
        %2499 = vmatprep.subr.mxu0 0.0
        %2500 = vmatpush1.msra.mxu0 0.0
        %2501 = vmatprep.subr.mxu0 0.0
        %2502 = vmatpush1.msra.mxu0 0.0
        %2503 = vmatprep.subr.mxu0 0.0
        %2504 = vmatpush1.msra.mxu0 0.0
        %2505 = vmatprep.subr.mxu0 0.0
        %2506 = vmatpush1.msra.mxu0 0.0
        %2507 = vmatprep.subr.mxu0 0.0
        %2508 = vmatpush1.msra.mxu0 0.0
        %2509 = vmatprep.subr.mxu0 0.0
        %2510 = vmatpush1.msra.mxu0 0.0
        %2511 = vmatprep.subr.mxu0 0.0
        %2512 = vmatpush1.msra.mxu0 0.0
        %2513 = vmatprep.subr.mxu0 0.0
        %2514 = vmatpush1.msra.mxu0 0.0
        %2515 = vmatprep.subr.mxu0 0.0
        %2516 = vmatpush1.msra.mxu0 0.0
        %2517 = vmatprep.subr.mxu0 0.0
        %2518 = vmatpush1.msra.mxu0 0.0
        %2519 = vmatprep.subr.mxu0 0.0
        %2520 = vmatpush1.msra.mxu0 0.0
        %2521 = vmatprep.subr.mxu0 0.0
        %2522 = vmatpush1.msra.mxu0 0.0
        %2523 = vmatprep.subr.mxu0 0.0
        %2524 = vmatpush1.msra.mxu0 0.0
        %2525 = vmatprep.subr.mxu0 0.0
        %2526 = vmatpush1.msra.mxu0 0.0
        %2527 = vmatprep.subr.mxu0 0.0
        %2528 = vmatpush1.msra.mxu0 0.0
        %2529 = vmatprep.subr.mxu0 0.0
        %2530 = vmatpush1.msra.mxu0 0.0
        %2531 = vmatprep.mubr.f32.mxu0 0.0
        %2532 = vmatmul.mubr.f32.gmra.mrb[0].mxu0 %v2462
        %v2533 = vpop.f32.mrb[0].mxu0
        %v2534 = vadd.f32 0.0, %v2533
        %v2535 = vpop.f32.mrb[0].mxu0
        %v2536 = vadd.f32 0.0, %v2535
        %2537 = vmatprep.mubr.f32.mxu0 0.0
        %2538 = vmatmul.mubr.f32.gmra.mrb[0].mxu0 %v2465
        %v2539 = vpop.f32.mrb[0].mxu0
        %v2540 = vadd.f32 0.0, %v2539
        %v2541 = vpop.f32.mrb[0].mxu0
        %v2542 = vadd.f32 0.0, %v2541
        %2543 = vdwg.mxu0
        %v2545 = vsel %vm939, %v2457, 0
        %v2548 = vsel %vm939, %v2458, 0
        %2550 = vmatprep.subr.mxu0 %v2069
        %2551 = vmatpush1.msra.mxu0 %v2068
        %2552 = vmatprep.subr.mxu0 %v2071
        %2553 = vmatpush1.msra.mxu0 %v2070
        %2554 = vmatprep.subr.mxu0 0.0
        %2555 = vmatpush1.msra.mxu0 0.0
        %2556 = vmatprep.subr.mxu0 0.0
        %2557 = vmatpush1.msra.mxu0 0.0
        %2558 = vmatprep.subr.mxu0 0.0
        %2559 = vmatpush1.msra.mxu0 0.0
        %2560 = vmatprep.subr.mxu0 0.0
        %2561 = vmatpush1.msra.mxu0 0.0
        %2562 = vmatprep.subr.mxu0 0.0
        %2563 = vmatpush1.msra.mxu0 0.0
        %2564 = vmatprep.subr.mxu0 0.0
        %2565 = vmatpush1.msra.mxu0 0.0
        %2566 = vmatprep.subr.mxu0 0.0
        %2567 = vmatpush1.msra.mxu0 0.0
        %2568 = vmatprep.subr.mxu0 0.0
        %2569 = vmatpush1.msra.mxu0 0.0
        %2570 = vmatprep.subr.mxu0 0.0
        %2571 = vmatpush1.msra.mxu0 0.0
        %2572 = vmatprep.subr.mxu0 0.0
        %2573 = vmatpush1.msra.mxu0 0.0
        %2574 = vmatprep.subr.mxu0 0.0
        %2575 = vmatpush1.msra.mxu0 0.0
        %2576 = vmatprep.subr.mxu0 0.0
        %2577 = vmatpush1.msra.mxu0 0.0
        %2578 = vmatprep.subr.mxu0 0.0
        %2579 = vmatpush1.msra.mxu0 0.0
        %2580 = vmatprep.subr.mxu0 0.0
        %2581 = vmatpush1.msra.mxu0 0.0
        %2582 = vmatprep.subr.mxu0 0.0
        %2583 = vmatpush1.msra.mxu0 0.0
        %2584 = vmatprep.subr.mxu0 0.0
        %2585 = vmatpush1.msra.mxu0 0.0
        %2586 = vmatprep.subr.mxu0 0.0
        %2587 = vmatpush1.msra.mxu0 0.0
        %2588 = vmatprep.subr.mxu0 0.0
        %2589 = vmatpush1.msra.mxu0 0.0
        %2590 = vmatprep.subr.mxu0 0.0
        %2591 = vmatpush1.msra.mxu0 0.0
        %2592 = vmatprep.subr.mxu0 0.0
        %2593 = vmatpush1.msra.mxu0 0.0
        %2594 = vmatprep.subr.mxu0 0.0
        %2595 = vmatpush1.msra.mxu0 0.0
        %2596 = vmatprep.subr.mxu0 0.0
        %2597 = vmatpush1.msra.mxu0 0.0
        %2598 = vmatprep.subr.mxu0 0.0
        %2599 = vmatpush1.msra.mxu0 0.0
        %2600 = vmatprep.subr.mxu0 0.0
        %2601 = vmatpush1.msra.mxu0 0.0
        %2602 = vmatprep.subr.mxu0 0.0
        %2603 = vmatpush1.msra.mxu0 0.0
        %2604 = vmatprep.subr.mxu0 0.0
        %2605 = vmatpush1.msra.mxu0 0.0
        %2606 = vmatprep.subr.mxu0 0.0
        %2607 = vmatpush1.msra.mxu0 0.0
        %2608 = vmatprep.subr.mxu0 0.0
        %2609 = vmatpush1.msra.mxu0 0.0
        %2610 = vmatprep.subr.mxu0 0.0
        %2611 = vmatpush1.msra.mxu0 0.0
        %2612 = vmatprep.subr.mxu0 0.0
        %2613 = vmatpush1.msra.mxu0 0.0
        %2614 = vmatprep.mubr.f32.mxu0 0.0
        %2615 = vmatmul.mubr.f32.gmra.mrb[0].mxu0 %v2545
        %v2616 = vpop.f32.mrb[0].mxu0
        %v2617 = vadd.f32 %v2534, %v2616
        %v2618 = vpop.f32.mrb[0].mxu0
        %v2619 = vadd.f32 %v2536, %v2618
        %2620 = vmatprep.mubr.f32.mxu0 0.0
        %2621 = vmatmul.mubr.f32.gmra.mrb[0].mxu0 %v2548
        %v2622 = vpop.f32.mrb[0].mxu0
        %v2623 = vadd.f32 %v2540, %v2622
        %v2624 = vpop.f32.mrb[0].mxu0
        %v2625 = vadd.f32 %v2542, %v2624
        %2626 = vdwg.mxu0
        %v2627 = vld [vmem:[%s9] sm:$0xff]
        %v2628 = vld [vmem:[%s9 + $0x8] sm:$0xff]
        %2630 = vset.pattern.permute.xlu0 0
        %2631 = vperm.xlu0 %2630, %v2627
        %v2632 = vpop.permute.xlu0 %2631
        %2635 = vset.pattern.permute.xlu0 0
        %2636 = vperm.xlu0 %2635, %v2628
        %v2637 = vpop.permute.xlu0 %2636
        %v2639 = vadd.f32 %v2617, %v2632
        %v2640 = vadd.f32 %v2619, %v2632
        %v2641 = vadd.f32 %v2623, %v2637
        %v2642 = vadd.f32 %v2625, %v2637
        %2643 = vrot.lane.b32.xlu0 %v2639, 17
        %v2644 = vpop.permute.xlu0 %2643
        %2645 = vrot.lane.b32.xlu0 %v2641, 17
        %v2646 = vpop.permute.xlu0 %2645
        %2647 = vrot.lane.b32.xlu0 %v517, 17
        %v2648 = vpop.permute.xlu0 %2647
        %2649 = vrot.lane.b32.xlu0 %v2640, 17
        %v2650 = vpop.permute.xlu0 %2649
        %2651 = vrot.lane.b32.xlu0 %v2642, 17
        %v2652 = vpop.permute.xlu0 %2651
        %2653 = vrot.lane.b32.xlu0 %v518, 17
        %v2654 = vpop.permute.xlu0 %2653
        %v2655 = vlaneseq
        %v2656 = vand.u32 %v2655, 127
        %vm2657 = vcmp.lt.s32.totalorder %v2656, 17
        %v2658 = vsel %vm2657, %v2644, %v2650
        %v2659 = vsel %vm2657, %v2646, %v2652
        %v2660 = vsel %vm2657, %v2648, %v2654
        %v2661 = vsel %vm2657, %v2650, %v2644
        %v2662 = vsel %vm2657, %v2652, %v2646
        %v2663 = vsel %vm2657, %v2654, %v2648
        %2664 = vrot.lane.b32.xlu0 %v2639, 16
        %v2665 = vpop.permute.xlu0 %2664
        %2666 = vrot.lane.b32.xlu0 %v2641, 16
        %v2667 = vpop.permute.xlu0 %2666
        %2668 = vrot.lane.b32.xlu0 %v517, 16
        %v2669 = vpop.permute.xlu0 %2668
        %2670 = vrot.lane.b32.xlu0 %v2640, 16
        %v2671 = vpop.permute.xlu0 %2670
        %2672 = vrot.lane.b32.xlu0 %v2642, 16
        %v2673 = vpop.permute.xlu0 %2672
        %2674 = vrot.lane.b32.xlu0 %v518, 16
        %v2675 = vpop.permute.xlu0 %2674
        %vm2676 = vcmp.lt.s32.totalorder %v2656, 16
        %v2677 = vsel %vm2676, %v2665, %v2671
        %v2678 = vsel %vm2676, %v2667, %v2673
        %v2679 = vsel %vm2676, %v2669, %v2675
        %v2680 = vsel %vm2676, %v2671, %v2665
        %v2681 = vsel %vm2676, %v2673, %v2667
        %v2682 = vsel %vm2676, %v2675, %v2669
        %2683 = vrot.lane.b32.xlu0 %v2639, 15
        %v2684 = vpop.permute.xlu0 %2683
        %2685 = vrot.lane.b32.xlu0 %v2641, 15
        %v2686 = vpop.permute.xlu0 %2685
        %2687 = vrot.lane.b32.xlu0 %v517, 15
        %v2688 = vpop.permute.xlu0 %2687
        %2689 = vrot.lane.b32.xlu0 %v2640, 15
        %v2690 = vpop.permute.xlu0 %2689
        %2691 = vrot.lane.b32.xlu0 %v2642, 15
        %v2692 = vpop.permute.xlu0 %2691
        %2693 = vrot.lane.b32.xlu0 %v518, 15
        %v2694 = vpop.permute.xlu0 %2693
        %vm2695 = vcmp.lt.s32.totalorder %v2656, 15
        %v2696 = vsel %vm2695, %v2684, %v2690
        %v2697 = vsel %vm2695, %v2686, %v2692
        %v2698 = vsel %vm2695, %v2688, %v2694
        %v2699 = vsel %vm2695, %v2690, %v2684
        %v2700 = vsel %vm2695, %v2692, %v2686
        %v2701 = vsel %vm2695, %v2694, %v2688
        %2702 = vrot.lane.b32.xlu0 %v2639, 1
        %v2703 = vpop.permute.xlu0 %2702
        %2704 = vrot.lane.b32.xlu0 %v2641, 1
        %v2705 = vpop.permute.xlu0 %2704
        %2706 = vrot.lane.b32.xlu0 %v517, 1
        %v2707 = vpop.permute.xlu0 %2706
        %2708 = vrot.lane.b32.xlu0 %v2640, 1
        %v2709 = vpop.permute.xlu0 %2708
        %2710 = vrot.lane.b32.xlu0 %v2642, 1
        %v2711 = vpop.permute.xlu0 %2710
        %2712 = vrot.lane.b32.xlu0 %v518, 1
        %v2713 = vpop.permute.xlu0 %2712
        %vm2714 = vcmp.lt.s32.totalorder %v2656, 1
        %v2715 = vsel %vm2714, %v2703, %v2709
        %v2716 = vsel %vm2714, %v2705, %v2711
        %v2717 = vsel %vm2714, %v2707, %v2713
        %v2718 = vsel %vm2714, %v2709, %v2703
        %v2719 = vsel %vm2714, %v2711, %v2705
        %v2720 = vsel %vm2714, %v2713, %v2707
        %2721 = vrot.lane.b32.xlu0 %v2639, 127
        %v2722 = vpop.permute.xlu0 %2721
        %2723 = vrot.lane.b32.xlu0 %v2641, 127
        %v2724 = vpop.permute.xlu0 %2723
        %2725 = vrot.lane.b32.xlu0 %v517, 127
        %v2726 = vpop.permute.xlu0 %2725
        %2727 = vrot.lane.b32.xlu0 %v2640, 127
        %v2728 = vpop.permute.xlu0 %2727
        %2729 = vrot.lane.b32.xlu0 %v2642, 127
        %v2730 = vpop.permute.xlu0 %2729
        %2731 = vrot.lane.b32.xlu0 %v518, 127
        %v2732 = vpop.permute.xlu0 %2731
        %vm2733 = vcmp.lt.s32.totalorder %v2656, 127
        %v2734 = vsel %vm2733, %v2722, %v2728
        %v2735 = vsel %vm2733, %v2724, %v2730
        %v2736 = vsel %vm2733, %v2726, %v2732
        %v2737 = vsel %vm2733, %v2728, %v2722
        %v2738 = vsel %vm2733, %v2730, %v2724
        %v2739 = vsel %vm2733, %v2732, %v2726
        %2740 = vrot.lane.b32.xlu0 %v2639, 113
        %v2741 = vpop.permute.xlu0 %2740
        %2742 = vrot.lane.b32.xlu0 %v2641, 113
        %v2743 = vpop.permute.xlu0 %2742
        %2744 = vrot.lane.b32.xlu0 %v517, 113
        %v2745 = vpop.permute.xlu0 %2744
        %2746 = vrot.lane.b32.xlu0 %v2640, 113
        %v2747 = vpop.permute.xlu0 %2746
        %2748 = vrot.lane.b32.xlu0 %v2642, 113
        %v2749 = vpop.permute.xlu0 %2748
        %2750 = vrot.lane.b32.xlu0 %v518, 113
        %v2751 = vpop.permute.xlu0 %2750
        %vm2752 = vcmp.lt.s32.totalorder %v2656, 113
        %v2753 = vsel %vm2752, %v2741, %v2747
        %v2754 = vsel %vm2752, %v2743, %v2749
        %v2755 = vsel %vm2752, %v2745, %v2751
        %v2756 = vsel %vm2752, %v2747, %v2741
        %v2757 = vsel %vm2752, %v2749, %v2743
        %v2758 = vsel %vm2752, %v2751, %v2745
        %2759 = vrot.lane.b32.xlu0 %v2639, 112
        %v2760 = vpop.permute.xlu0 %2759
        %2761 = vrot.lane.b32.xlu0 %v2641, 112
        %v2762 = vpop.permute.xlu0 %2761
        %2763 = vrot.lane.b32.xlu0 %v517, 112
        %v2764 = vpop.permute.xlu0 %2763
        %2765 = vrot.lane.b32.xlu0 %v2640, 112
        %v2766 = vpop.permute.xlu0 %2765
        %2767 = vrot.lane.b32.xlu0 %v2642, 112
        %v2768 = vpop.permute.xlu0 %2767
        %2769 = vrot.lane.b32.xlu0 %v518, 112
        %v2770 = vpop.permute.xlu0 %2769
        %vm2771 = vcmp.lt.s32.totalorder %v2656, 112
        %v2772 = vsel %vm2771, %v2760, %v2766
        %v2773 = vsel %vm2771, %v2762, %v2768
        %v2774 = vsel %vm2771, %v2764, %v2770
        %v2775 = vsel %vm2771, %v2766, %v2760
        %v2776 = vsel %vm2771, %v2768, %v2762
        %v2777 = vsel %vm2771, %v2770, %v2764
        %2778 = vrot.lane.b32.xlu0 %v2639, 111
        %v2779 = vpop.permute.xlu0 %2778
        %2780 = vrot.lane.b32.xlu0 %v2641, 111
        %v2781 = vpop.permute.xlu0 %2780
        %2782 = vrot.lane.b32.xlu0 %v517, 111
        %v2783 = vpop.permute.xlu0 %2782
        %2784 = vrot.lane.b32.xlu0 %v2640, 111
        %v2785 = vpop.permute.xlu0 %2784
        %2786 = vrot.lane.b32.xlu0 %v2642, 111
        %v2787 = vpop.permute.xlu0 %2786
        %2788 = vrot.lane.b32.xlu0 %v518, 111
        %v2789 = vpop.permute.xlu0 %2788
        %vm2790 = vcmp.lt.s32.totalorder %v2656, 111
        %v2791 = vsel %vm2790, %v2779, %v2785
        %v2792 = vsel %vm2790, %v2781, %v2787
        %v2793 = vsel %vm2790, %v2783, %v2789
        %v2794 = vsel %vm2790, %v2785, %v2779
        %v2795 = vsel %vm2790, %v2787, %v2781
        %v2796 = vsel %vm2790, %v2789, %v2783
        %v2797 = vld [vmem:[%s12] sm:$0xff]
        %v2798 = vld [vmem:[%s12 + $0x8] sm:$0xff]
        %v2799 = vld [vmem:[%s12 + $0x10] sm:$0xff]
        %v2800 = vld [vmem:[%s12 + $0x18] sm:$0xff]
        %v2801 = vld [vmem:[%s12 + $0x20] sm:$0xff]
        %v2802 = vld [vmem:[%s12 + $0x28] sm:$0xff]
        %v2803 = vld [vmem:[%s12 + $0x30] sm:$0xff]
        %v2804 = vld [vmem:[%s12 + $0x38] sm:$0xff]
        %v2805 = vld [vmem:[%s12 + $0x40] sm:$0xff]
        %v2806 = vld [vmem:[%s12 + $0x48] sm:$0xff]
        %v2807 = vld [vmem:[%s12 + $0x50] sm:$0xff]
        %v2808 = vld [vmem:[%s12 + $0x58] sm:$0xff]
        %v2809 = vld [vmem:[%s12 + $0x60] sm:$0xff]
        %v2810 = vld [vmem:[%s12 + $0x68] sm:$0xff]
        %v2811 = vld [vmem:[%s12 + $0x70] sm:$0xff]
        %v2812 = vld [vmem:[%s12 + $0x78] sm:$0xff]
        %v2813 = vld [vmem:[%s12 + $0x80] sm:$0xff]
        %v2814 = vld [vmem:[%s12 + $0x88] sm:$0xff]
        %v2815 = vld [vmem:[%s12 + $0x90] sm:$0xff]
        %v2816 = vld [vmem:[%s12 + $0x98] sm:$0xff]
        %v2817 = vld [vmem:[%s12 + $0xa0] sm:$0xff]
        %v2818 = vld [vmem:[%s12 + $0xa8] sm:$0xff]
        %v2819 = vld [vmem:[%s12 + $0xb0] sm:$0xff]
        %v2820 = vld [vmem:[%s12 + $0xb8] sm:$0xff]
        %v2821 = vld [vmem:[%s12 + $0xc0] sm:$0xff]
        %v2822 = vld [vmem:[%s12 + $0xc8] sm:$0xff]
        %v2823 = vld [vmem:[%s12 + $0xd0] sm:$0xff]
        %v2824 = vld [vmem:[%s12 + $0xd8] sm:$0xff]
        %v2825 = vld [vmem:[%s12 + $0xe0] sm:$0xff]
        %v2826 = vld [vmem:[%s12 + $0xe8] sm:$0xff]
        %v2827 = vld [vmem:[%s12 + $0xf0] sm:$0xff]
        %v2828 = vld [vmem:[%s12 + $0xf8] sm:$0xff]
        %v2829 = vld [vmem:[%s12 + $0x100] sm:$0xff]
        %v2830 = vld [vmem:[%s12 + $0x108] sm:$0xff]
        %v2831 = vld [vmem:[%s12 + $0x110] sm:$0xff]
        %v2832 = vld [vmem:[%s12 + $0x118] sm:$0xff]
        %v2833 = vld [vmem:[%s12 + $0x120] sm:$0xff]
        %v2834 = vld [vmem:[%s12 + $0x128] sm:$0xff]
        %v2835 = vld [vmem:[%s12 + $0x130] sm:$0xff]
        %v2836 = vld [vmem:[%s12 + $0x138] sm:$0xff]
        %v2837 = vld [vmem:[%s12 + $0x140] sm:$0xff]
        %v2838 = vld [vmem:[%s12 + $0x148] sm:$0xff]
        %v2839 = vld [vmem:[%s12 + $0x150] sm:$0xff]
        %v2840 = vld [vmem:[%s12 + $0x158] sm:$0xff]
        %v2841 = vld [vmem:[%s12 + $0x160] sm:$0xff]
        %v2842 = vld [vmem:[%s12 + $0x168] sm:$0xff]
        %v2843 = vld [vmem:[%s12 + $0x170] sm:$0xff]
        %v2844 = vld [vmem:[%s12 + $0x178] sm:$0xff]
        %v2845 = vld [vmem:[%s12 + $0x180] sm:$0xff]
        %v2846 = vld [vmem:[%s12 + $0x188] sm:$0xff]
        %v2847 = vld [vmem:[%s12 + $0x190] sm:$0xff]
        %v2848 = vld [vmem:[%s12 + $0x198] sm:$0xff]
        %v2849 = vld [vmem:[%s12 + $0x1a0] sm:$0xff]
        %v2850 = vld [vmem:[%s12 + $0x1a8] sm:$0xff]
        %v2851 = vmul.f32 %v2661, %v2797
        %v2852 = vmul.f32 %v2658, %v2798
        %v2853 = vmul.f32 %v2662, %v2799
        %v2854 = vmul.f32 %v2659, %v2800
        %v2855 = vmul.f32 %v2663, %v2801
        %v2856 = vmul.f32 %v2660, %v2802
        %v2857 = vmul.f32 %v2680, %v2803
        %v2858 = vmul.f32 %v2677, %v2804
        %v2859 = vmul.f32 %v2681, %v2805
        %v2860 = vmul.f32 %v2678, %v2806
        %v2861 = vmul.f32 %v2682, %v2807
        %v2862 = vmul.f32 %v2679, %v2808
        %v2863 = vmul.f32 %v2699, %v2809
        %v2864 = vmul.f32 %v2696, %v2810
        %v2865 = vmul.f32 %v2700, %v2811
        %v2866 = vmul.f32 %v2697, %v2812
        %v2867 = vmul.f32 %v2701, %v2813
        %v2868 = vmul.f32 %v2698, %v2814
        %v2869 = vmul.f32 %v2718, %v2815
        %v2870 = vmul.f32 %v2715, %v2816
        %v2871 = vmul.f32 %v2719, %v2817
        %v2872 = vmul.f32 %v2716, %v2818
        %v2873 = vmul.f32 %v2720, %v2819
        %v2874 = vmul.f32 %v2717, %v2820
        %v2875 = vmul.f32 %v2639, %v2821
        %v2876 = vmul.f32 %v2640, %v2822
        %v2877 = vmul.f32 %v2641, %v2823
        %v2878 = vmul.f32 %v2642, %v2824
        %v2879 = vmul.f32 %v517, %v2825
        %v2880 = vmul.f32 %v518, %v2826
        %v2881 = vmul.f32 %v2734, %v2827
        %v2882 = vmul.f32 %v2737, %v2828
        %v2883 = vmul.f32 %v2735, %v2829
        %v2884 = vmul.f32 %v2738, %v2830
        %v2885 = vmul.f32 %v2736, %v2831
        %v2886 = vmul.f32 %v2739, %v2832
        %v2887 = vmul.f32 %v2753, %v2833
        %v2888 = vmul.f32 %v2756, %v2834
        %v2889 = vmul.f32 %v2754, %v2835
        %v2890 = vmul.f32 %v2757, %v2836
        %v2891 = vmul.f32 %v2755, %v2837
        %v2892 = vmul.f32 %v2758, %v2838
        %v2893 = vmul.f32 %v2772, %v2839
        %v2894 = vmul.f32 %v2775, %v2840
        %v2895 = vmul.f32 %v2773, %v2841
        %v2896 = vmul.f32 %v2776, %v2842
        %v2897 = vmul.f32 %v2774, %v2843
        %v2898 = vmul.f32 %v2777, %v2844
        %v2899 = vmul.f32 %v2791, %v2845
        %v2900 = vmul.f32 %v2794, %v2846
        %v2901 = vmul.f32 %v2792, %v2847
        %v2902 = vmul.f32 %v2795, %v2848
        %v2903 = vmul.f32 %v2793, %v2849
        %v2904 = vmul.f32 %v2796, %v2850
        %v2905 = vld [vmem:[%s10] sm:$0xff]
        %v2906 = vld [vmem:[%s10 + $0x8] sm:$0xff]
        %v2907 = vld [vmem:[%s10 + $0x10] sm:$0xff]
        %v2908 = vld [vmem:[%s10 + $0x18] sm:$0xff]
        %v2909 = vld [vmem:[%s10 + $0x20] sm:$0xff]
        %v2910 = vld [vmem:[%s10 + $0x28] sm:$0xff]
        %v2911 = vld [vmem:[%s11] sm:$0xff]
        %v2912 = vld [vmem:[%s11 + $0x8] sm:$0xff]
        %v2913 = vld [vmem:[%s11 + $0x10] sm:$0xff]
        %2915 = vset.pattern.permute.xlu0 0
        %2916 = vperm.xlu0 %2915, %v2911
        %v2917 = vpop.permute.xlu0 %2916
        %2920 = vset.pattern.permute.xlu0 0
        %2921 = vperm.xlu0 %2920, %v2912
        %v2922 = vpop.permute.xlu0 %2921
        %2925 = vset.pattern.permute.xlu0 0
        %2926 = vperm.xlu0 %2925, %v2913
        %v2927 = vpop.permute.xlu0 %2926
        %vm2929 = vcmask 719872
        %v2931 = vsel %vm2929, %v2906, 0
        %v2934 = vsel %vm2929, %v2908, 0
        %v2937 = vsel %vm2929, %v2910, 0
        %2939 = vmatprep.subr.mxu0 %v2852
        %2940 = vmatpush1.msra.mxu0 %v2851
        %2941 = vmatprep.subr.mxu0 %v2854
        %2942 = vmatpush1.msra.mxu0 %v2853
        %2943 = vmatprep.subr.mxu0 %v2856
        %2944 = vmatpush1.msra.mxu0 %v2855
        %2945 = vmatprep.subr.mxu0 %v2858
        %2946 = vmatpush1.msra.mxu0 %v2857
        %2947 = vmatprep.subr.mxu0 %v2860
        %2948 = vmatpush1.msra.mxu0 %v2859
        %2949 = vmatprep.subr.mxu0 %v2862
        %2950 = vmatpush1.msra.mxu0 %v2861
        %2951 = vmatprep.subr.mxu0 %v2864
        %2952 = vmatpush1.msra.mxu0 %v2863
        %2953 = vmatprep.subr.mxu0 %v2866
        %2954 = vmatpush1.msra.mxu0 %v2865
        %2955 = vmatprep.subr.mxu0 %v2868
        %2956 = vmatpush1.msra.mxu0 %v2867
        %2957 = vmatprep.subr.mxu0 %v2870
        %2958 = vmatpush1.msra.mxu0 %v2869
        %2959 = vmatprep.subr.mxu0 %v2872
        %2960 = vmatpush1.msra.mxu0 %v2871
        %2961 = vmatprep.subr.mxu0 %v2874
        %2962 = vmatpush1.msra.mxu0 %v2873
        %2963 = vmatprep.subr.mxu0 %v2876
        %2964 = vmatpush1.msra.mxu0 %v2875
        %2965 = vmatprep.subr.mxu0 %v2878
        %2966 = vmatpush1.msra.mxu0 %v2877
        %2967 = vmatprep.subr.mxu0 %v2880
        %2968 = vmatpush1.msra.mxu0 %v2879
        %2969 = vmatprep.subr.mxu0 %v2882
        %2970 = vmatpush1.msra.mxu0 %v2881
        %2971 = vmatprep.subr.mxu0 %v2884
        %2972 = vmatpush1.msra.mxu0 %v2883
        %2973 = vmatprep.subr.mxu0 %v2886
        %2974 = vmatpush1.msra.mxu0 %v2885
        %2975 = vmatprep.subr.mxu0 %v2888
        %2976 = vmatpush1.msra.mxu0 %v2887
        %2977 = vmatprep.subr.mxu0 %v2890
        %2978 = vmatpush1.msra.mxu0 %v2889
        %2979 = vmatprep.subr.mxu0 %v2892
        %2980 = vmatpush1.msra.mxu0 %v2891
        %2981 = vmatprep.subr.mxu0 %v2894
        %2982 = vmatpush1.msra.mxu0 %v2893
        %2983 = vmatprep.subr.mxu0 %v2896
        %2984 = vmatpush1.msra.mxu0 %v2895
        %2985 = vmatprep.subr.mxu0 %v2898
        %2986 = vmatpush1.msra.mxu0 %v2897
        %2987 = vmatprep.subr.mxu0 %v2900
        %2988 = vmatpush1.msra.mxu0 %v2899
        %2989 = vmatprep.subr.mxu0 %v2902
        %2990 = vmatpush1.msra.mxu0 %v2901
        %2991 = vmatprep.subr.mxu0 %v2904
        %2992 = vmatpush1.msra.mxu0 %v2903
        %2993 = vmatprep.subr.mxu0 0.0
        %2994 = vmatpush1.msra.mxu0 0.0
        %2995 = vmatprep.subr.mxu0 0.0
        %2996 = vmatpush1.msra.mxu0 0.0
        %2997 = vmatprep.subr.mxu0 0.0
        %2998 = vmatpush1.msra.mxu0 0.0
        %2999 = vmatprep.subr.mxu0 0.0
        %3000 = vmatpush1.msra.mxu0 0.0
        %3001 = vmatprep.subr.mxu0 0.0
        %3002 = vmatpush1.msra.mxu0 0.0
        %3003 = vmatprep.mubr.f32.mxu0 %v2931
        %3004 = vmatmul.mubr.f32.gmra.mrb[0].mxu0 %v2905
        %v3005 = vpop.f32.mrb[0].mxu0
        %v3006 = vadd.f32 %v2917, %v3005
        %v3007 = vpop.f32.mrb[0].mxu0
        %v3008 = vadd.f32 %v2917, %v3007
        %3009 = vmatprep.mubr.f32.mxu0 %v2934
        %3010 = vmatmul.mubr.f32.gmra.mrb[0].mxu0 %v2907
        %v3011 = vpop.f32.mrb[0].mxu0
        %v3012 = vadd.f32 %v2922, %v3011
        %v3013 = vpop.f32.mrb[0].mxu0
        %v3014 = vadd.f32 %v2922, %v3013
        %3015 = vmatprep.mubr.f32.mxu0 %v2937
        %3016 = vmatmul.mubr.f32.gmra.mrb[0].mxu0 %v2909
        %v3017 = vpop.f32.mrb[0].mxu0
        %v3018 = vadd.f32 %v2927, %v3017
        %v3019 = vpop.f32.mrb[0].mxu0
        %v3020 = vadd.f32 %v2927, %v3019
        %3021 = vdwg.mxu0
        %v3022 = vxor.u32 %v3006, 2147483648
        %v3023 = vxor.u32 %v3008, 2147483648
        %v3024 = vmul.f32 %v3022, 1.442695
        %v3025 = vpow.pop %v3024
        %v3026 = vmul.f32 %v3023, 1.442695
        %v3027 = vpow.pop %v3026
        %v3028 = vadd.f32 %v3025, 1.0
        %v3029 = vadd.f32 %v3027, 1.0
        %v3030 = vrcp.pop %v3028
        %v3031 = vmul.f32 1.0, %v3030
        %v3032 = vrcp.pop %v3029
        %v3033 = vmul.f32 1.0, %v3032
        %v3034 = vtanh.pop %v3012
        %v3035 = vtanh.pop %v3014
        %v3036 = vxor.u32 %v3018, 2147483648
        %v3037 = vxor.u32 %v3020, 2147483648
        %v3038 = vmul.f32 %v3036, 1.442695
        %v3039 = vpow.pop %v3038
        %v3040 = vmul.f32 %v3037, 1.442695
        %v3041 = vpow.pop %v3040
        %v3042 = vadd.f32 %v3039, 1.0
        %v3043 = vadd.f32 %v3041, 1.0
        %v3044 = vrcp.pop %v3042
        %v3045 = vmul.f32 1.0, %v3044
        %v3046 = vrcp.pop %v3043
        %v3047 = vmul.f32 1.0, %v3046
        %v3048 = vmul.f32 %v3031, %v3034
        %v3049 = vmul.f32 %v3033, %v3035
        %v3050 = vsub.f32 1.0, %v3031
        %v3051 = vsub.f32 1.0, %v3033
        %v3052 = vmul.f32 %v3050, %v551
        %v3053 = vmul.f32 %v3051, %v552
        %v3054 = vadd.f32 %v3048, %v3052
        %v3055 = vadd.f32 %v3049, %v3053
        %3056 = vst [vmem:[%s501] sm:$0xff] %v3054
        %3057 = vst [vmem:[%s501 + $0x8] sm:$0xff] %v3055
        %v3058 = vmul.f32 %v3045, %v3054
        %v3059 = vmul.f32 %v3047, %v3055
        %3060 = vst [vmem:[%s494] sm:$0xff] %v3058
        %3061 = vst [vmem:[%s494 + $0x8] sm:$0xff] %v3059
        %s3062 = sand.u32 %s328, 1
        %s3063 = scalar_lea.sflag [#allocation3], %s3062
        %s3064 = sand.u32 %s328, 1
        %s3065 = smul.addr %s3064, 16
        %s3066 = scalar_lea.vmem [#allocation2], %s3065
        %s3067 = sand.u32 %s354, 1
        %s3068 = scalar_lea.sflag [#allocation5], %s3067
        %s3069 = sand.u32 %s354, 1
        %s3070 = smul.addr %s3069, 16
        %s3071 = scalar_lea.vmem [#allocation4], %s3070
        // Predicated region
        $region73: #{_saattnmem_forward.1} parent=71 // pred_check
          %p3072 = pneg %p338
        $region74: #{_saattnmem_forward.1} parent=71 // pred_check_branch
          %3074 = sbr.rel (%p3072) target = $region76
        $region75: #{_saattnmem_forward.1} parent=71 // pred_region
          %s3076 = ssub.s32 256, 256
          %3077 = vsyncadd %s3063, %s3076
          %s3078 = smul.addr %s32, 2
          %s3079 = smul.addr %s3078, 128
          %s3080 = scalar_lea.hbm %s13, %s3079
          %s3082 = sshll.u32 %s3066, 4
          %s3083 = int_to_ptr.vmem [resolvable:$true] %s3082
          %3085 = dma.vmem_to_hbm [thread:$0]  %s3083, 256, %s3080, %s3063
        $region76: #{_saattnmem_forward.1} parent=71 // pred_fallthru
          _
        // Predicated region
        $region77: #{_saattnmem_forward.1} parent=71 // pred_check
          %p3086 = pneg %p364
        $region78: #{_saattnmem_forward.1} parent=71 // pred_check_branch
          %3088 = sbr.rel (%p3086) target = $region80
        $region79: #{_saattnmem_forward.1} parent=71 // pred_region
          %s3090 = ssub.s32 256, 256
          %3091 = vsyncadd %s3068, %s3090
          %s3092 = smul.addr %s32, 2
          %s3093 = smul.addr %s3092, 128
          %s3094 = scalar_lea.hbm %s14, %s3093
          %s3096 = sshll.u32 %s3071, 4
          %s3097 = int_to_ptr.vmem [resolvable:$true] %s3096
          %3099 = dma.vmem_to_hbm [thread:$0]  %s3097, 256, %s3094, %s3068
        $region80: #{_saattnmem_forward.1} parent=71 // pred_fallthru
          _
      $region72: #{_saattnmem_forward.1} parent=5 // pred_fallthru
        _
      %p3100 = scmp.le.s32.totalorder 2, %s27
      // Predicated region
      $region81: #{_saattnmem_forward.1} parent=5 // pred_check
        %p3101 = pneg %p3100
      $region82: #{_saattnmem_forward.1} parent=5 // pred_check_branch
        %3103 = sbr.rel (%p3101) target = $region84
      $region83: #{_saattnmem_forward.1} parent=5 // pred_region
        %s3104 = ssub.s32 %s27, 2
        // Predicated region
        $region85: #{_saattnmem_forward.1} parent=83 // pred_check
          %p3105 = pneg %p344
        $region86: #{_saattnmem_forward.1} parent=83 // pred_check_branch
          %3107 = sbr.rel (%p3105) target = $region88
        $region87: #{_saattnmem_forward.1} parent=83 // pred_region
          %s3108 = sand.u32 %s329, 1
          %s3109 = scalar_lea.sflag [#allocation3], %s3108
          %s3110 = sand.u32 %s329, 1
          %s3111 = smul.addr %s3110, 16
          %s3112 = scalar_lea.vmem [#allocation2], %s3111
          %3113 = dma.done %s3109, 256
        $region88: #{_saattnmem_forward.1} parent=83 // pred_fallthru
          _
        // Predicated region
        $region89: #{_saattnmem_forward.1} parent=83 // pred_check
          %p3114 = pneg %p370
        $region90: #{_saattnmem_forward.1} parent=83 // pred_check_branch
          %3116 = sbr.rel (%p3114) target = $region92
        $region91: #{_saattnmem_forward.1} parent=83 // pred_region
          %s3117 = sand.u32 %s355, 1
          %s3118 = scalar_lea.sflag [#allocation5], %s3117
          %s3119 = sand.u32 %s355, 1
          %s3120 = smul.addr %s3119, 16
          %s3121 = scalar_lea.vmem [#allocation4], %s3120
          %3122 = dma.done %s3118, 256
        $region92: #{_saattnmem_forward.1} parent=83 // pred_fallthru
          _
      $region84: #{_saattnmem_forward.1} parent=5 // pred_fallthru
        _
    $region6: #{_saattnmem_forward.1} parent=1 // loop_footer
      %s31 = sadd.s32 1, %s27
    $region7: #{_saattnmem_forward.1} parent=1 // loop_footer_branch
      %26 = sbr.rel target = $region3
    $region8: #{_saattnmem_forward.1} parent=1 // loop_exit
      _
    %3123 = vsyncpa [#allocation3], 1
    %s3124 = scalar_lea.sflag [#allocation3], 1
    %3125 = vsyncpa %s3124, 1
    %3126 = vsyncpa [#allocation5], 1
    %s3127 = scalar_lea.sflag [#allocation5], 1
    %3128 = vsyncpa %s3127, 1

</llo_original>
